<compile_context>
chip_gen: v7x
topology: tpu7x:2x2x1
jax: 0.10.0
libtpu: 0.0.40
codegen_flags: <defaults>
</compile_context>

<pallas_src>
import functools

import jax
import jax.numpy as jnp
from jax import lax
from jax.experimental import pallas as pl
from jax.experimental.pallas import tpu as pltpu


# ---------------------------------------------------------------------------
# Fused kernel: (Conv3x3 + GroupNorm + LeakyReLU) x 2, Nb samples per step.
# ---------------------------------------------------------------------------
def _convblock_kernel(x_ref, mask_ref, p_ref, w1_ref, w2_ref, scal_ref,
                      o_ref, *, H, W, Nb, neg_slope, eps):
    HW = H * W

    # Hoisted constant loads (resident across the unrolled sample loop).
    mask = mask_ref[...]                       # (9, HW)  f32 border masks
    p_mat = p_ref[...]                         # (Cout, Cout) group-avg matrix
    sc = scal_ref[...]                         # (Cout, 8) packed scalars
    b1, g1, be1 = sc[:, 0:1], sc[:, 1:2], sc[:, 2:3]
    b2, g2, be2 = sc[:, 3:4], sc[:, 4:5], sc[:, 5:6]
    w1 = [w1_ref[k] for k in range(3)]         # 3 x (Cout, 3*Cin)  bf16
    w2 = [w2_ref[k] for k in range(3)]         # 3 x (Cout, 3*Cout) bf16

    def conv3x3(x, w_slabs):
        # im2col in the flattened (C, H*W) lane layout: every tap is a lane
        # rotation (XLU) masked at the image border (mask math in f32, cast to
        # bf16 only at the dot).  Accumulate over ky: 3 matmuls with K = 3*C
        # instead of one 9*C concat -> 3x lower live im2col footprint.
        acc = None
        for ky in range(3):
            taps = []
            for kx in range(3):
                d = (ky - 1) * W + (kx - 1)        # flat source offset
                if d == 0:
                    taps.append(x)                 # center tap: no shift/mask
                else:
                    k = ky * 3 + kx
                    t = pltpu.roll(x, shift=(-d) % HW, axis=1)
                    taps.append(t * mask[k:k + 1, :])
            patches = jnp.concatenate(taps, axis=0).astype(jnp.bfloat16)
            part = jnp.dot(w_slabs[ky], patches,
                           preferred_element_type=jnp.float32)
            acc = part if acc is None else acc + part
        return acc                                  # (Cout, HW) f32

    def gn_lrelu(a, gamma, beta):
        # Per-channel lane reductions; ONE group-averaging matmul broadcasts
        # both statistics (sum, sum-of-squares) back to channels.
        s = jnp.sum(a, axis=1, keepdims=True)       # (Cout, 1)
        sq = jnp.sum(a * a, axis=1, keepdims=True)  # (Cout, 1)
        stats = jnp.dot(p_mat, jnp.concatenate([s, sq], axis=1),
                        preferred_element_type=jnp.float32)   # (Cout, 2)
        mean = stats[:, 0:1]
        var = jnp.maximum(stats[:, 1:2] - mean * mean, 0.0)   # clamp vs cancel
        y = (a - mean) * lax.rsqrt(var + eps)
        y = y * gamma + beta                        # per-channel affine
        return jnp.where(y >= 0, y, neg_slope * y)  # LeakyReLU

    for i in range(Nb):                             # unrolled per-sample loop
        x = x_ref[i]                                # (Cin, HW) f32
        a1 = conv3x3(x, w1) + b1
        y1 = gn_lrelu(a1, g1, be1)
        a2 = conv3x3(y1, w2) + b2
        y2 = gn_lrelu(a2, g2, be2)
        o_ref[i] = y2                               # lane-dense (Cout, HW)


# ---------------------------------------------------------------------------
# Host-side constant helpers (hoisted out of the kernel body).
# ---------------------------------------------------------------------------
def _tap_masks(H, W):
    """(9, H*W) f32 validity masks for the 3x3 taps (zero padding borders)."""
    y = jnp.arange(H)[:, None]
    x = jnp.arange(W)[None, :]
    masks = []
    for ky in range(3):
        for kx in range(3):
            dy, dx = ky - 1, kx - 1
            valid = ((y + dy >= 0) & (y + dy < H) &
                     (x + dx >= 0) & (x + dx < W))
            masks.append(valid.reshape(-1))
    return jnp.stack(masks).astype(jnp.float32)


def _group_avg_matrix(C, num_groups, HW):
    """(C, C) matrix averaging per-channel sums within each GroupNorm group."""
    cg = C // num_groups
    idx = jnp.arange(C)
    same = (idx[:, None] // cg) == (idx[None, :] // cg)
    return same.astype(jnp.float32) / float(cg * HW)


def _prep_conv_weight(w):
    """PyTorch OIHW -> (3, Cout, 3*Cin) bf16, per-ky slabs, columns (kx, ci)."""
    O, I = w.shape[0], w.shape[1]
    w_t = jnp.transpose(w, (2, 0, 3, 1))            # (ky, O, kx, I)
    return w_t.reshape(3, O, 3 * I).astype(jnp.bfloat16)


def _pick_batch_tile(N, max_nb=8):
    """Largest Nb dividing N that keeps >= 2 grid steps (when N >= 2)."""
    best = 1
    for nb in range(1, min(N, max_nb) + 1):
        if N % nb == 0 and (N // nb >= 2 or N == 1):
            best = nb
    return best


# ---------------------------------------------------------------------------
# Public wrapper: NCHW in, NCHW out (exactly like the PyTorch module).
# ---------------------------------------------------------------------------
def conv_block(x_nchw, params, *, num_groups, negative_slope, eps=1e-5,
               max_batch_tile=8):
    N, Cin, H, W = x_nchw.shape
    Cout = params["b1"].shape[0]
    HW = H * W
    assert Cout % num_groups == 0, "out_chans must be divisible by num_groups"
    assert HW % 128 == 0, "lane-dense layout requires H*W % 128 == 0"
    Nb = _pick_batch_tile(N, max_batch_tile)

    x_flat = x_nchw.reshape(N, Cin, HW).astype(jnp.float32)   # free reshape
    masks = _tap_masks(H, W)
    p_mat = _group_avg_matrix(Cout, num_groups, HW)
    w1 = _prep_conv_weight(params["w1"])                      # (3,Cout,3*Cin)
    w2 = _prep_conv_weight(params["w2"])                      # (3,Cout,3*Cout)
    z = jnp.zeros((Cout,), jnp.float32)
    scal = jnp.stack([params["b1"], params["g1"], params["be1"],
                      params["b2"], params["g2"], params["be2"], z, z],
                     axis=1).astype(jnp.float32)              # (Cout, 8)

    kernel = functools.partial(_convblock_kernel, H=H, W=W, Nb=Nb,
                               neg_slope=negative_slope, eps=eps)
    const2 = lambda n: (0, 0)
    const3 = lambda n: (0, 0, 0)

    out = pl.pallas_call(
        kernel,
        out_shape=jax.ShapeDtypeStruct((N, Cout, HW), jnp.float32),
        grid=(N // Nb,),
        in_specs=[
            pl.BlockSpec((Nb, Cin, HW), lambda n: (n, 0, 0)),
            pl.BlockSpec((9, HW), const2),
            pl.BlockSpec((Cout, Cout), const2),
            pl.BlockSpec((3, Cout, 3 * Cin), const3),
            pl.BlockSpec((3, Cout, 3 * Cout), const3),
            pl.BlockSpec((Cout, 8), const2),
        ],
        out_specs=pl.BlockSpec((Nb, Cout, HW), lambda n: (n, 0, 0)),
        compiler_params=pltpu.CompilerParams(
            dimension_semantics=("parallel",)),
    )(x_flat, masks, p_mat, w1, w2, scal)

    return out.reshape(N, Cout, H, W)                          # free reshape


# ---------------------------------------------------------------------------
# Parameter init + pure-JAX references (for correctness check).
# ---------------------------------------------------------------------------
def init_params(key, in_chans, out_chans):
    ks = jax.random.split(key, 8)
    f = jnp.float32
    return dict(
        w1=0.2 * jax.random.normal(ks[0], (out_chans, in_chans, 3, 3), f),
        b1=0.05 * jax.random.normal(ks[1], (out_chans,), f),
        g1=1.0 + 0.1 * jax.random.normal(ks[2], (out_chans,), f),
        be1=0.05 * jax.random.normal(ks[3], (out_chans,), f),
        w2=0.2 * jax.random.normal(ks[4], (out_chans, out_chans, 3, 3), f),
        b2=0.05 * jax.random.normal(ks[5], (out_chans,), f),
        g2=1.0 + 0.1 * jax.random.normal(ks[6], (out_chans,), f),
        be2=0.05 * jax.random.normal(ks[7], (out_chans,), f),
    )


def reference_conv_block(x, p, *, num_groups, negative_slope, eps=1e-5,
                         conv_dtype=jnp.float32):
    """Reference. conv_dtype=bf16 mirrors the kernel's MXU operand numerics."""
    def stage(x, w, b, g, be):
        y = lax.conv_general_dilated(
            x.astype(conv_dtype), w.astype(conv_dtype),
            window_strides=(1, 1), padding=((1, 1), (1, 1)),
            dimension_numbers=("NCHW", "OIHW", "NCHW"),
            preferred_element_type=jnp.float32)
        y = y + b[None, :, None, None]
        N, C, H, W = y.shape
        yg = y.reshape(N, num_groups, -1)
        mean = yg.mean(axis=2, keepdims=True)
        var = yg.var(axis=2, keepdims=True)
        y = ((yg - mean) * lax.rsqrt(var + eps)).reshape(N, C, H, W)
        y = y * g[None, :, None, None] + be[None, :, None, None]
        return jnp.where(y >= 0, y, negative_slope * y)

    y = stage(x, p["w1"], p["b1"], p["g1"], p["be1"])
    return stage(y, p["w2"], p["b2"], p["g2"], p["be2"])


if __name__ == "__main__":
    # ConvBlock(in_chans=4, out_chans=8, num_groups=4, negative_slope=0.01)
    in_chans, out_chans = 4, 8
    num_groups, negative_slope = 4, 0.01
    N, H, W = 8, 16, 16          # N=8 exercises Nb=4 batching with a 2-step grid

    key = jax.random.PRNGKey(0)
    kx, kp = jax.random.split(key)
    x = jax.random.normal(kx, (N, in_chans, H, W), jnp.float32)
    params = init_params(kp, in_chans, out_chans)

    fwd = jax.jit(functools.partial(conv_block, num_groups=num_groups,
                                    negative_slope=negative_slope))
    y = fwd(x, params)
    jax.block_until_ready(y)
    assert y.shape == (N, out_chans, H, W), y.shape
    assert bool(jnp.all(jnp.isfinite(y)))

    # Check against (a) a reference sharing the kernel's bf16-operand conv
    # numerics (tight) and (b) the exact f32 reference (bf16-rounding bound).
    y_ref_f32 = reference_conv_block(x, params, num_groups=num_groups,
                                     negative_slope=negative_slope)
    y_ref_b16 = reference_conv_block(x, params, num_groups=num_groups,
                                     negative_slope=negative_slope,
                                     conv_dtype=jnp.bfloat16)
    err_b16 = float(jnp.max(jnp.abs(y - y_ref_b16)))
    err_f32 = float(jnp.max(jnp.abs(y - y_ref_f32)))
    assert err_b16 < 2e-2, f"max abs err vs bf16-conv reference: {err_b16}"
    assert err_f32 < 5e-2, f"max abs err vs f32 reference: {err_f32}"
    print("KERNEL_OK")
</pallas_src>

<mosaic_0001>
module attributes {stable_mosaic.version = 11 : i64} {
  func.func @_convblock_kernel(%arg0: i32, %arg1: memref<4x4x256xf32, #tpu.memory_space<vmem>>, %arg2: memref<9x256xf32, #tpu.memory_space<vmem>>, %arg3: memref<8x8xf32, #tpu.memory_space<vmem>>, %arg4: memref<3x8x12xbf16, #tpu.memory_space<vmem>>, %arg5: memref<3x8x24xbf16, #tpu.memory_space<vmem>>, %arg6: memref<8x8xf32, #tpu.memory_space<vmem>>, %arg7: memref<4x8x256xf32, #tpu.memory_space<vmem>>) attributes {dimension_semantics = [#tpu.dimension_semantics<parallel>], iteration_bounds = array<i64: 2>, scalar_prefetch = 0 : i64, scratch_operands = 0 : i64, tpu.core_type = #tpu.core_type<tc>, window_params = [{transform_indices = @transform_0, window_bounds = array<i64: 4, 4, 256>}, {pipeline_mode = #tpu.pipeline_mode<synchronous>, transform_indices = @transform_1, window_bounds = array<i64: 9, 256>}, {pipeline_mode = #tpu.pipeline_mode<synchronous>, transform_indices = @transform_2, window_bounds = array<i64: 8, 8>}, {pipeline_mode = #tpu.pipeline_mode<synchronous>, transform_indices = @transform_3, window_bounds = array<i64: 3, 8, 12>}, {pipeline_mode = #tpu.pipeline_mode<synchronous>, transform_indices = @transform_4, window_bounds = array<i64: 3, 8, 24>}, {pipeline_mode = #tpu.pipeline_mode<synchronous>, transform_indices = @transform_5, window_bounds = array<i64: 8, 8>}, {transform_indices = @transform_6, window_bounds = array<i64: 4, 8, 256>}]} {
    %c0 = arith.constant 0 : index
    %c0_0 = arith.constant 0 : index
    %0 = vector.load %arg2[%c0, %c0_0] : memref<9x256xf32, #tpu.memory_space<vmem>>, vector<9x256xf32>
    %c0_1 = arith.constant 0 : index
    %c0_2 = arith.constant 0 : index
    %1 = vector.load %arg3[%c0_1, %c0_2] : memref<8x8xf32, #tpu.memory_space<vmem>>, vector<8x8xf32>
    %c0_3 = arith.constant 0 : index
    %c0_4 = arith.constant 0 : index
    %2 = vector.load %arg6[%c0_3, %c0_4] : memref<8x8xf32, #tpu.memory_space<vmem>>, vector<8x8xf32>
    %3 = vector.extract_strided_slice %2 {offsets = [0, 0], sizes = [8, 1], strides = [1, 1]} : vector<8x8xf32> to vector<8x1xf32>
    %4 = vector.extract_strided_slice %2 {offsets = [0, 1], sizes = [8, 1], strides = [1, 1]} : vector<8x8xf32> to vector<8x1xf32>
    %5 = vector.extract_strided_slice %2 {offsets = [0, 2], sizes = [8, 1], strides = [1, 1]} : vector<8x8xf32> to vector<8x1xf32>
    %6 = vector.extract_strided_slice %2 {offsets = [0, 3], sizes = [8, 1], strides = [1, 1]} : vector<8x8xf32> to vector<8x1xf32>
    %7 = vector.extract_strided_slice %2 {offsets = [0, 4], sizes = [8, 1], strides = [1, 1]} : vector<8x8xf32> to vector<8x1xf32>
    %8 = vector.extract_strided_slice %2 {offsets = [0, 5], sizes = [8, 1], strides = [1, 1]} : vector<8x8xf32> to vector<8x1xf32>
    %c0_5 = arith.constant 0 : index
    %c0_6 = arith.constant 0 : index
    %c0_7 = arith.constant 0 : index
    %9 = vector.load %arg4[%c0_5, %c0_6, %c0_7] : memref<3x8x12xbf16, #tpu.memory_space<vmem>>, vector<1x8x12xbf16>
    %10 = vector.shape_cast %9 : vector<1x8x12xbf16> to vector<8x12xbf16>
    %c1 = arith.constant 1 : index
    %c0_8 = arith.constant 0 : index
    %c0_9 = arith.constant 0 : index
    %11 = vector.load %arg4[%c1, %c0_8, %c0_9] : memref<3x8x12xbf16, #tpu.memory_space<vmem>>, vector<1x8x12xbf16>
    %12 = vector.shape_cast %11 : vector<1x8x12xbf16> to vector<8x12xbf16>
    %c2 = arith.constant 2 : index
    %c0_10 = arith.constant 0 : index
    %c0_11 = arith.constant 0 : index
    %13 = vector.load %arg4[%c2, %c0_10, %c0_11] : memref<3x8x12xbf16, #tpu.memory_space<vmem>>, vector<1x8x12xbf16>
    %14 = vector.shape_cast %13 : vector<1x8x12xbf16> to vector<8x12xbf16>
    %c0_12 = arith.constant 0 : index
    %c0_13 = arith.constant 0 : index
    %c0_14 = arith.constant 0 : index
    %15 = vector.load %arg5[%c0_12, %c0_13, %c0_14] : memref<3x8x24xbf16, #tpu.memory_space<vmem>>, vector<1x8x24xbf16>
    %16 = vector.shape_cast %15 : vector<1x8x24xbf16> to vector<8x24xbf16>
    %c1_15 = arith.constant 1 : index
    %c0_16 = arith.constant 0 : index
    %c0_17 = arith.constant 0 : index
    %17 = vector.load %arg5[%c1_15, %c0_16, %c0_17] : memref<3x8x24xbf16, #tpu.memory_space<vmem>>, vector<1x8x24xbf16>
    %18 = vector.shape_cast %17 : vector<1x8x24xbf16> to vector<8x24xbf16>
    %c2_18 = arith.constant 2 : index
    %c0_19 = arith.constant 0 : index
    %c0_20 = arith.constant 0 : index
    %19 = vector.load %arg5[%c2_18, %c0_19, %c0_20] : memref<3x8x24xbf16, #tpu.memory_space<vmem>>, vector<1x8x24xbf16>
    %20 = vector.shape_cast %19 : vector<1x8x24xbf16> to vector<8x24xbf16>
    %c0_21 = arith.constant 0 : index
    %c0_22 = arith.constant 0 : index
    %c0_23 = arith.constant 0 : index
    %21 = vector.load %arg1[%c0_21, %c0_22, %c0_23] : memref<4x4x256xf32, #tpu.memory_space<vmem>>, vector<1x4x256xf32>
    %22 = vector.shape_cast %21 : vector<1x4x256xf32> to vector<4x256xf32>
    %c17_i32 = arith.constant 17 : i32
    %23 = tpu.dynamic_rotate %22 by %c17_i32 dim 1 : vector<4x256xf32>, i32 -> vector<4x256xf32>
    %24 = vector.extract_strided_slice %0 {offsets = [0, 0], sizes = [1, 256], strides = [1, 1]} : vector<9x256xf32> to vector<1x256xf32>
    %25 = vector.broadcast %24 : vector<1x256xf32> to vector<4x256xf32>
    %26 = arith.mulf %23, %25 : vector<4x256xf32>
    %c16_i32 = arith.constant 16 : i32
    %27 = tpu.dynamic_rotate %22 by %c16_i32 dim 1 : vector<4x256xf32>, i32 -> vector<4x256xf32>
    %28 = vector.extract_strided_slice %0 {offsets = [1, 0], sizes = [1, 256], strides = [1, 1]} : vector<9x256xf32> to vector<1x256xf32>
    %29 = vector.broadcast %28 : vector<1x256xf32> to vector<4x256xf32>
    %30 = arith.mulf %27, %29 : vector<4x256xf32>
    %c15_i32 = arith.constant 15 : i32
    %31 = tpu.dynamic_rotate %22 by %c15_i32 dim 1 : vector<4x256xf32>, i32 -> vector<4x256xf32>
    %32 = vector.extract_strided_slice %0 {offsets = [2, 0], sizes = [1, 256], strides = [1, 1]} : vector<9x256xf32> to vector<1x256xf32>
    %33 = vector.broadcast %32 : vector<1x256xf32> to vector<4x256xf32>
    %34 = arith.mulf %31, %33 : vector<4x256xf32>
    %35 = tpu.concatenate %26, %30, %34 in 0 : vector<4x256xf32>, vector<4x256xf32>, vector<4x256xf32> -> vector<12x256xf32>
    %36 = arith.truncf %35 : vector<12x256xf32> to vector<12x256xbf16>
    %cst = arith.constant dense<0.000000e+00> : vector<8x256xf32>
    %37 = tpu.matmul %10, %36, %cst {dimension_numbers = #tpu.dot_dimension_numbers<[1], [0], [0], [1], [0, 0, 1, 1], [], []>} : vector<8x12xbf16>, vector<12x256xbf16>, vector<8x256xf32> -> vector<8x256xf32>
    %c1_i32 = arith.constant 1 : i32
    %38 = tpu.dynamic_rotate %22 by %c1_i32 dim 1 : vector<4x256xf32>, i32 -> vector<4x256xf32>
    %39 = vector.extract_strided_slice %0 {offsets = [3, 0], sizes = [1, 256], strides = [1, 1]} : vector<9x256xf32> to vector<1x256xf32>
    %40 = vector.broadcast %39 : vector<1x256xf32> to vector<4x256xf32>
    %41 = arith.mulf %38, %40 : vector<4x256xf32>
    %c255_i32 = arith.constant 255 : i32
    %42 = tpu.dynamic_rotate %22 by %c255_i32 dim 1 : vector<4x256xf32>, i32 -> vector<4x256xf32>
    %43 = vector.extract_strided_slice %0 {offsets = [5, 0], sizes = [1, 256], strides = [1, 1]} : vector<9x256xf32> to vector<1x256xf32>
    %44 = vector.broadcast %43 : vector<1x256xf32> to vector<4x256xf32>
    %45 = arith.mulf %42, %44 : vector<4x256xf32>
    %46 = tpu.concatenate %41, %22, %45 in 0 : vector<4x256xf32>, vector<4x256xf32>, vector<4x256xf32> -> vector<12x256xf32>
    %47 = arith.truncf %46 : vector<12x256xf32> to vector<12x256xbf16>
    %cst_24 = arith.constant dense<0.000000e+00> : vector<8x256xf32>
    %48 = tpu.matmul %12, %47, %cst_24 {dimension_numbers = #tpu.dot_dimension_numbers<[1], [0], [0], [1], [0, 0, 1, 1], [], []>} : vector<8x12xbf16>, vector<12x256xbf16>, vector<8x256xf32> -> vector<8x256xf32>
    %49 = arith.addf %37, %48 : vector<8x256xf32>
    %c241_i32 = arith.constant 241 : i32
    %50 = tpu.dynamic_rotate %22 by %c241_i32 dim 1 : vector<4x256xf32>, i32 -> vector<4x256xf32>
    %51 = vector.extract_strided_slice %0 {offsets = [6, 0], sizes = [1, 256], strides = [1, 1]} : vector<9x256xf32> to vector<1x256xf32>
    %52 = vector.broadcast %51 : vector<1x256xf32> to vector<4x256xf32>
    %53 = arith.mulf %50, %52 : vector<4x256xf32>
    %c240_i32 = arith.constant 240 : i32
    %54 = tpu.dynamic_rotate %22 by %c240_i32 dim 1 : vector<4x256xf32>, i32 -> vector<4x256xf32>
    %55 = vector.extract_strided_slice %0 {offsets = [7, 0], sizes = [1, 256], strides = [1, 1]} : vector<9x256xf32> to vector<1x256xf32>
    %56 = vector.broadcast %55 : vector<1x256xf32> to vector<4x256xf32>
    %57 = arith.mulf %54, %56 : vector<4x256xf32>
    %c239_i32 = arith.constant 239 : i32
    %58 = tpu.dynamic_rotate %22 by %c239_i32 dim 1 : vector<4x256xf32>, i32 -> vector<4x256xf32>
    %59 = vector.extract_strided_slice %0 {offsets = [8, 0], sizes = [1, 256], strides = [1, 1]} : vector<9x256xf32> to vector<1x256xf32>
    %60 = vector.broadcast %59 : vector<1x256xf32> to vector<4x256xf32>
    %61 = arith.mulf %58, %60 : vector<4x256xf32>
    %62 = tpu.concatenate %53, %57, %61 in 0 : vector<4x256xf32>, vector<4x256xf32>, vector<4x256xf32> -> vector<12x256xf32>
    %63 = arith.truncf %62 : vector<12x256xf32> to vector<12x256xbf16>
    %cst_25 = arith.constant dense<0.000000e+00> : vector<8x256xf32>
    %64 = tpu.matmul %14, %63, %cst_25 {dimension_numbers = #tpu.dot_dimension_numbers<[1], [0], [0], [1], [0, 0, 1, 1], [], []>} : vector<8x12xbf16>, vector<12x256xbf16>, vector<8x256xf32> -> vector<8x256xf32>
    %65 = arith.addf %49, %64 : vector<8x256xf32>
    %66 = vector.broadcast %3 : vector<8x1xf32> to vector<8x256xf32>
    %67 = arith.addf %65, %66 : vector<8x256xf32>
    %cst_26 = arith.constant dense<0.000000e+00> : vector<8xf32>
    %68 = vector.multi_reduction <add>, %67, %cst_26 [1] : vector<8x256xf32> to vector<8xf32>
    %69 = vector.shape_cast %68 : vector<8xf32> to vector<8x1xf32>
    %70 = arith.mulf %67, %67 : vector<8x256xf32>
    %cst_27 = arith.constant dense<0.000000e+00> : vector<8xf32>
    %71 = vector.multi_reduction <add>, %70, %cst_27 [1] : vector<8x256xf32> to vector<8xf32>
    %72 = vector.shape_cast %71 : vector<8xf32> to vector<8x1xf32>
    %73 = tpu.concatenate %69, %72 in 1 : vector<8x1xf32>, vector<8x1xf32> -> vector<8x2xf32>
    %cst_28 = arith.constant dense<0.000000e+00> : vector<8x2xf32>
    %74 = tpu.matmul %1, %73, %cst_28 {dimension_numbers = #tpu.dot_dimension_numbers<[1], [0], [0], [1], [0, 0, 1, 1], [], []>} : vector<8x8xf32>, vector<8x2xf32>, vector<8x2xf32> -> vector<8x2xf32>
    %75 = vector.extract_strided_slice %74 {offsets = [0, 0], sizes = [8, 1], strides = [1, 1]} : vector<8x2xf32> to vector<8x1xf32>
    %76 = vector.extract_strided_slice %74 {offsets = [0, 1], sizes = [8, 1], strides = [1, 1]} : vector<8x2xf32> to vector<8x1xf32>
    %77 = arith.mulf %75, %75 : vector<8x1xf32>
    %78 = arith.subf %76, %77 : vector<8x1xf32>
    %cst_29 = arith.constant 0.000000e+00 : f32
    %79 = vector.broadcast %cst_29 : f32 to vector<8x1xf32>
    %80 = arith.maximumf %78, %79 : vector<8x1xf32>
    %81 = vector.broadcast %75 : vector<8x1xf32> to vector<8x256xf32>
    %82 = arith.subf %67, %81 : vector<8x256xf32>
    %cst_30 = arith.constant 9.99999974E-6 : f32
    %83 = vector.broadcast %cst_30 : f32 to vector<8x1xf32>
    %84 = arith.addf %80, %83 : vector<8x1xf32>
    %85 = math.rsqrt %84 : vector<8x1xf32>
    %86 = vector.broadcast %85 : vector<8x1xf32> to vector<8x256xf32>
    %87 = arith.mulf %82, %86 : vector<8x256xf32>
    %88 = vector.broadcast %4 : vector<8x1xf32> to vector<8x256xf32>
    %89 = arith.mulf %87, %88 : vector<8x256xf32>
    %90 = vector.broadcast %5 : vector<8x1xf32> to vector<8x256xf32>
    %91 = arith.addf %89, %90 : vector<8x256xf32>
    %cst_31 = arith.constant 0.000000e+00 : f32
    %92 = vector.broadcast %cst_31 : f32 to vector<8x256xf32>
    %93 = arith.cmpf oge, %91, %92 : vector<8x256xf32>
    %cst_32 = arith.constant 0.00999999977 : f32
    %94 = vector.broadcast %cst_32 : f32 to vector<8x256xf32>
    %95 = arith.mulf %94, %91 : vector<8x256xf32>
    %96 = arith.select %93, %91, %95 : vector<8x256xi1>, vector<8x256xf32>
    %c17_i32_33 = arith.constant 17 : i32
    %97 = tpu.dynamic_rotate %96 by %c17_i32_33 dim 1 : vector<8x256xf32>, i32 -> vector<8x256xf32>
    %98 = vector.extract_strided_slice %0 {offsets = [0, 0], sizes = [1, 256], strides = [1, 1]} : vector<9x256xf32> to vector<1x256xf32>
    %99 = vector.broadcast %98 : vector<1x256xf32> to vector<8x256xf32>
    %100 = arith.mulf %97, %99 : vector<8x256xf32>
    %c16_i32_34 = arith.constant 16 : i32
    %101 = tpu.dynamic_rotate %96 by %c16_i32_34 dim 1 : vector<8x256xf32>, i32 -> vector<8x256xf32>
    %102 = vector.extract_strided_slice %0 {offsets = [1, 0], sizes = [1, 256], strides = [1, 1]} : vector<9x256xf32> to vector<1x256xf32>
    %103 = vector.broadcast %102 : vector<1x256xf32> to vector<8x256xf32>
    %104 = arith.mulf %101, %103 : vector<8x256xf32>
    %c15_i32_35 = arith.constant 15 : i32
    %105 = tpu.dynamic_rotate %96 by %c15_i32_35 dim 1 : vector<8x256xf32>, i32 -> vector<8x256xf32>
    %106 = vector.extract_strided_slice %0 {offsets = [2, 0], sizes = [1, 256], strides = [1, 1]} : vector<9x256xf32> to vector<1x256xf32>
    %107 = vector.broadcast %106 : vector<1x256xf32> to vector<8x256xf32>
    %108 = arith.mulf %105, %107 : vector<8x256xf32>
    %109 = tpu.concatenate %100, %104, %108 in 0 : vector<8x256xf32>, vector<8x256xf32>, vector<8x256xf32> -> vector<24x256xf32>
    %110 = arith.truncf %109 : vector<24x256xf32> to vector<24x256xbf16>
    %cst_36 = arith.constant dense<0.000000e+00> : vector<8x256xf32>
    %111 = tpu.matmul %16, %110, %cst_36 {dimension_numbers = #tpu.dot_dimension_numbers<[1], [0], [0], [1], [0, 0, 1, 1], [], []>} : vector<8x24xbf16>, vector<24x256xbf16>, vector<8x256xf32> -> vector<8x256xf32>
    %c1_i32_37 = arith.constant 1 : i32
    %112 = tpu.dynamic_rotate %96 by %c1_i32_37 dim 1 : vector<8x256xf32>, i32 -> vector<8x256xf32>
    %113 = vector.extract_strided_slice %0 {offsets = [3, 0], sizes = [1, 256], strides = [1, 1]} : vector<9x256xf32> to vector<1x256xf32>
    %114 = vector.broadcast %113 : vector<1x256xf32> to vector<8x256xf32>
    %115 = arith.mulf %112, %114 : vector<8x256xf32>
    %c255_i32_38 = arith.constant 255 : i32
    %116 = tpu.dynamic_rotate %96 by %c255_i32_38 dim 1 : vector<8x256xf32>, i32 -> vector<8x256xf32>
    %117 = vector.extract_strided_slice %0 {offsets = [5, 0], sizes = [1, 256], strides = [1, 1]} : vector<9x256xf32> to vector<1x256xf32>
    %118 = vector.broadcast %117 : vector<1x256xf32> to vector<8x256xf32>
    %119 = arith.mulf %116, %118 : vector<8x256xf32>
    %120 = tpu.concatenate %115, %96, %119 in 0 : vector<8x256xf32>, vector<8x256xf32>, vector<8x256xf32> -> vector<24x256xf32>
    %121 = arith.truncf %120 : vector<24x256xf32> to vector<24x256xbf16>
    %cst_39 = arith.constant dense<0.000000e+00> : vector<8x256xf32>
    %122 = tpu.matmul %18, %121, %cst_39 {dimension_numbers = #tpu.dot_dimension_numbers<[1], [0], [0], [1], [0, 0, 1, 1], [], []>} : vector<8x24xbf16>, vector<24x256xbf16>, vector<8x256xf32> -> vector<8x256xf32>
    %123 = arith.addf %111, %122 : vector<8x256xf32>
    %c241_i32_40 = arith.constant 241 : i32
    %124 = tpu.dynamic_rotate %96 by %c241_i32_40 dim 1 : vector<8x256xf32>, i32 -> vector<8x256xf32>
    %125 = vector.extract_strided_slice %0 {offsets = [6, 0], sizes = [1, 256], strides = [1, 1]} : vector<9x256xf32> to vector<1x256xf32>
    %126 = vector.broadcast %125 : vector<1x256xf32> to vector<8x256xf32>
    %127 = arith.mulf %124, %126 : vector<8x256xf32>
    %c240_i32_41 = arith.constant 240 : i32
    %128 = tpu.dynamic_rotate %96 by %c240_i32_41 dim 1 : vector<8x256xf32>, i32 -> vector<8x256xf32>
    %129 = vector.extract_strided_slice %0 {offsets = [7, 0], sizes = [1, 256], strides = [1, 1]} : vector<9x256xf32> to vector<1x256xf32>
    %130 = vector.broadcast %129 : vector<1x256xf32> to vector<8x256xf32>
    %131 = arith.mulf %128, %130 : vector<8x256xf32>
    %c239_i32_42 = arith.constant 239 : i32
    %132 = tpu.dynamic_rotate %96 by %c239_i32_42 dim 1 : vector<8x256xf32>, i32 -> vector<8x256xf32>
    %133 = vector.extract_strided_slice %0 {offsets = [8, 0], sizes = [1, 256], strides = [1, 1]} : vector<9x256xf32> to vector<1x256xf32>
    %134 = vector.broadcast %133 : vector<1x256xf32> to vector<8x256xf32>
    %135 = arith.mulf %132, %134 : vector<8x256xf32>
    %136 = tpu.concatenate %127, %131, %135 in 0 : vector<8x256xf32>, vector<8x256xf32>, vector<8x256xf32> -> vector<24x256xf32>
    %137 = arith.truncf %136 : vector<24x256xf32> to vector<24x256xbf16>
    %cst_43 = arith.constant dense<0.000000e+00> : vector<8x256xf32>
    %138 = tpu.matmul %20, %137, %cst_43 {dimension_numbers = #tpu.dot_dimension_numbers<[1], [0], [0], [1], [0, 0, 1, 1], [], []>} : vector<8x24xbf16>, vector<24x256xbf16>, vector<8x256xf32> -> vector<8x256xf32>
    %139 = arith.addf %123, %138 : vector<8x256xf32>
    %140 = vector.broadcast %6 : vector<8x1xf32> to vector<8x256xf32>
    %141 = arith.addf %139, %140 : vector<8x256xf32>
    %cst_44 = arith.constant dense<0.000000e+00> : vector<8xf32>
    %142 = vector.multi_reduction <add>, %141, %cst_44 [1] : vector<8x256xf32> to vector<8xf32>
    %143 = vector.shape_cast %142 : vector<8xf32> to vector<8x1xf32>
    %144 = arith.mulf %141, %141 : vector<8x256xf32>
    %cst_45 = arith.constant dense<0.000000e+00> : vector<8xf32>
    %145 = vector.multi_reduction <add>, %144, %cst_45 [1] : vector<8x256xf32> to vector<8xf32>
    %146 = vector.shape_cast %145 : vector<8xf32> to vector<8x1xf32>
    %147 = tpu.concatenate %143, %146 in 1 : vector<8x1xf32>, vector<8x1xf32> -> vector<8x2xf32>
    %cst_46 = arith.constant dense<0.000000e+00> : vector<8x2xf32>
    %148 = tpu.matmul %1, %147, %cst_46 {dimension_numbers = #tpu.dot_dimension_numbers<[1], [0], [0], [1], [0, 0, 1, 1], [], []>} : vector<8x8xf32>, vector<8x2xf32>, vector<8x2xf32> -> vector<8x2xf32>
    %149 = vector.extract_strided_slice %148 {offsets = [0, 0], sizes = [8, 1], strides = [1, 1]} : vector<8x2xf32> to vector<8x1xf32>
    %150 = vector.extract_strided_slice %148 {offsets = [0, 1], sizes = [8, 1], strides = [1, 1]} : vector<8x2xf32> to vector<8x1xf32>
    %151 = arith.mulf %149, %149 : vector<8x1xf32>
    %152 = arith.subf %150, %151 : vector<8x1xf32>
    %cst_47 = arith.constant 0.000000e+00 : f32
    %153 = vector.broadcast %cst_47 : f32 to vector<8x1xf32>
    %154 = arith.maximumf %152, %153 : vector<8x1xf32>
    %155 = vector.broadcast %149 : vector<8x1xf32> to vector<8x256xf32>
    %156 = arith.subf %141, %155 : vector<8x256xf32>
    %cst_48 = arith.constant 9.99999974E-6 : f32
    %157 = vector.broadcast %cst_48 : f32 to vector<8x1xf32>
    %158 = arith.addf %154, %157 : vector<8x1xf32>
    %159 = math.rsqrt %158 : vector<8x1xf32>
    %160 = vector.broadcast %159 : vector<8x1xf32> to vector<8x256xf32>
    %161 = arith.mulf %156, %160 : vector<8x256xf32>
    %162 = vector.broadcast %7 : vector<8x1xf32> to vector<8x256xf32>
    %163 = arith.mulf %161, %162 : vector<8x256xf32>
    %164 = vector.broadcast %8 : vector<8x1xf32> to vector<8x256xf32>
    %165 = arith.addf %163, %164 : vector<8x256xf32>
    %cst_49 = arith.constant 0.000000e+00 : f32
    %166 = vector.broadcast %cst_49 : f32 to vector<8x256xf32>
    %167 = arith.cmpf oge, %165, %166 : vector<8x256xf32>
    %cst_50 = arith.constant 0.00999999977 : f32
    %168 = vector.broadcast %cst_50 : f32 to vector<8x256xf32>
    %169 = arith.mulf %168, %165 : vector<8x256xf32>
    %170 = arith.select %167, %165, %169 : vector<8x256xi1>, vector<8x256xf32>
    %c0_51 = arith.constant 0 : index
    %c0_52 = arith.constant 0 : index
    %c0_53 = arith.constant 0 : index
    %171 = vector.load %arg7[%c0_51, %c0_52, %c0_53] : memref<4x8x256xf32, #tpu.memory_space<vmem>>, vector<1x8x256xf32>
    %172 = vector.shape_cast %171 : vector<1x8x256xf32> to vector<8x256xf32>
    %173 = vector.shape_cast %170 : vector<8x256xf32> to vector<1x8x256xf32>
    tpu.vector_store %arg7[%c0_51, %c0_52, %c0_53], %173 {strides = array<i32>} : memref<4x8x256xf32, #tpu.memory_space<vmem>>, vector<1x8x256xf32>,
    %c1_54 = arith.constant 1 : index
    %c0_55 = arith.constant 0 : index
    %c0_56 = arith.constant 0 : index
    %174 = vector.load %arg1[%c1_54, %c0_55, %c0_56] : memref<4x4x256xf32, #tpu.memory_space<vmem>>, vector<1x4x256xf32>
    %175 = vector.shape_cast %174 : vector<1x4x256xf32> to vector<4x256xf32>
    %c17_i32_57 = arith.constant 17 : i32
    %176 = tpu.dynamic_rotate %175 by %c17_i32_57 dim 1 : vector<4x256xf32>, i32 -> vector<4x256xf32>
    %177 = vector.extract_strided_slice %0 {offsets = [0, 0], sizes = [1, 256], strides = [1, 1]} : vector<9x256xf32> to vector<1x256xf32>
    %178 = vector.broadcast %177 : vector<1x256xf32> to vector<4x256xf32>
    %179 = arith.mulf %176, %178 : vector<4x256xf32>
    %c16_i32_58 = arith.constant 16 : i32
    %180 = tpu.dynamic_rotate %175 by %c16_i32_58 dim 1 : vector<4x256xf32>, i32 -> vector<4x256xf32>
    %181 = vector.extract_strided_slice %0 {offsets = [1, 0], sizes = [1, 256], strides = [1, 1]} : vector<9x256xf32> to vector<1x256xf32>
    %182 = vector.broadcast %181 : vector<1x256xf32> to vector<4x256xf32>
    %183 = arith.mulf %180, %182 : vector<4x256xf32>
    %c15_i32_59 = arith.constant 15 : i32
    %184 = tpu.dynamic_rotate %175 by %c15_i32_59 dim 1 : vector<4x256xf32>, i32 -> vector<4x256xf32>
    %185 = vector.extract_strided_slice %0 {offsets = [2, 0], sizes = [1, 256], strides = [1, 1]} : vector<9x256xf32> to vector<1x256xf32>
    %186 = vector.broadcast %185 : vector<1x256xf32> to vector<4x256xf32>
    %187 = arith.mulf %184, %186 : vector<4x256xf32>
    %188 = tpu.concatenate %179, %183, %187 in 0 : vector<4x256xf32>, vector<4x256xf32>, vector<4x256xf32> -> vector<12x256xf32>
    %189 = arith.truncf %188 : vector<12x256xf32> to vector<12x256xbf16>
    %cst_60 = arith.constant dense<0.000000e+00> : vector<8x256xf32>
    %190 = tpu.matmul %10, %189, %cst_60 {dimension_numbers = #tpu.dot_dimension_numbers<[1], [0], [0], [1], [0, 0, 1, 1], [], []>} : vector<8x12xbf16>, vector<12x256xbf16>, vector<8x256xf32> -> vector<8x256xf32>
    %c1_i32_61 = arith.constant 1 : i32
    %191 = tpu.dynamic_rotate %175 by %c1_i32_61 dim 1 : vector<4x256xf32>, i32 -> vector<4x256xf32>
    %192 = vector.extract_strided_slice %0 {offsets = [3, 0], sizes = [1, 256], strides = [1, 1]} : vector<9x256xf32> to vector<1x256xf32>
    %193 = vector.broadcast %192 : vector<1x256xf32> to vector<4x256xf32>
    %194 = arith.mulf %191, %193 : vector<4x256xf32>
    %c255_i32_62 = arith.constant 255 : i32
    %195 = tpu.dynamic_rotate %175 by %c255_i32_62 dim 1 : vector<4x256xf32>, i32 -> vector<4x256xf32>
    %196 = vector.extract_strided_slice %0 {offsets = [5, 0], sizes = [1, 256], strides = [1, 1]} : vector<9x256xf32> to vector<1x256xf32>
    %197 = vector.broadcast %196 : vector<1x256xf32> to vector<4x256xf32>
    %198 = arith.mulf %195, %197 : vector<4x256xf32>
    %199 = tpu.concatenate %194, %175, %198 in 0 : vector<4x256xf32>, vector<4x256xf32>, vector<4x256xf32> -> vector<12x256xf32>
    %200 = arith.truncf %199 : vector<12x256xf32> to vector<12x256xbf16>
    %cst_63 = arith.constant dense<0.000000e+00> : vector<8x256xf32>
    %201 = tpu.matmul %12, %200, %cst_63 {dimension_numbers = #tpu.dot_dimension_numbers<[1], [0], [0], [1], [0, 0, 1, 1], [], []>} : vector<8x12xbf16>, vector<12x256xbf16>, vector<8x256xf32> -> vector<8x256xf32>
    %202 = arith.addf %190, %201 : vector<8x256xf32>
    %c241_i32_64 = arith.constant 241 : i32
    %203 = tpu.dynamic_rotate %175 by %c241_i32_64 dim 1 : vector<4x256xf32>, i32 -> vector<4x256xf32>
    %204 = vector.extract_strided_slice %0 {offsets = [6, 0], sizes = [1, 256], strides = [1, 1]} : vector<9x256xf32> to vector<1x256xf32>
    %205 = vector.broadcast %204 : vector<1x256xf32> to vector<4x256xf32>
    %206 = arith.mulf %203, %205 : vector<4x256xf32>
    %c240_i32_65 = arith.constant 240 : i32
    %207 = tpu.dynamic_rotate %175 by %c240_i32_65 dim 1 : vector<4x256xf32>, i32 -> vector<4x256xf32>
    %208 = vector.extract_strided_slice %0 {offsets = [7, 0], sizes = [1, 256], strides = [1, 1]} : vector<9x256xf32> to vector<1x256xf32>
    %209 = vector.broadcast %208 : vector<1x256xf32> to vector<4x256xf32>
    %210 = arith.mulf %207, %209 : vector<4x256xf32>
    %c239_i32_66 = arith.constant 239 : i32
    %211 = tpu.dynamic_rotate %175 by %c239_i32_66 dim 1 : vector<4x256xf32>, i32 -> vector<4x256xf32>
    %212 = vector.extract_strided_slice %0 {offsets = [8, 0], sizes = [1, 256], strides = [1, 1]} : vector<9x256xf32> to vector<1x256xf32>
    %213 = vector.broadcast %212 : vector<1x256xf32> to vector<4x256xf32>
    %214 = arith.mulf %211, %213 : vector<4x256xf32>
    %215 = tpu.concatenate %206, %210, %214 in 0 : vector<4x256xf32>, vector<4x256xf32>, vector<4x256xf32> -> vector<12x256xf32>
    %216 = arith.truncf %215 : vector<12x256xf32> to vector<12x256xbf16>
    %cst_67 = arith.constant dense<0.000000e+00> : vector<8x256xf32>
    %217 = tpu.matmul %14, %216, %cst_67 {dimension_numbers = #tpu.dot_dimension_numbers<[1], [0], [0], [1], [0, 0, 1, 1], [], []>} : vector<8x12xbf16>, vector<12x256xbf16>, vector<8x256xf32> -> vector<8x256xf32>
    %218 = arith.addf %202, %217 : vector<8x256xf32>
    %219 = vector.broadcast %3 : vector<8x1xf32> to vector<8x256xf32>
    %220 = arith.addf %218, %219 : vector<8x256xf32>
    %cst_68 = arith.constant dense<0.000000e+00> : vector<8xf32>
    %221 = vector.multi_reduction <add>, %220, %cst_68 [1] : vector<8x256xf32> to vector<8xf32>
    %222 = vector.shape_cast %221 : vector<8xf32> to vector<8x1xf32>
    %223 = arith.mulf %220, %220 : vector<8x256xf32>
    %cst_69 = arith.constant dense<0.000000e+00> : vector<8xf32>
    %224 = vector.multi_reduction <add>, %223, %cst_69 [1] : vector<8x256xf32> to vector<8xf32>
    %225 = vector.shape_cast %224 : vector<8xf32> to vector<8x1xf32>
    %226 = tpu.concatenate %222, %225 in 1 : vector<8x1xf32>, vector<8x1xf32> -> vector<8x2xf32>
    %cst_70 = arith.constant dense<0.000000e+00> : vector<8x2xf32>
    %227 = tpu.matmul %1, %226, %cst_70 {dimension_numbers = #tpu.dot_dimension_numbers<[1], [0], [0], [1], [0, 0, 1, 1], [], []>} : vector<8x8xf32>, vector<8x2xf32>, vector<8x2xf32> -> vector<8x2xf32>
    %228 = vector.extract_strided_slice %227 {offsets = [0, 0], sizes = [8, 1], strides = [1, 1]} : vector<8x2xf32> to vector<8x1xf32>
    %229 = vector.extract_strided_slice %227 {offsets = [0, 1], sizes = [8, 1], strides = [1, 1]} : vector<8x2xf32> to vector<8x1xf32>
    %230 = arith.mulf %228, %228 : vector<8x1xf32>
    %231 = arith.subf %229, %230 : vector<8x1xf32>
    %cst_71 = arith.constant 0.000000e+00 : f32
    %232 = vector.broadcast %cst_71 : f32 to vector<8x1xf32>
    %233 = arith.maximumf %231, %232 : vector<8x1xf32>
    %234 = vector.broadcast %228 : vector<8x1xf32> to vector<8x256xf32>
    %235 = arith.subf %220, %234 : vector<8x256xf32>
    %cst_72 = arith.constant 9.99999974E-6 : f32
    %236 = vector.broadcast %cst_72 : f32 to vector<8x1xf32>
    %237 = arith.addf %233, %236 : vector<8x1xf32>
    %238 = math.rsqrt %237 : vector<8x1xf32>
    %239 = vector.broadcast %238 : vector<8x1xf32> to vector<8x256xf32>
    %240 = arith.mulf %235, %239 : vector<8x256xf32>
    %241 = vector.broadcast %4 : vector<8x1xf32> to vector<8x256xf32>
    %242 = arith.mulf %240, %241 : vector<8x256xf32>
    %243 = vector.broadcast %5 : vector<8x1xf32> to vector<8x256xf32>
    %244 = arith.addf %242, %243 : vector<8x256xf32>
    %cst_73 = arith.constant 0.000000e+00 : f32
    %245 = vector.broadcast %cst_73 : f32 to vector<8x256xf32>
    %246 = arith.cmpf oge, %244, %245 : vector<8x256xf32>
    %cst_74 = arith.constant 0.00999999977 : f32
    %247 = vector.broadcast %cst_74 : f32 to vector<8x256xf32>
    %248 = arith.mulf %247, %244 : vector<8x256xf32>
    %249 = arith.select %246, %244, %248 : vector<8x256xi1>, vector<8x256xf32>
    %c17_i32_75 = arith.constant 17 : i32
    %250 = tpu.dynamic_rotate %249 by %c17_i32_75 dim 1 : vector<8x256xf32>, i32 -> vector<8x256xf32>
    %251 = vector.extract_strided_slice %0 {offsets = [0, 0], sizes = [1, 256], strides = [1, 1]} : vector<9x256xf32> to vector<1x256xf32>
    %252 = vector.broadcast %251 : vector<1x256xf32> to vector<8x256xf32>
    %253 = arith.mulf %250, %252 : vector<8x256xf32>
    %c16_i32_76 = arith.constant 16 : i32
    %254 = tpu.dynamic_rotate %249 by %c16_i32_76 dim 1 : vector<8x256xf32>, i32 -> vector<8x256xf32>
    %255 = vector.extract_strided_slice %0 {offsets = [1, 0], sizes = [1, 256], strides = [1, 1]} : vector<9x256xf32> to vector<1x256xf32>
    %256 = vector.broadcast %255 : vector<1x256xf32> to vector<8x256xf32>
    %257 = arith.mulf %254, %256 : vector<8x256xf32>
    %c15_i32_77 = arith.constant 15 : i32
    %258 = tpu.dynamic_rotate %249 by %c15_i32_77 dim 1 : vector<8x256xf32>, i32 -> vector<8x256xf32>
    %259 = vector.extract_strided_slice %0 {offsets = [2, 0], sizes = [1, 256], strides = [1, 1]} : vector<9x256xf32> to vector<1x256xf32>
    %260 = vector.broadcast %259 : vector<1x256xf32> to vector<8x256xf32>
    %261 = arith.mulf %258, %260 : vector<8x256xf32>
    %262 = tpu.concatenate %253, %257, %261 in 0 : vector<8x256xf32>, vector<8x256xf32>, vector<8x256xf32> -> vector<24x256xf32>
    %263 = arith.truncf %262 : vector<24x256xf32> to vector<24x256xbf16>
    %cst_78 = arith.constant dense<0.000000e+00> : vector<8x256xf32>
    %264 = tpu.matmul %16, %263, %cst_78 {dimension_numbers = #tpu.dot_dimension_numbers<[1], [0], [0], [1], [0, 0, 1, 1], [], []>} : vector<8x24xbf16>, vector<24x256xbf16>, vector<8x256xf32> -> vector<8x256xf32>
    %c1_i32_79 = arith.constant 1 : i32
    %265 = tpu.dynamic_rotate %249 by %c1_i32_79 dim 1 : vector<8x256xf32>, i32 -> vector<8x256xf32>
    %266 = vector.extract_strided_slice %0 {offsets = [3, 0], sizes = [1, 256], strides = [1, 1]} : vector<9x256xf32> to vector<1x256xf32>
    %267 = vector.broadcast %266 : vector<1x256xf32> to vector<8x256xf32>
    %268 = arith.mulf %265, %267 : vector<8x256xf32>
    %c255_i32_80 = arith.constant 255 : i32
    %269 = tpu.dynamic_rotate %249 by %c255_i32_80 dim 1 : vector<8x256xf32>, i32 -> vector<8x256xf32>
    %270 = vector.extract_strided_slice %0 {offsets = [5, 0], sizes = [1, 256], strides = [1, 1]} : vector<9x256xf32> to vector<1x256xf32>
    %271 = vector.broadcast %270 : vector<1x256xf32> to vector<8x256xf32>
    %272 = arith.mulf %269, %271 : vector<8x256xf32>
    %273 = tpu.concatenate %268, %249, %272 in 0 : vector<8x256xf32>, vector<8x256xf32>, vector<8x256xf32> -> vector<24x256xf32>
    %274 = arith.truncf %273 : vector<24x256xf32> to vector<24x256xbf16>
    %cst_81 = arith.constant dense<0.000000e+00> : vector<8x256xf32>
    %275 = tpu.matmul %18, %274, %cst_81 {dimension_numbers = #tpu.dot_dimension_numbers<[1], [0], [0], [1], [0, 0, 1, 1], [], []>} : vector<8x24xbf16>, vector<24x256xbf16>, vector<8x256xf32> -> vector<8x256xf32>
    %276 = arith.addf %264, %275 : vector<8x256xf32>
    %c241_i32_82 = arith.constant 241 : i32
    %277 = tpu.dynamic_rotate %249 by %c241_i32_82 dim 1 : vector<8x256xf32>, i32 -> vector<8x256xf32>
    %278 = vector.extract_strided_slice %0 {offsets = [6, 0], sizes = [1, 256], strides = [1, 1]} : vector<9x256xf32> to vector<1x256xf32>
    %279 = vector.broadcast %278 : vector<1x256xf32> to vector<8x256xf32>
    %280 = arith.mulf %277, %279 : vector<8x256xf32>
    %c240_i32_83 = arith.constant 240 : i32
    %281 = tpu.dynamic_rotate %249 by %c240_i32_83 dim 1 : vector<8x256xf32>, i32 -> vector<8x256xf32>
    %282 = vector.extract_strided_slice %0 {offsets = [7, 0], sizes = [1, 256], strides = [1, 1]} : vector<9x256xf32> to vector<1x256xf32>
    %283 = vector.broadcast %282 : vector<1x256xf32> to vector<8x256xf32>
    %284 = arith.mulf %281, %283 : vector<8x256xf32>
    %c239_i32_84 = arith.constant 239 : i32
    %285 = tpu.dynamic_rotate %249 by %c239_i32_84 dim 1 : vector<8x256xf32>, i32 -> vector<8x256xf32>
    %286 = vector.extract_strided_slice %0 {offsets = [8, 0], sizes = [1, 256], strides = [1, 1]} : vector<9x256xf32> to vector<1x256xf32>
    %287 = vector.broadcast %286 : vector<1x256xf32> to vector<8x256xf32>
    %288 = arith.mulf %285, %287 : vector<8x256xf32>
    %289 = tpu.concatenate %280, %284, %288 in 0 : vector<8x256xf32>, vector<8x256xf32>, vector<8x256xf32> -> vector<24x256xf32>
    %290 = arith.truncf %289 : vector<24x256xf32> to vector<24x256xbf16>
    %cst_85 = arith.constant dense<0.000000e+00> : vector<8x256xf32>
    %291 = tpu.matmul %20, %290, %cst_85 {dimension_numbers = #tpu.dot_dimension_numbers<[1], [0], [0], [1], [0, 0, 1, 1], [], []>} : vector<8x24xbf16>, vector<24x256xbf16>, vector<8x256xf32> -> vector<8x256xf32>
    %292 = arith.addf %276, %291 : vector<8x256xf32>
    %293 = vector.broadcast %6 : vector<8x1xf32> to vector<8x256xf32>
    %294 = arith.addf %292, %293 : vector<8x256xf32>
    %cst_86 = arith.constant dense<0.000000e+00> : vector<8xf32>
    %295 = vector.multi_reduction <add>, %294, %cst_86 [1] : vector<8x256xf32> to vector<8xf32>
    %296 = vector.shape_cast %295 : vector<8xf32> to vector<8x1xf32>
    %297 = arith.mulf %294, %294 : vector<8x256xf32>
    %cst_87 = arith.constant dense<0.000000e+00> : vector<8xf32>
    %298 = vector.multi_reduction <add>, %297, %cst_87 [1] : vector<8x256xf32> to vector<8xf32>
    %299 = vector.shape_cast %298 : vector<8xf32> to vector<8x1xf32>
    %300 = tpu.concatenate %296, %299 in 1 : vector<8x1xf32>, vector<8x1xf32> -> vector<8x2xf32>
    %cst_88 = arith.constant dense<0.000000e+00> : vector<8x2xf32>
    %301 = tpu.matmul %1, %300, %cst_88 {dimension_numbers = #tpu.dot_dimension_numbers<[1], [0], [0], [1], [0, 0, 1, 1], [], []>} : vector<8x8xf32>, vector<8x2xf32>, vector<8x2xf32> -> vector<8x2xf32>
    %302 = vector.extract_strided_slice %301 {offsets = [0, 0], sizes = [8, 1], strides = [1, 1]} : vector<8x2xf32> to vector<8x1xf32>
    %303 = vector.extract_strided_slice %301 {offsets = [0, 1], sizes = [8, 1], strides = [1, 1]} : vector<8x2xf32> to vector<8x1xf32>
    %304 = arith.mulf %302, %302 : vector<8x1xf32>
    %305 = arith.subf %303, %304 : vector<8x1xf32>
    %cst_89 = arith.constant 0.000000e+00 : f32
    %306 = vector.broadcast %cst_89 : f32 to vector<8x1xf32>
    %307 = arith.maximumf %305, %306 : vector<8x1xf32>
    %308 = vector.broadcast %302 : vector<8x1xf32> to vector<8x256xf32>
    %309 = arith.subf %294, %308 : vector<8x256xf32>
    %cst_90 = arith.constant 9.99999974E-6 : f32
    %310 = vector.broadcast %cst_90 : f32 to vector<8x1xf32>
    %311 = arith.addf %307, %310 : vector<8x1xf32>
    %312 = math.rsqrt %311 : vector<8x1xf32>
    %313 = vector.broadcast %312 : vector<8x1xf32> to vector<8x256xf32>
    %314 = arith.mulf %309, %313 : vector<8x256xf32>
    %315 = vector.broadcast %7 : vector<8x1xf32> to vector<8x256xf32>
    %316 = arith.mulf %314, %315 : vector<8x256xf32>
    %317 = vector.broadcast %8 : vector<8x1xf32> to vector<8x256xf32>
    %318 = arith.addf %316, %317 : vector<8x256xf32>
    %cst_91 = arith.constant 0.000000e+00 : f32
    %319 = vector.broadcast %cst_91 : f32 to vector<8x256xf32>
    %320 = arith.cmpf oge, %318, %319 : vector<8x256xf32>
    %cst_92 = arith.constant 0.00999999977 : f32
    %321 = vector.broadcast %cst_92 : f32 to vector<8x256xf32>
    %322 = arith.mulf %321, %318 : vector<8x256xf32>
    %323 = arith.select %320, %318, %322 : vector<8x256xi1>, vector<8x256xf32>
    %c1_93 = arith.constant 1 : index
    %c0_94 = arith.constant 0 : index
    %c0_95 = arith.constant 0 : index
    %324 = vector.load %arg7[%c1_93, %c0_94, %c0_95] : memref<4x8x256xf32, #tpu.memory_space<vmem>>, vector<1x8x256xf32>
    %325 = vector.shape_cast %324 : vector<1x8x256xf32> to vector<8x256xf32>
    %326 = vector.shape_cast %323 : vector<8x256xf32> to vector<1x8x256xf32>
    tpu.vector_store %arg7[%c1_93, %c0_94, %c0_95], %326 {strides = array<i32>} : memref<4x8x256xf32, #tpu.memory_space<vmem>>, vector<1x8x256xf32>,
    %c2_96 = arith.constant 2 : index
    %c0_97 = arith.constant 0 : index
    %c0_98 = arith.constant 0 : index
    %327 = vector.load %arg1[%c2_96, %c0_97, %c0_98] : memref<4x4x256xf32, #tpu.memory_space<vmem>>, vector<1x4x256xf32>
    %328 = vector.shape_cast %327 : vector<1x4x256xf32> to vector<4x256xf32>
    %c17_i32_99 = arith.constant 17 : i32
    %329 = tpu.dynamic_rotate %328 by %c17_i32_99 dim 1 : vector<4x256xf32>, i32 -> vector<4x256xf32>
    %330 = vector.extract_strided_slice %0 {offsets = [0, 0], sizes = [1, 256], strides = [1, 1]} : vector<9x256xf32> to vector<1x256xf32>
    %331 = vector.broadcast %330 : vector<1x256xf32> to vector<4x256xf32>
    %332 = arith.mulf %329, %331 : vector<4x256xf32>
    %c16_i32_100 = arith.constant 16 : i32
    %333 = tpu.dynamic_rotate %328 by %c16_i32_100 dim 1 : vector<4x256xf32>, i32 -> vector<4x256xf32>
    %334 = vector.extract_strided_slice %0 {offsets = [1, 0], sizes = [1, 256], strides = [1, 1]} : vector<9x256xf32> to vector<1x256xf32>
    %335 = vector.broadcast %334 : vector<1x256xf32> to vector<4x256xf32>
    %336 = arith.mulf %333, %335 : vector<4x256xf32>
    %c15_i32_101 = arith.constant 15 : i32
    %337 = tpu.dynamic_rotate %328 by %c15_i32_101 dim 1 : vector<4x256xf32>, i32 -> vector<4x256xf32>
    %338 = vector.extract_strided_slice %0 {offsets = [2, 0], sizes = [1, 256], strides = [1, 1]} : vector<9x256xf32> to vector<1x256xf32>
    %339 = vector.broadcast %338 : vector<1x256xf32> to vector<4x256xf32>
    %340 = arith.mulf %337, %339 : vector<4x256xf32>
    %341 = tpu.concatenate %332, %336, %340 in 0 : vector<4x256xf32>, vector<4x256xf32>, vector<4x256xf32> -> vector<12x256xf32>
    %342 = arith.truncf %341 : vector<12x256xf32> to vector<12x256xbf16>
    %cst_102 = arith.constant dense<0.000000e+00> : vector<8x256xf32>
    %343 = tpu.matmul %10, %342, %cst_102 {dimension_numbers = #tpu.dot_dimension_numbers<[1], [0], [0], [1], [0, 0, 1, 1], [], []>} : vector<8x12xbf16>, vector<12x256xbf16>, vector<8x256xf32> -> vector<8x256xf32>
    %c1_i32_103 = arith.constant 1 : i32
    %344 = tpu.dynamic_rotate %328 by %c1_i32_103 dim 1 : vector<4x256xf32>, i32 -> vector<4x256xf32>
    %345 = vector.extract_strided_slice %0 {offsets = [3, 0], sizes = [1, 256], strides = [1, 1]} : vector<9x256xf32> to vector<1x256xf32>
    %346 = vector.broadcast %345 : vector<1x256xf32> to vector<4x256xf32>
    %347 = arith.mulf %344, %346 : vector<4x256xf32>
    %c255_i32_104 = arith.constant 255 : i32
    %348 = tpu.dynamic_rotate %328 by %c255_i32_104 dim 1 : vector<4x256xf32>, i32 -> vector<4x256xf32>
    %349 = vector.extract_strided_slice %0 {offsets = [5, 0], sizes = [1, 256], strides = [1, 1]} : vector<9x256xf32> to vector<1x256xf32>
    %350 = vector.broadcast %349 : vector<1x256xf32> to vector<4x256xf32>
    %351 = arith.mulf %348, %350 : vector<4x256xf32>
    %352 = tpu.concatenate %347, %328, %351 in 0 : vector<4x256xf32>, vector<4x256xf32>, vector<4x256xf32> -> vector<12x256xf32>
    %353 = arith.truncf %352 : vector<12x256xf32> to vector<12x256xbf16>
    %cst_105 = arith.constant dense<0.000000e+00> : vector<8x256xf32>
    %354 = tpu.matmul %12, %353, %cst_105 {dimension_numbers = #tpu.dot_dimension_numbers<[1], [0], [0], [1], [0, 0, 1, 1], [], []>} : vector<8x12xbf16>, vector<12x256xbf16>, vector<8x256xf32> -> vector<8x256xf32>
    %355 = arith.addf %343, %354 : vector<8x256xf32>
    %c241_i32_106 = arith.constant 241 : i32
    %356 = tpu.dynamic_rotate %328 by %c241_i32_106 dim 1 : vector<4x256xf32>, i32 -> vector<4x256xf32>
    %357 = vector.extract_strided_slice %0 {offsets = [6, 0], sizes = [1, 256], strides = [1, 1]} : vector<9x256xf32> to vector<1x256xf32>
    %358 = vector.broadcast %357 : vector<1x256xf32> to vector<4x256xf32>
    %359 = arith.mulf %356, %358 : vector<4x256xf32>
    %c240_i32_107 = arith.constant 240 : i32
    %360 = tpu.dynamic_rotate %328 by %c240_i32_107 dim 1 : vector<4x256xf32>, i32 -> vector<4x256xf32>
    %361 = vector.extract_strided_slice %0 {offsets = [7, 0], sizes = [1, 256], strides = [1, 1]} : vector<9x256xf32> to vector<1x256xf32>
    %362 = vector.broadcast %361 : vector<1x256xf32> to vector<4x256xf32>
    %363 = arith.mulf %360, %362 : vector<4x256xf32>
    %c239_i32_108 = arith.constant 239 : i32
    %364 = tpu.dynamic_rotate %328 by %c239_i32_108 dim 1 : vector<4x256xf32>, i32 -> vector<4x256xf32>
    %365 = vector.extract_strided_slice %0 {offsets = [8, 0], sizes = [1, 256], strides = [1, 1]} : vector<9x256xf32> to vector<1x256xf32>
    %366 = vector.broadcast %365 : vector<1x256xf32> to vector<4x256xf32>
    %367 = arith.mulf %364, %366 : vector<4x256xf32>
    %368 = tpu.concatenate %359, %363, %367 in 0 : vector<4x256xf32>, vector<4x256xf32>, vector<4x256xf32> -> vector<12x256xf32>
    %369 = arith.truncf %368 : vector<12x256xf32> to vector<12x256xbf16>
    %cst_109 = arith.constant dense<0.000000e+00> : vector<8x256xf32>
    %370 = tpu.matmul %14, %369, %cst_109 {dimension_numbers = #tpu.dot_dimension_numbers<[1], [0], [0], [1], [0, 0, 1, 1], [], []>} : vector<8x12xbf16>, vector<12x256xbf16>, vector<8x256xf32> -> vector<8x256xf32>
    %371 = arith.addf %355, %370 : vector<8x256xf32>
    %372 = vector.broadcast %3 : vector<8x1xf32> to vector<8x256xf32>
    %373 = arith.addf %371, %372 : vector<8x256xf32>
    %cst_110 = arith.constant dense<0.000000e+00> : vector<8xf32>
    %374 = vector.multi_reduction <add>, %373, %cst_110 [1] : vector<8x256xf32> to vector<8xf32>
    %375 = vector.shape_cast %374 : vector<8xf32> to vector<8x1xf32>
    %376 = arith.mulf %373, %373 : vector<8x256xf32>
    %cst_111 = arith.constant dense<0.000000e+00> : vector<8xf32>
    %377 = vector.multi_reduction <add>, %376, %cst_111 [1] : vector<8x256xf32> to vector<8xf32>
    %378 = vector.shape_cast %377 : vector<8xf32> to vector<8x1xf32>
    %379 = tpu.concatenate %375, %378 in 1 : vector<8x1xf32>, vector<8x1xf32> -> vector<8x2xf32>
    %cst_112 = arith.constant dense<0.000000e+00> : vector<8x2xf32>
    %380 = tpu.matmul %1, %379, %cst_112 {dimension_numbers = #tpu.dot_dimension_numbers<[1], [0], [0], [1], [0, 0, 1, 1], [], []>} : vector<8x8xf32>, vector<8x2xf32>, vector<8x2xf32> -> vector<8x2xf32>
    %381 = vector.extract_strided_slice %380 {offsets = [0, 0], sizes = [8, 1], strides = [1, 1]} : vector<8x2xf32> to vector<8x1xf32>
    %382 = vector.extract_strided_slice %380 {offsets = [0, 1], sizes = [8, 1], strides = [1, 1]} : vector<8x2xf32> to vector<8x1xf32>
    %383 = arith.mulf %381, %381 : vector<8x1xf32>
    %384 = arith.subf %382, %383 : vector<8x1xf32>
    %cst_113 = arith.constant 0.000000e+00 : f32
    %385 = vector.broadcast %cst_113 : f32 to vector<8x1xf32>
    %386 = arith.maximumf %384, %385 : vector<8x1xf32>
    %387 = vector.broadcast %381 : vector<8x1xf32> to vector<8x256xf32>
    %388 = arith.subf %373, %387 : vector<8x256xf32>
    %cst_114 = arith.constant 9.99999974E-6 : f32
    %389 = vector.broadcast %cst_114 : f32 to vector<8x1xf32>
    %390 = arith.addf %386, %389 : vector<8x1xf32>
    %391 = math.rsqrt %390 : vector<8x1xf32>
    %392 = vector.broadcast %391 : vector<8x1xf32> to vector<8x256xf32>
    %393 = arith.mulf %388, %392 : vector<8x256xf32>
    %394 = vector.broadcast %4 : vector<8x1xf32> to vector<8x256xf32>
    %395 = arith.mulf %393, %394 : vector<8x256xf32>
    %396 = vector.broadcast %5 : vector<8x1xf32> to vector<8x256xf32>
    %397 = arith.addf %395, %396 : vector<8x256xf32>
    %cst_115 = arith.constant 0.000000e+00 : f32
    %398 = vector.broadcast %cst_115 : f32 to vector<8x256xf32>
    %399 = arith.cmpf oge, %397, %398 : vector<8x256xf32>
    %cst_116 = arith.constant 0.00999999977 : f32
    %400 = vector.broadcast %cst_116 : f32 to vector<8x256xf32>
    %401 = arith.mulf %400, %397 : vector<8x256xf32>
    %402 = arith.select %399, %397, %401 : vector<8x256xi1>, vector<8x256xf32>
    %c17_i32_117 = arith.constant 17 : i32
    %403 = tpu.dynamic_rotate %402 by %c17_i32_117 dim 1 : vector<8x256xf32>, i32 -> vector<8x256xf32>
    %404 = vector.extract_strided_slice %0 {offsets = [0, 0], sizes = [1, 256], strides = [1, 1]} : vector<9x256xf32> to vector<1x256xf32>
    %405 = vector.broadcast %404 : vector<1x256xf32> to vector<8x256xf32>
    %406 = arith.mulf %403, %405 : vector<8x256xf32>
    %c16_i32_118 = arith.constant 16 : i32
    %407 = tpu.dynamic_rotate %402 by %c16_i32_118 dim 1 : vector<8x256xf32>, i32 -> vector<8x256xf32>
    %408 = vector.extract_strided_slice %0 {offsets = [1, 0], sizes = [1, 256], strides = [1, 1]} : vector<9x256xf32> to vector<1x256xf32>
    %409 = vector.broadcast %408 : vector<1x256xf32> to vector<8x256xf32>
    %410 = arith.mulf %407, %409 : vector<8x256xf32>
    %c15_i32_119 = arith.constant 15 : i32
    %411 = tpu.dynamic_rotate %402 by %c15_i32_119 dim 1 : vector<8x256xf32>, i32 -> vector<8x256xf32>
    %412 = vector.extract_strided_slice %0 {offsets = [2, 0], sizes = [1, 256], strides = [1, 1]} : vector<9x256xf32> to vector<1x256xf32>
    %413 = vector.broadcast %412 : vector<1x256xf32> to vector<8x256xf32>
    %414 = arith.mulf %411, %413 : vector<8x256xf32>
    %415 = tpu.concatenate %406, %410, %414 in 0 : vector<8x256xf32>, vector<8x256xf32>, vector<8x256xf32> -> vector<24x256xf32>
    %416 = arith.truncf %415 : vector<24x256xf32> to vector<24x256xbf16>
    %cst_120 = arith.constant dense<0.000000e+00> : vector<8x256xf32>
    %417 = tpu.matmul %16, %416, %cst_120 {dimension_numbers = #tpu.dot_dimension_numbers<[1], [0], [0], [1], [0, 0, 1, 1], [], []>} : vector<8x24xbf16>, vector<24x256xbf16>, vector<8x256xf32> -> vector<8x256xf32>
    %c1_i32_121 = arith.constant 1 : i32
    %418 = tpu.dynamic_rotate %402 by %c1_i32_121 dim 1 : vector<8x256xf32>, i32 -> vector<8x256xf32>
    %419 = vector.extract_strided_slice %0 {offsets = [3, 0], sizes = [1, 256], strides = [1, 1]} : vector<9x256xf32> to vector<1x256xf32>
    %420 = vector.broadcast %419 : vector<1x256xf32> to vector<8x256xf32>
    %421 = arith.mulf %418, %420 : vector<8x256xf32>
    %c255_i32_122 = arith.constant 255 : i32
    %422 = tpu.dynamic_rotate %402 by %c255_i32_122 dim 1 : vector<8x256xf32>, i32 -> vector<8x256xf32>
    %423 = vector.extract_strided_slice %0 {offsets = [5, 0], sizes = [1, 256], strides = [1, 1]} : vector<9x256xf32> to vector<1x256xf32>
    %424 = vector.broadcast %423 : vector<1x256xf32> to vector<8x256xf32>
    %425 = arith.mulf %422, %424 : vector<8x256xf32>
    %426 = tpu.concatenate %421, %402, %425 in 0 : vector<8x256xf32>, vector<8x256xf32>, vector<8x256xf32> -> vector<24x256xf32>
    %427 = arith.truncf %426 : vector<24x256xf32> to vector<24x256xbf16>
    %cst_123 = arith.constant dense<0.000000e+00> : vector<8x256xf32>
    %428 = tpu.matmul %18, %427, %cst_123 {dimension_numbers = #tpu.dot_dimension_numbers<[1], [0], [0], [1], [0, 0, 1, 1], [], []>} : vector<8x24xbf16>, vector<24x256xbf16>, vector<8x256xf32> -> vector<8x256xf32>
    %429 = arith.addf %417, %428 : vector<8x256xf32>
    %c241_i32_124 = arith.constant 241 : i32
    %430 = tpu.dynamic_rotate %402 by %c241_i32_124 dim 1 : vector<8x256xf32>, i32 -> vector<8x256xf32>
    %431 = vector.extract_strided_slice %0 {offsets = [6, 0], sizes = [1, 256], strides = [1, 1]} : vector<9x256xf32> to vector<1x256xf32>
    %432 = vector.broadcast %431 : vector<1x256xf32> to vector<8x256xf32>
    %433 = arith.mulf %430, %432 : vector<8x256xf32>
    %c240_i32_125 = arith.constant 240 : i32
    %434 = tpu.dynamic_rotate %402 by %c240_i32_125 dim 1 : vector<8x256xf32>, i32 -> vector<8x256xf32>
    %435 = vector.extract_strided_slice %0 {offsets = [7, 0], sizes = [1, 256], strides = [1, 1]} : vector<9x256xf32> to vector<1x256xf32>
    %436 = vector.broadcast %435 : vector<1x256xf32> to vector<8x256xf32>
    %437 = arith.mulf %434, %436 : vector<8x256xf32>
    %c239_i32_126 = arith.constant 239 : i32
    %438 = tpu.dynamic_rotate %402 by %c239_i32_126 dim 1 : vector<8x256xf32>, i32 -> vector<8x256xf32>
    %439 = vector.extract_strided_slice %0 {offsets = [8, 0], sizes = [1, 256], strides = [1, 1]} : vector<9x256xf32> to vector<1x256xf32>
    %440 = vector.broadcast %439 : vector<1x256xf32> to vector<8x256xf32>
    %441 = arith.mulf %438, %440 : vector<8x256xf32>
    %442 = tpu.concatenate %433, %437, %441 in 0 : vector<8x256xf32>, vector<8x256xf32>, vector<8x256xf32> -> vector<24x256xf32>
    %443 = arith.truncf %442 : vector<24x256xf32> to vector<24x256xbf16>
    %cst_127 = arith.constant dense<0.000000e+00> : vector<8x256xf32>
    %444 = tpu.matmul %20, %443, %cst_127 {dimension_numbers = #tpu.dot_dimension_numbers<[1], [0], [0], [1], [0, 0, 1, 1], [], []>} : vector<8x24xbf16>, vector<24x256xbf16>, vector<8x256xf32> -> vector<8x256xf32>
    %445 = arith.addf %429, %444 : vector<8x256xf32>
    %446 = vector.broadcast %6 : vector<8x1xf32> to vector<8x256xf32>
    %447 = arith.addf %445, %446 : vector<8x256xf32>
    %cst_128 = arith.constant dense<0.000000e+00> : vector<8xf32>
    %448 = vector.multi_reduction <add>, %447, %cst_128 [1] : vector<8x256xf32> to vector<8xf32>
    %449 = vector.shape_cast %448 : vector<8xf32> to vector<8x1xf32>
    %450 = arith.mulf %447, %447 : vector<8x256xf32>
    %cst_129 = arith.constant dense<0.000000e+00> : vector<8xf32>
    %451 = vector.multi_reduction <add>, %450, %cst_129 [1] : vector<8x256xf32> to vector<8xf32>
    %452 = vector.shape_cast %451 : vector<8xf32> to vector<8x1xf32>
    %453 = tpu.concatenate %449, %452 in 1 : vector<8x1xf32>, vector<8x1xf32> -> vector<8x2xf32>
    %cst_130 = arith.constant dense<0.000000e+00> : vector<8x2xf32>
    %454 = tpu.matmul %1, %453, %cst_130 {dimension_numbers = #tpu.dot_dimension_numbers<[1], [0], [0], [1], [0, 0, 1, 1], [], []>} : vector<8x8xf32>, vector<8x2xf32>, vector<8x2xf32> -> vector<8x2xf32>
    %455 = vector.extract_strided_slice %454 {offsets = [0, 0], sizes = [8, 1], strides = [1, 1]} : vector<8x2xf32> to vector<8x1xf32>
    %456 = vector.extract_strided_slice %454 {offsets = [0, 1], sizes = [8, 1], strides = [1, 1]} : vector<8x2xf32> to vector<8x1xf32>
    %457 = arith.mulf %455, %455 : vector<8x1xf32>
    %458 = arith.subf %456, %457 : vector<8x1xf32>
    %cst_131 = arith.constant 0.000000e+00 : f32
    %459 = vector.broadcast %cst_131 : f32 to vector<8x1xf32>
    %460 = arith.maximumf %458, %459 : vector<8x1xf32>
    %461 = vector.broadcast %455 : vector<8x1xf32> to vector<8x256xf32>
    %462 = arith.subf %447, %461 : vector<8x256xf32>
    %cst_132 = arith.constant 9.99999974E-6 : f32
    %463 = vector.broadcast %cst_132 : f32 to vector<8x1xf32>
    %464 = arith.addf %460, %463 : vector<8x1xf32>
    %465 = math.rsqrt %464 : vector<8x1xf32>
    %466 = vector.broadcast %465 : vector<8x1xf32> to vector<8x256xf32>
    %467 = arith.mulf %462, %466 : vector<8x256xf32>
    %468 = vector.broadcast %7 : vector<8x1xf32> to vector<8x256xf32>
    %469 = arith.mulf %467, %468 : vector<8x256xf32>
    %470 = vector.broadcast %8 : vector<8x1xf32> to vector<8x256xf32>
    %471 = arith.addf %469, %470 : vector<8x256xf32>
    %cst_133 = arith.constant 0.000000e+00 : f32
    %472 = vector.broadcast %cst_133 : f32 to vector<8x256xf32>
    %473 = arith.cmpf oge, %471, %472 : vector<8x256xf32>
    %cst_134 = arith.constant 0.00999999977 : f32
    %474 = vector.broadcast %cst_134 : f32 to vector<8x256xf32>
    %475 = arith.mulf %474, %471 : vector<8x256xf32>
    %476 = arith.select %473, %471, %475 : vector<8x256xi1>, vector<8x256xf32>
    %c2_135 = arith.constant 2 : index
    %c0_136 = arith.constant 0 : index
    %c0_137 = arith.constant 0 : index
    %477 = vector.load %arg7[%c2_135, %c0_136, %c0_137] : memref<4x8x256xf32, #tpu.memory_space<vmem>>, vector<1x8x256xf32>
    %478 = vector.shape_cast %477 : vector<1x8x256xf32> to vector<8x256xf32>
    %479 = vector.shape_cast %476 : vector<8x256xf32> to vector<1x8x256xf32>
    tpu.vector_store %arg7[%c2_135, %c0_136, %c0_137], %479 {strides = array<i32>} : memref<4x8x256xf32, #tpu.memory_space<vmem>>, vector<1x8x256xf32>,
    %c3 = arith.constant 3 : index
    %c0_138 = arith.constant 0 : index
    %c0_139 = arith.constant 0 : index
    %480 = vector.load %arg1[%c3, %c0_138, %c0_139] : memref<4x4x256xf32, #tpu.memory_space<vmem>>, vector<1x4x256xf32>
    %481 = vector.shape_cast %480 : vector<1x4x256xf32> to vector<4x256xf32>
    %c17_i32_140 = arith.constant 17 : i32
    %482 = tpu.dynamic_rotate %481 by %c17_i32_140 dim 1 : vector<4x256xf32>, i32 -> vector<4x256xf32>
    %483 = vector.extract_strided_slice %0 {offsets = [0, 0], sizes = [1, 256], strides = [1, 1]} : vector<9x256xf32> to vector<1x256xf32>
    %484 = vector.broadcast %483 : vector<1x256xf32> to vector<4x256xf32>
    %485 = arith.mulf %482, %484 : vector<4x256xf32>
    %c16_i32_141 = arith.constant 16 : i32
    %486 = tpu.dynamic_rotate %481 by %c16_i32_141 dim 1 : vector<4x256xf32>, i32 -> vector<4x256xf32>
    %487 = vector.extract_strided_slice %0 {offsets = [1, 0], sizes = [1, 256], strides = [1, 1]} : vector<9x256xf32> to vector<1x256xf32>
    %488 = vector.broadcast %487 : vector<1x256xf32> to vector<4x256xf32>
    %489 = arith.mulf %486, %488 : vector<4x256xf32>
    %c15_i32_142 = arith.constant 15 : i32
    %490 = tpu.dynamic_rotate %481 by %c15_i32_142 dim 1 : vector<4x256xf32>, i32 -> vector<4x256xf32>
    %491 = vector.extract_strided_slice %0 {offsets = [2, 0], sizes = [1, 256], strides = [1, 1]} : vector<9x256xf32> to vector<1x256xf32>
    %492 = vector.broadcast %491 : vector<1x256xf32> to vector<4x256xf32>
    %493 = arith.mulf %490, %492 : vector<4x256xf32>
    %494 = tpu.concatenate %485, %489, %493 in 0 : vector<4x256xf32>, vector<4x256xf32>, vector<4x256xf32> -> vector<12x256xf32>
    %495 = arith.truncf %494 : vector<12x256xf32> to vector<12x256xbf16>
    %cst_143 = arith.constant dense<0.000000e+00> : vector<8x256xf32>
    %496 = tpu.matmul %10, %495, %cst_143 {dimension_numbers = #tpu.dot_dimension_numbers<[1], [0], [0], [1], [0, 0, 1, 1], [], []>} : vector<8x12xbf16>, vector<12x256xbf16>, vector<8x256xf32> -> vector<8x256xf32>
    %c1_i32_144 = arith.constant 1 : i32
    %497 = tpu.dynamic_rotate %481 by %c1_i32_144 dim 1 : vector<4x256xf32>, i32 -> vector<4x256xf32>
    %498 = vector.extract_strided_slice %0 {offsets = [3, 0], sizes = [1, 256], strides = [1, 1]} : vector<9x256xf32> to vector<1x256xf32>
    %499 = vector.broadcast %498 : vector<1x256xf32> to vector<4x256xf32>
    %500 = arith.mulf %497, %499 : vector<4x256xf32>
    %c255_i32_145 = arith.constant 255 : i32
    %501 = tpu.dynamic_rotate %481 by %c255_i32_145 dim 1 : vector<4x256xf32>, i32 -> vector<4x256xf32>
    %502 = vector.extract_strided_slice %0 {offsets = [5, 0], sizes = [1, 256], strides = [1, 1]} : vector<9x256xf32> to vector<1x256xf32>
    %503 = vector.broadcast %502 : vector<1x256xf32> to vector<4x256xf32>
    %504 = arith.mulf %501, %503 : vector<4x256xf32>
    %505 = tpu.concatenate %500, %481, %504 in 0 : vector<4x256xf32>, vector<4x256xf32>, vector<4x256xf32> -> vector<12x256xf32>
    %506 = arith.truncf %505 : vector<12x256xf32> to vector<12x256xbf16>
    %cst_146 = arith.constant dense<0.000000e+00> : vector<8x256xf32>
    %507 = tpu.matmul %12, %506, %cst_146 {dimension_numbers = #tpu.dot_dimension_numbers<[1], [0], [0], [1], [0, 0, 1, 1], [], []>} : vector<8x12xbf16>, vector<12x256xbf16>, vector<8x256xf32> -> vector<8x256xf32>
    %508 = arith.addf %496, %507 : vector<8x256xf32>
    %c241_i32_147 = arith.constant 241 : i32
    %509 = tpu.dynamic_rotate %481 by %c241_i32_147 dim 1 : vector<4x256xf32>, i32 -> vector<4x256xf32>
    %510 = vector.extract_strided_slice %0 {offsets = [6, 0], sizes = [1, 256], strides = [1, 1]} : vector<9x256xf32> to vector<1x256xf32>
    %511 = vector.broadcast %510 : vector<1x256xf32> to vector<4x256xf32>
    %512 = arith.mulf %509, %511 : vector<4x256xf32>
    %c240_i32_148 = arith.constant 240 : i32
    %513 = tpu.dynamic_rotate %481 by %c240_i32_148 dim 1 : vector<4x256xf32>, i32 -> vector<4x256xf32>
    %514 = vector.extract_strided_slice %0 {offsets = [7, 0], sizes = [1, 256], strides = [1, 1]} : vector<9x256xf32> to vector<1x256xf32>
    %515 = vector.broadcast %514 : vector<1x256xf32> to vector<4x256xf32>
    %516 = arith.mulf %513, %515 : vector<4x256xf32>
    %c239_i32_149 = arith.constant 239 : i32
    %517 = tpu.dynamic_rotate %481 by %c239_i32_149 dim 1 : vector<4x256xf32>, i32 -> vector<4x256xf32>
    %518 = vector.extract_strided_slice %0 {offsets = [8, 0], sizes = [1, 256], strides = [1, 1]} : vector<9x256xf32> to vector<1x256xf32>
    %519 = vector.broadcast %518 : vector<1x256xf32> to vector<4x256xf32>
    %520 = arith.mulf %517, %519 : vector<4x256xf32>
    %521 = tpu.concatenate %512, %516, %520 in 0 : vector<4x256xf32>, vector<4x256xf32>, vector<4x256xf32> -> vector<12x256xf32>
    %522 = arith.truncf %521 : vector<12x256xf32> to vector<12x256xbf16>
    %cst_150 = arith.constant dense<0.000000e+00> : vector<8x256xf32>
    %523 = tpu.matmul %14, %522, %cst_150 {dimension_numbers = #tpu.dot_dimension_numbers<[1], [0], [0], [1], [0, 0, 1, 1], [], []>} : vector<8x12xbf16>, vector<12x256xbf16>, vector<8x256xf32> -> vector<8x256xf32>
    %524 = arith.addf %508, %523 : vector<8x256xf32>
    %525 = vector.broadcast %3 : vector<8x1xf32> to vector<8x256xf32>
    %526 = arith.addf %524, %525 : vector<8x256xf32>
    %cst_151 = arith.constant dense<0.000000e+00> : vector<8xf32>
    %527 = vector.multi_reduction <add>, %526, %cst_151 [1] : vector<8x256xf32> to vector<8xf32>
    %528 = vector.shape_cast %527 : vector<8xf32> to vector<8x1xf32>
    %529 = arith.mulf %526, %526 : vector<8x256xf32>
    %cst_152 = arith.constant dense<0.000000e+00> : vector<8xf32>
    %530 = vector.multi_reduction <add>, %529, %cst_152 [1] : vector<8x256xf32> to vector<8xf32>
    %531 = vector.shape_cast %530 : vector<8xf32> to vector<8x1xf32>
    %532 = tpu.concatenate %528, %531 in 1 : vector<8x1xf32>, vector<8x1xf32> -> vector<8x2xf32>
    %cst_153 = arith.constant dense<0.000000e+00> : vector<8x2xf32>
    %533 = tpu.matmul %1, %532, %cst_153 {dimension_numbers = #tpu.dot_dimension_numbers<[1], [0], [0], [1], [0, 0, 1, 1], [], []>} : vector<8x8xf32>, vector<8x2xf32>, vector<8x2xf32> -> vector<8x2xf32>
    %534 = vector.extract_strided_slice %533 {offsets = [0, 0], sizes = [8, 1], strides = [1, 1]} : vector<8x2xf32> to vector<8x1xf32>
    %535 = vector.extract_strided_slice %533 {offsets = [0, 1], sizes = [8, 1], strides = [1, 1]} : vector<8x2xf32> to vector<8x1xf32>
    %536 = arith.mulf %534, %534 : vector<8x1xf32>
    %537 = arith.subf %535, %536 : vector<8x1xf32>
    %cst_154 = arith.constant 0.000000e+00 : f32
    %538 = vector.broadcast %cst_154 : f32 to vector<8x1xf32>
    %539 = arith.maximumf %537, %538 : vector<8x1xf32>
    %540 = vector.broadcast %534 : vector<8x1xf32> to vector<8x256xf32>
    %541 = arith.subf %526, %540 : vector<8x256xf32>
    %cst_155 = arith.constant 9.99999974E-6 : f32
    %542 = vector.broadcast %cst_155 : f32 to vector<8x1xf32>
    %543 = arith.addf %539, %542 : vector<8x1xf32>
    %544 = math.rsqrt %543 : vector<8x1xf32>
    %545 = vector.broadcast %544 : vector<8x1xf32> to vector<8x256xf32>
    %546 = arith.mulf %541, %545 : vector<8x256xf32>
    %547 = vector.broadcast %4 : vector<8x1xf32> to vector<8x256xf32>
    %548 = arith.mulf %546, %547 : vector<8x256xf32>
    %549 = vector.broadcast %5 : vector<8x1xf32> to vector<8x256xf32>
    %550 = arith.addf %548, %549 : vector<8x256xf32>
    %cst_156 = arith.constant 0.000000e+00 : f32
    %551 = vector.broadcast %cst_156 : f32 to vector<8x256xf32>
    %552 = arith.cmpf oge, %550, %551 : vector<8x256xf32>
    %cst_157 = arith.constant 0.00999999977 : f32
    %553 = vector.broadcast %cst_157 : f32 to vector<8x256xf32>
    %554 = arith.mulf %553, %550 : vector<8x256xf32>
    %555 = arith.select %552, %550, %554 : vector<8x256xi1>, vector<8x256xf32>
    %c17_i32_158 = arith.constant 17 : i32
    %556 = tpu.dynamic_rotate %555 by %c17_i32_158 dim 1 : vector<8x256xf32>, i32 -> vector<8x256xf32>
    %557 = vector.extract_strided_slice %0 {offsets = [0, 0], sizes = [1, 256], strides = [1, 1]} : vector<9x256xf32> to vector<1x256xf32>
    %558 = vector.broadcast %557 : vector<1x256xf32> to vector<8x256xf32>
    %559 = arith.mulf %556, %558 : vector<8x256xf32>
    %c16_i32_159 = arith.constant 16 : i32
    %560 = tpu.dynamic_rotate %555 by %c16_i32_159 dim 1 : vector<8x256xf32>, i32 -> vector<8x256xf32>
    %561 = vector.extract_strided_slice %0 {offsets = [1, 0], sizes = [1, 256], strides = [1, 1]} : vector<9x256xf32> to vector<1x256xf32>
    %562 = vector.broadcast %561 : vector<1x256xf32> to vector<8x256xf32>
    %563 = arith.mulf %560, %562 : vector<8x256xf32>
    %c15_i32_160 = arith.constant 15 : i32
    %564 = tpu.dynamic_rotate %555 by %c15_i32_160 dim 1 : vector<8x256xf32>, i32 -> vector<8x256xf32>
    %565 = vector.extract_strided_slice %0 {offsets = [2, 0], sizes = [1, 256], strides = [1, 1]} : vector<9x256xf32> to vector<1x256xf32>
    %566 = vector.broadcast %565 : vector<1x256xf32> to vector<8x256xf32>
    %567 = arith.mulf %564, %566 : vector<8x256xf32>
    %568 = tpu.concatenate %559, %563, %567 in 0 : vector<8x256xf32>, vector<8x256xf32>, vector<8x256xf32> -> vector<24x256xf32>
    %569 = arith.truncf %568 : vector<24x256xf32> to vector<24x256xbf16>
    %cst_161 = arith.constant dense<0.000000e+00> : vector<8x256xf32>
    %570 = tpu.matmul %16, %569, %cst_161 {dimension_numbers = #tpu.dot_dimension_numbers<[1], [0], [0], [1], [0, 0, 1, 1], [], []>} : vector<8x24xbf16>, vector<24x256xbf16>, vector<8x256xf32> -> vector<8x256xf32>
    %c1_i32_162 = arith.constant 1 : i32
    %571 = tpu.dynamic_rotate %555 by %c1_i32_162 dim 1 : vector<8x256xf32>, i32 -> vector<8x256xf32>
    %572 = vector.extract_strided_slice %0 {offsets = [3, 0], sizes = [1, 256], strides = [1, 1]} : vector<9x256xf32> to vector<1x256xf32>
    %573 = vector.broadcast %572 : vector<1x256xf32> to vector<8x256xf32>
    %574 = arith.mulf %571, %573 : vector<8x256xf32>
    %c255_i32_163 = arith.constant 255 : i32
    %575 = tpu.dynamic_rotate %555 by %c255_i32_163 dim 1 : vector<8x256xf32>, i32 -> vector<8x256xf32>
    %576 = vector.extract_strided_slice %0 {offsets = [5, 0], sizes = [1, 256], strides = [1, 1]} : vector<9x256xf32> to vector<1x256xf32>
    %577 = vector.broadcast %576 : vector<1x256xf32> to vector<8x256xf32>
    %578 = arith.mulf %575, %577 : vector<8x256xf32>
    %579 = tpu.concatenate %574, %555, %578 in 0 : vector<8x256xf32>, vector<8x256xf32>, vector<8x256xf32> -> vector<24x256xf32>
    %580 = arith.truncf %579 : vector<24x256xf32> to vector<24x256xbf16>
    %cst_164 = arith.constant dense<0.000000e+00> : vector<8x256xf32>
    %581 = tpu.matmul %18, %580, %cst_164 {dimension_numbers = #tpu.dot_dimension_numbers<[1], [0], [0], [1], [0, 0, 1, 1], [], []>} : vector<8x24xbf16>, vector<24x256xbf16>, vector<8x256xf32> -> vector<8x256xf32>
    %582 = arith.addf %570, %581 : vector<8x256xf32>
    %c241_i32_165 = arith.constant 241 : i32
    %583 = tpu.dynamic_rotate %555 by %c241_i32_165 dim 1 : vector<8x256xf32>, i32 -> vector<8x256xf32>
    %584 = vector.extract_strided_slice %0 {offsets = [6, 0], sizes = [1, 256], strides = [1, 1]} : vector<9x256xf32> to vector<1x256xf32>
    %585 = vector.broadcast %584 : vector<1x256xf32> to vector<8x256xf32>
    %586 = arith.mulf %583, %585 : vector<8x256xf32>
    %c240_i32_166 = arith.constant 240 : i32
    %587 = tpu.dynamic_rotate %555 by %c240_i32_166 dim 1 : vector<8x256xf32>, i32 -> vector<8x256xf32>
    %588 = vector.extract_strided_slice %0 {offsets = [7, 0], sizes = [1, 256], strides = [1, 1]} : vector<9x256xf32> to vector<1x256xf32>
    %589 = vector.broadcast %588 : vector<1x256xf32> to vector<8x256xf32>
    %590 = arith.mulf %587, %589 : vector<8x256xf32>
    %c239_i32_167 = arith.constant 239 : i32
    %591 = tpu.dynamic_rotate %555 by %c239_i32_167 dim 1 : vector<8x256xf32>, i32 -> vector<8x256xf32>
    %592 = vector.extract_strided_slice %0 {offsets = [8, 0], sizes = [1, 256], strides = [1, 1]} : vector<9x256xf32> to vector<1x256xf32>
    %593 = vector.broadcast %592 : vector<1x256xf32> to vector<8x256xf32>
    %594 = arith.mulf %591, %593 : vector<8x256xf32>
    %595 = tpu.concatenate %586, %590, %594 in 0 : vector<8x256xf32>, vector<8x256xf32>, vector<8x256xf32> -> vector<24x256xf32>
    %596 = arith.truncf %595 : vector<24x256xf32> to vector<24x256xbf16>
    %cst_168 = arith.constant dense<0.000000e+00> : vector<8x256xf32>
    %597 = tpu.matmul %20, %596, %cst_168 {dimension_numbers = #tpu.dot_dimension_numbers<[1], [0], [0], [1], [0, 0, 1, 1], [], []>} : vector<8x24xbf16>, vector<24x256xbf16>, vector<8x256xf32> -> vector<8x256xf32>
    %598 = arith.addf %582, %597 : vector<8x256xf32>
    %599 = vector.broadcast %6 : vector<8x1xf32> to vector<8x256xf32>
    %600 = arith.addf %598, %599 : vector<8x256xf32>
    %cst_169 = arith.constant dense<0.000000e+00> : vector<8xf32>
    %601 = vector.multi_reduction <add>, %600, %cst_169 [1] : vector<8x256xf32> to vector<8xf32>
    %602 = vector.shape_cast %601 : vector<8xf32> to vector<8x1xf32>
    %603 = arith.mulf %600, %600 : vector<8x256xf32>
    %cst_170 = arith.constant dense<0.000000e+00> : vector<8xf32>
    %604 = vector.multi_reduction <add>, %603, %cst_170 [1] : vector<8x256xf32> to vector<8xf32>
    %605 = vector.shape_cast %604 : vector<8xf32> to vector<8x1xf32>
    %606 = tpu.concatenate %602, %605 in 1 : vector<8x1xf32>, vector<8x1xf32> -> vector<8x2xf32>
    %cst_171 = arith.constant dense<0.000000e+00> : vector<8x2xf32>
    %607 = tpu.matmul %1, %606, %cst_171 {dimension_numbers = #tpu.dot_dimension_numbers<[1], [0], [0], [1], [0, 0, 1, 1], [], []>} : vector<8x8xf32>, vector<8x2xf32>, vector<8x2xf32> -> vector<8x2xf32>
    %608 = vector.extract_strided_slice %607 {offsets = [0, 0], sizes = [8, 1], strides = [1, 1]} : vector<8x2xf32> to vector<8x1xf32>
    %609 = vector.extract_strided_slice %607 {offsets = [0, 1], sizes = [8, 1], strides = [1, 1]} : vector<8x2xf32> to vector<8x1xf32>
    %610 = arith.mulf %608, %608 : vector<8x1xf32>
    %611 = arith.subf %609, %610 : vector<8x1xf32>
    %cst_172 = arith.constant 0.000000e+00 : f32
    %612 = vector.broadcast %cst_172 : f32 to vector<8x1xf32>
    %613 = arith.maximumf %611, %612 : vector<8x1xf32>
    %614 = vector.broadcast %608 : vector<8x1xf32> to vector<8x256xf32>
    %615 = arith.subf %600, %614 : vector<8x256xf32>
    %cst_173 = arith.constant 9.99999974E-6 : f32
    %616 = vector.broadcast %cst_173 : f32 to vector<8x1xf32>
    %617 = arith.addf %613, %616 : vector<8x1xf32>
    %618 = math.rsqrt %617 : vector<8x1xf32>
    %619 = vector.broadcast %618 : vector<8x1xf32> to vector<8x256xf32>
    %620 = arith.mulf %615, %619 : vector<8x256xf32>
    %621 = vector.broadcast %7 : vector<8x1xf32> to vector<8x256xf32>
    %622 = arith.mulf %620, %621 : vector<8x256xf32>
    %623 = vector.broadcast %8 : vector<8x1xf32> to vector<8x256xf32>
    %624 = arith.addf %622, %623 : vector<8x256xf32>
    %cst_174 = arith.constant 0.000000e+00 : f32
    %625 = vector.broadcast %cst_174 : f32 to vector<8x256xf32>
    %626 = arith.cmpf oge, %624, %625 : vector<8x256xf32>
    %cst_175 = arith.constant 0.00999999977 : f32
    %627 = vector.broadcast %cst_175 : f32 to vector<8x256xf32>
    %628 = arith.mulf %627, %624 : vector<8x256xf32>
    %629 = arith.select %626, %624, %628 : vector<8x256xi1>, vector<8x256xf32>
    %c3_176 = arith.constant 3 : index
    %c0_177 = arith.constant 0 : index
    %c0_178 = arith.constant 0 : index
    %630 = vector.load %arg7[%c3_176, %c0_177, %c0_178] : memref<4x8x256xf32, #tpu.memory_space<vmem>>, vector<1x8x256xf32>
    %631 = vector.shape_cast %630 : vector<1x8x256xf32> to vector<8x256xf32>
    %632 = vector.shape_cast %629 : vector<8x256xf32> to vector<1x8x256xf32>
    tpu.vector_store %arg7[%c3_176, %c0_177, %c0_178], %632 {strides = array<i32>} : memref<4x8x256xf32, #tpu.memory_space<vmem>>, vector<1x8x256xf32>,
    return
  }
  func.func @transform_0(%arg0: i32) -> (i32, i32, i32) {
    %c0_i32 = arith.constant 0 : i32
    %c0_i32_0 = arith.constant 0 : i32
    %c0_i32_1 = arith.constant 0 : i32
    return %arg0, %c0_i32, %c0_i32_0 : i32, i32, i32
  }
  func.func @transform_1(%arg0: i32) -> (i32, i32) {
    %c0_i32 = arith.constant 0 : i32
    %c0_i32_0 = arith.constant 0 : i32
    %c0_i32_1 = arith.constant 0 : i32
    return %c0_i32, %c0_i32_0 : i32, i32
  }
  func.func @transform_2(%arg0: i32) -> (i32, i32) {
    %c0_i32 = arith.constant 0 : i32
    %c0_i32_0 = arith.constant 0 : i32
    %c0_i32_1 = arith.constant 0 : i32
    return %c0_i32, %c0_i32_0 : i32, i32
  }
  func.func @transform_3(%arg0: i32) -> (i32, i32, i32) {
    %c0_i32 = arith.constant 0 : i32
    %c0_i32_0 = arith.constant 0 : i32
    %c0_i32_1 = arith.constant 0 : i32
    %c0_i32_2 = arith.constant 0 : i32
    return %c0_i32, %c0_i32_0, %c0_i32_1 : i32, i32, i32
  }
  func.func @transform_4(%arg0: i32) -> (i32, i32, i32) {
    %c0_i32 = arith.constant 0 : i32
    %c0_i32_0 = arith.constant 0 : i32
    %c0_i32_1 = arith.constant 0 : i32
    %c0_i32_2 = arith.constant 0 : i32
    return %c0_i32, %c0_i32_0, %c0_i32_1 : i32, i32, i32
  }
  func.func @transform_5(%arg0: i32) -> (i32, i32) {
    %c0_i32 = arith.constant 0 : i32
    %c0_i32_0 = arith.constant 0 : i32
    %c0_i32_1 = arith.constant 0 : i32
    return %c0_i32, %c0_i32_0 : i32, i32
  }
  func.func @transform_6(%arg0: i32) -> (i32, i32, i32) {
    %c0_i32 = arith.constant 0 : i32
    %c0_i32_0 = arith.constant 0 : i32
    %c0_i32_1 = arith.constant 0 : i32
    return %arg0, %c0_i32, %c0_i32_0 : i32, i32, i32
  }
}

</mosaic_0001>

<llo_original>
// kernel: conv_block.1
$region0: #{conv_block.1}
  #allocation0 [shape = 'u32[]', space=smem, size = 0x4, offset = 0x4, fixed_abs, tag = 'smem constant byte address 0x4 - core index']
  #allocation1 [shape = 'u32[144,128]{1,0:T(1,128)}', space=vmem, size = 0x12000, scoped, tag = 'internal scratch']
  %s0 = inlined_call_operand.vmem [shape: f32[8,4,256], index: 0, kind: input, shape index: {}]
  %s1 = inlined_call_operand.vmem [shape: f32[9,256], index: 1, kind: input, shape index: {}]
  %s2 = inlined_call_operand.vmem [shape: f32[8,8], index: 2, kind: input, shape index: {}]
  %s3 = inlined_call_operand.vmem [shape: bf16[3,8,12], index: 3, kind: input, shape index: {}]
  %s4 = inlined_call_operand.vmem [shape: bf16[3,8,24], index: 4, kind: input, shape index: {}]
  %s5 = inlined_call_operand.vmem [shape: f32[8,8], index: 5, kind: input, shape index: {}]
  %s6 = inlined_call_operand.vmem [shape: f32[8,8,256], index: 6, kind: output, shape index: {}]
  %s7 = sld [smem:[#allocation0]]
  $region57: #{conv_block.1} parent=0
    _
  %s9 = ssub.s32 1, %s7
  %s10 = scalar_select 0, %s9, %s7
  loop: start=0, step=1, limit=4
  $region2: #{conv_block.1} parent=0 // loop_pre_header
    _
  $region3: #{conv_block.1} parent=0 // loop_header
    %s12 = sphi 0, %s16
    %p13 = scmp.ge.s32.totalorder %s12, 4
    %s22 = sphi 0, %s24
    %s25 = sphi 0, %s22
    %s26 = sphi 0, %s25
    %s42 = sphi 0, %s26
    %s46 = sphi 0, %s46
    %s48 = sphi 0, %s46
    %s49 = sphi 0, %s48
    %s63 = sphi 0, %s49
    %s67 = sphi 0, %s67
    %s69 = sphi 0, %s67
    %s70 = sphi 0, %s69
    %s84 = sphi 0, %s70
    %s88 = sphi 0, %s88
    %s90 = sphi 0, %s88
    %s91 = sphi 0, %s90
    %s105 = sphi 0, %s91
    %s109 = sphi 0, %s109
    %s111 = sphi 0, %s109
    %s112 = sphi 0, %s111
    %s126 = sphi 0, %s112
    %s130 = sphi 0, %s130
    %s132 = sphi 0, %s130
    %s133 = sphi 0, %s132
    %s147 = sphi 0, %s133
    %s153 = sphi 0, %s155
    %s156 = sphi 0, %s153
    %s157 = sphi 0, %s156
    %s173 = sphi 0, %s157
  $region4: #{conv_block.1} parent=0 // loop_header_branch
    %15 = sbr.rel (%p13) target = $region8
  $region5: #{conv_block.1} parent=0 // loop_body
    %s17 = ssub.s32 %s12, 1
    %s18 = ssub.s32 %s12, 2
    %s19 = sadd.s32 %s12, 1
    %s20 = ssub.s32 %s12, %s19
    %p21 = scmp.eq.s32.totalorder %s20, 0
    %s23 = sadd.s32 %s22, 1
    %s24 = scalar_select %p21, %s22, %s23
    %p27 = pneg %p21
    %p28 = scmp.eq.s32.totalorder %s12, 1
    %p29 = por %p27, %p28
    %p30 = scmp.ne.s32.totalorder %s22, %s25
    %p31 = scmp.eq.s32.totalorder %s12, 0
    %p32 = por %p30, %p31
    %p33 = scmp.ne.s32.totalorder %s22, %s25
    %p34 = scmp.eq.s32.totalorder %s17, 1
    %p35 = por %p33, %p34
    %p36 = scmp.ne.s32.totalorder %s25, %s26
    %p37 = scmp.eq.s32.totalorder %s17, 0
    %p38 = por %p36, %p37
    %p39 = scmp.ne.s32.totalorder %s25, %s26
    %p40 = scmp.eq.s32.totalorder %s18, 1
    %p41 = por %p39, %p40
    %p43 = scmp.ne.s32.totalorder %s26, %s42
    %p44 = scmp.eq.s32.totalorder %s18, 0
    %p45 = por %p43, %p44
    %s47 = sadd.s32 %s46, 1
    %p50 = scmp.eq.s32.totalorder %s12, 1
    %p51 = scmp.ne.s32.totalorder %s46, %s48
    %p52 = scmp.eq.s32.totalorder %s12, 0
    %p53 = por %p51, %p52
    %p54 = scmp.ne.s32.totalorder %s46, %s48
    %p55 = scmp.eq.s32.totalorder %s17, 1
    %p56 = por %p54, %p55
    %p57 = scmp.ne.s32.totalorder %s48, %s49
    %p58 = scmp.eq.s32.totalorder %s17, 0
    %p59 = por %p57, %p58
    %p60 = scmp.ne.s32.totalorder %s48, %s49
    %p61 = scmp.eq.s32.totalorder %s18, 1
    %p62 = por %p60, %p61
    %p64 = scmp.ne.s32.totalorder %s49, %s63
    %p65 = scmp.eq.s32.totalorder %s18, 0
    %p66 = por %p64, %p65
    %s68 = sadd.s32 %s67, 1
    %p71 = scmp.eq.s32.totalorder %s12, 1
    %p72 = scmp.ne.s32.totalorder %s67, %s69
    %p73 = scmp.eq.s32.totalorder %s12, 0
    %p74 = por %p72, %p73
    %p75 = scmp.ne.s32.totalorder %s67, %s69
    %p76 = scmp.eq.s32.totalorder %s17, 1
    %p77 = por %p75, %p76
    %p78 = scmp.ne.s32.totalorder %s69, %s70
    %p79 = scmp.eq.s32.totalorder %s17, 0
    %p80 = por %p78, %p79
    %p81 = scmp.ne.s32.totalorder %s69, %s70
    %p82 = scmp.eq.s32.totalorder %s18, 1
    %p83 = por %p81, %p82
    %p85 = scmp.ne.s32.totalorder %s70, %s84
    %p86 = scmp.eq.s32.totalorder %s18, 0
    %p87 = por %p85, %p86
    %s89 = sadd.s32 %s88, 1
    %p92 = scmp.eq.s32.totalorder %s12, 1
    %p93 = scmp.ne.s32.totalorder %s88, %s90
    %p94 = scmp.eq.s32.totalorder %s12, 0
    %p95 = por %p93, %p94
    %p96 = scmp.ne.s32.totalorder %s88, %s90
    %p97 = scmp.eq.s32.totalorder %s17, 1
    %p98 = por %p96, %p97
    %p99 = scmp.ne.s32.totalorder %s90, %s91
    %p100 = scmp.eq.s32.totalorder %s17, 0
    %p101 = por %p99, %p100
    %p102 = scmp.ne.s32.totalorder %s90, %s91
    %p103 = scmp.eq.s32.totalorder %s18, 1
    %p104 = por %p102, %p103
    %p106 = scmp.ne.s32.totalorder %s91, %s105
    %p107 = scmp.eq.s32.totalorder %s18, 0
    %p108 = por %p106, %p107
    %s110 = sadd.s32 %s109, 1
    %p113 = scmp.eq.s32.totalorder %s12, 1
    %p114 = scmp.ne.s32.totalorder %s109, %s111
    %p115 = scmp.eq.s32.totalorder %s12, 0
    %p116 = por %p114, %p115
    %p117 = scmp.ne.s32.totalorder %s109, %s111
    %p118 = scmp.eq.s32.totalorder %s17, 1
    %p119 = por %p117, %p118
    %p120 = scmp.ne.s32.totalorder %s111, %s112
    %p121 = scmp.eq.s32.totalorder %s17, 0
    %p122 = por %p120, %p121
    %p123 = scmp.ne.s32.totalorder %s111, %s112
    %p124 = scmp.eq.s32.totalorder %s18, 1
    %p125 = por %p123, %p124
    %p127 = scmp.ne.s32.totalorder %s112, %s126
    %p128 = scmp.eq.s32.totalorder %s18, 0
    %p129 = por %p127, %p128
    %s131 = sadd.s32 %s130, 1
    %p134 = scmp.eq.s32.totalorder %s12, 1
    %p135 = scmp.ne.s32.totalorder %s130, %s132
    %p136 = scmp.eq.s32.totalorder %s12, 0
    %p137 = por %p135, %p136
    %p138 = scmp.ne.s32.totalorder %s130, %s132
    %p139 = scmp.eq.s32.totalorder %s17, 1
    %p140 = por %p138, %p139
    %p141 = scmp.ne.s32.totalorder %s132, %s133
    %p142 = scmp.eq.s32.totalorder %s17, 0
    %p143 = por %p141, %p142
    %p144 = scmp.ne.s32.totalorder %s132, %s133
    %p145 = scmp.eq.s32.totalorder %s18, 1
    %p146 = por %p144, %p145
    %p148 = scmp.ne.s32.totalorder %s133, %s147
    %p149 = scmp.eq.s32.totalorder %s18, 0
    %p150 = por %p148, %p149
    %s151 = ssub.s32 %s12, %s19
    %p152 = scmp.eq.s32.totalorder %s151, 0
    %s154 = sadd.s32 %s153, 1
    %s155 = scalar_select %p152, %s153, %s154
    %p158 = pneg %p152
    %p159 = scmp.eq.s32.totalorder %s12, 1
    %p160 = por %p158, %p159
    %p161 = scmp.ne.s32.totalorder %s153, %s156
    %p162 = scmp.eq.s32.totalorder %s12, 0
    %p163 = por %p161, %p162
    %p164 = scmp.ne.s32.totalorder %s153, %s156
    %p165 = scmp.eq.s32.totalorder %s17, 1
    %p166 = por %p164, %p165
    %p167 = scmp.ne.s32.totalorder %s156, %s157
    %p168 = scmp.eq.s32.totalorder %s17, 0
    %p169 = por %p167, %p168
    %p170 = scmp.ne.s32.totalorder %s156, %s157
    %p171 = scmp.eq.s32.totalorder %s18, 1
    %p172 = por %p170, %p171
    %p174 = scmp.ne.s32.totalorder %s157, %s173
    %p175 = scmp.eq.s32.totalorder %s18, 0
    %p176 = por %p174, %p175
    %p177 = scmp.le.s32.totalorder 1, %s12
    %p178 = scmp.lt.s32.totalorder %s12, 3
    %p179 = pnand %p177, %p178
    %p180 = pneg %p179
    // Predicated region
    $region9: #{conv_block.1} parent=5 // pred_check
      _
    $region10: #{conv_block.1} parent=5 // pred_check_branch
      %182 = sbr.rel (%p179) target = $region12
    $region11: #{conv_block.1} parent=5 // pred_region
      %s183 = ssub.s32 %s12, 1
      // Predicated region
      $region13: #{conv_block.1} parent=11 // pred_check
        %p184 = pneg %p59
      $region14: #{conv_block.1} parent=11 // pred_check_branch
        %186 = sbr.rel (%p184) target = $region16
      $region15: #{conv_block.1} parent=11 // pred_region
        _
      $region16: #{conv_block.1} parent=11 // pred_fallthru
        _
      // Predicated region
      $region17: #{conv_block.1} parent=11 // pred_check
        %p187 = pneg %p80
      $region18: #{conv_block.1} parent=11 // pred_check_branch
        %189 = sbr.rel (%p187) target = $region20
      $region19: #{conv_block.1} parent=11 // pred_region
        _
      $region20: #{conv_block.1} parent=11 // pred_fallthru
        _
      // Predicated region
      $region21: #{conv_block.1} parent=11 // pred_check
        %p190 = pneg %p101
      $region22: #{conv_block.1} parent=11 // pred_check_branch
        %192 = sbr.rel (%p190) target = $region24
      $region23: #{conv_block.1} parent=11 // pred_region
        _
      $region24: #{conv_block.1} parent=11 // pred_fallthru
        _
      // Predicated region
      $region25: #{conv_block.1} parent=11 // pred_check
        %p193 = pneg %p122
      $region26: #{conv_block.1} parent=11 // pred_check_branch
        %195 = sbr.rel (%p193) target = $region28
      $region27: #{conv_block.1} parent=11 // pred_region
        _
      $region28: #{conv_block.1} parent=11 // pred_fallthru
        _
      // Predicated region
      $region29: #{conv_block.1} parent=11 // pred_check
        %p196 = pneg %p143
      $region30: #{conv_block.1} parent=11 // pred_check_branch
        %198 = sbr.rel (%p196) target = $region32
      $region31: #{conv_block.1} parent=11 // pred_region
        _
      $region32: #{conv_block.1} parent=11 // pred_fallthru
        _
    $region12: #{conv_block.1} parent=5 // pred_fallthru
      _
    %p199 = scmp.lt.s32.totalorder %s12, 2
    // Predicated region
    $region33: #{conv_block.1} parent=5 // pred_check
      %p200 = pneg %p199
    $region34: #{conv_block.1} parent=5 // pred_check_branch
      %202 = sbr.rel (%p200) target = $region36
    $region35: #{conv_block.1} parent=5 // pred_region
      // Predicated region
      $region37: #{conv_block.1} parent=35 // pred_check
        %p203 = pneg %p32
      $region38: #{conv_block.1} parent=35 // pred_check_branch
        %205 = sbr.rel (%p203) target = $region40
      $region39: #{conv_block.1} parent=35 // pred_region
        %s206 = smul.u32 4, %s12
        %p207 = scmp.lt.s32.totalorder %s206, 7
        %s208 = scalar_select %p207, %s206, 7
        %s209 = smul.addr %s208, 2
        %s210 = smul.addr %s209, 4
        %s211 = scalar_lea.vmem %s0, %s210
        %s212 = smul.u32 4, %s12
      $region40: #{conv_block.1} parent=35 // pred_fallthru
        _
    $region36: #{conv_block.1} parent=5 // pred_fallthru
      _
    %p213 = scmp.le.s32.totalorder 1, %s12
    %p214 = scmp.lt.s32.totalorder %s12, 3
    %p215 = pnand %p213, %p214
    %p216 = pneg %p215
    // Predicated region
    $region41: #{conv_block.1} parent=5 // pred_check
      _
    $region42: #{conv_block.1} parent=5 // pred_check_branch
      %218 = sbr.rel (%p215) target = $region44
    $region43: #{conv_block.1} parent=5 // pred_region
      %s219 = ssub.s32 %s12, 1
      %s220 = smul.u32 4, %s17
      %p221 = scmp.lt.s32.totalorder %s220, 7
      %s222 = scalar_select %p221, %s220, 7
      %s223 = smul.addr %s222, 2
      %s224 = smul.addr %s223, 4
      %s225 = scalar_lea.vmem %s0, %s224
      %p226 = pneg %p38
      %p227 = pneg %p35
      %p228 = pneg %p59
      %p229 = pneg %p56
      %p230 = pneg %p80
      %p231 = pneg %p77
      %p232 = pneg %p101
      %p233 = pneg %p98
      %p234 = pneg %p122
      %p235 = pneg %p119
      %p236 = pneg %p143
      %p237 = pneg %p140
      %p238 = pneg %p169
      %p239 = pneg %p166
      %s240 = smul.u32 4, %s17
      %p241 = scmp.lt.s32.totalorder %s240, 7
      %s242 = scalar_select %p241, %s240, 7
      %s243 = smul.addr %s242, 2
      %s244 = smul.addr %s243, 8
      %s245 = scalar_lea.vmem %s6, %s244
      %s246 = smul.u32 4, %s17
      %p247 = scmp.lt.s32.totalorder %s246, 7
      %s248 = scalar_select %p247, %s246, 7
      %s249 = smul.addr %s248, 2
      %s250 = smul.addr %s249, 4
      %s251 = scalar_lea.vmem %s0, %s250
      %s252 = smul.u32 4, %s17
      %s253 = smul.u32 4, %s17
      %p254 = scmp.lt.s32.totalorder %s253, 7
      %s255 = scalar_select %p254, %s253, 7
      %s256 = smul.addr %s255, 2
      %s257 = smul.addr %s256, 8
      %s258 = scalar_lea.vmem %s6, %s257
      %s259 = smul.u32 4, %s17
      %v261 = vld [vmem:[%s1] sm:$0xff]
      %v262 = vld [vmem:[%s1 + $0x8] sm:$0xff]
      %v263 = vld [vmem:[%s1 + $0x10] sm:$0x1]
      %v264 = vld [vmem:[%s1 + $0x18] sm:$0x1]
      %v265 = vld [vmem:[%s2] sm:$0xff]
      %v266 = vld [vmem:[%s5] sm:$0xff]
      %v267 = vld [vmem:[%s3] sm:$0xf]
      %s268 = scalar_lea.vmem %s3, 4
      %v269 = vld [vmem:[%s268] sm:$0xf]
      %s270 = scalar_lea.vmem %s3, 8
      %v271 = vld [vmem:[%s270] sm:$0xf]
      %v272 = vld [vmem:[%s4] sm:$0xf]
      %s273 = scalar_lea.vmem %s4, 4
      %v274 = vld [vmem:[%s273] sm:$0xf]
      %s275 = scalar_lea.vmem %s4, 8
      %v276 = vld [vmem:[%s275] sm:$0xf]
      %v277 = vld [vmem:[%s251] sm:$0xff]
      %v279 = vcombine.high %v277, %v277
      %281 = vrot.lane.b32.xlu0 %v277, 17
      %v282 = vpop.permute.xlu0 %281
      %283 = vrot.lane.b32.xlu0 %v279, 17
      %v284 = vpop.permute.xlu0 %283
      %v285 = vlaneseq
      %v286 = vand.u32 %v285, 127
      %vm287 = vcmp.lt.s32.totalorder %v286, 17
      %v288 = vsel %vm287, %v282, %v284
      %v289 = vsel %vm287, %v284, %v282
      %v290 = vlaneseq
      %v291 = vshrl.u32 %v290, 7
      %v292 = vsub.s32 0, %v291
      %v293 = vrot.slane %v261, %v292
      %v294 = vlaneseq
      %v295 = vshrl.u32 %v294, 7
      %v296 = vsub.s32 0, %v295
      %v297 = vrot.slane %v262, %v296
      %v298 = vmul.f32 %v289, %v293
      %v299 = vmul.f32 %v288, %v297
      %300 = vrot.lane.b32.xlu0 %v277, 16
      %v301 = vpop.permute.xlu0 %300
      %302 = vrot.lane.b32.xlu0 %v279, 16
      %v303 = vpop.permute.xlu0 %302
      %vm304 = vcmp.lt.s32.totalorder %v286, 16
      %v305 = vsel %vm304, %v301, %v303
      %v306 = vsel %vm304, %v303, %v301
      %v307 = vlaneseq
      %v308 = vshrl.u32 %v307, 7
      %v309 = vsub.s32 1, %v308
      %v310 = vrot.slane %v261, %v309
      %v311 = vlaneseq
      %v312 = vshrl.u32 %v311, 7
      %v313 = vsub.s32 1, %v312
      %v314 = vrot.slane %v262, %v313
      %v315 = vmul.f32 %v306, %v310
      %v316 = vmul.f32 %v305, %v314
      %317 = vrot.lane.b32.xlu0 %v277, 15
      %v318 = vpop.permute.xlu0 %317
      %319 = vrot.lane.b32.xlu0 %v279, 15
      %v320 = vpop.permute.xlu0 %319
      %vm321 = vcmp.lt.s32.totalorder %v286, 15
      %v322 = vsel %vm321, %v318, %v320
      %v323 = vsel %vm321, %v320, %v318
      %v324 = vlaneseq
      %v325 = vshrl.u32 %v324, 7
      %v326 = vsub.s32 2, %v325
      %v327 = vrot.slane %v261, %v326
      %v328 = vlaneseq
      %v329 = vshrl.u32 %v328, 7
      %v330 = vsub.s32 2, %v329
      %v331 = vrot.slane %v262, %v330
      %v332 = vmul.f32 %v323, %v327
      %v333 = vmul.f32 %v322, %v331
      %v336 = vrot.slane %v315, 4
      %v337 = vrot.slane %v316, 4
      %vm340 = vcmask 1043456
      %v341 = vsel %vm340, %v298, %v336
      %v342 = vsel %vm340, %v299, %v337
      %v343 = vpack.c.bf16 %v332, %v341
      %v344 = vpack.c.bf16 %v333, %v342
      %345 = vrot.lane.b32.xlu0 %v277, 1
      %v346 = vpop.permute.xlu0 %345
      %347 = vrot.lane.b32.xlu0 %v279, 1
      %v348 = vpop.permute.xlu0 %347
      %vm349 = vcmp.lt.s32.totalorder %v286, 1
      %v350 = vsel %vm349, %v346, %v348
      %v351 = vsel %vm349, %v348, %v346
      %v352 = vlaneseq
      %v353 = vshrl.u32 %v352, 7
      %v354 = vsub.s32 3, %v353
      %v355 = vrot.slane %v261, %v354
      %v356 = vlaneseq
      %v357 = vshrl.u32 %v356, 7
      %v358 = vsub.s32 3, %v357
      %v359 = vrot.slane %v262, %v358
      %v360 = vmul.f32 %v351, %v355
      %v361 = vmul.f32 %v350, %v359
      %362 = vrot.lane.b32.xlu0 %v277, 127
      %v363 = vpop.permute.xlu0 %362
      %364 = vrot.lane.b32.xlu0 %v279, 127
      %v365 = vpop.permute.xlu0 %364
      %vm366 = vcmp.lt.s32.totalorder %v286, 127
      %v367 = vsel %vm366, %v363, %v365
      %v368 = vsel %vm366, %v365, %v363
      %v369 = vlaneseq
      %v370 = vshrl.u32 %v369, 7
      %v371 = vsub.s32 5, %v370
      %v372 = vrot.slane %v261, %v371
      %v373 = vlaneseq
      %v374 = vshrl.u32 %v373, 7
      %v375 = vsub.s32 5, %v374
      %v376 = vrot.slane %v262, %v375
      %v377 = vmul.f32 %v367, %v372
      %v378 = vmul.f32 %v368, %v376
      %v379 = vcombine.low %v277, %v277
      %v381 = vsel %vm340, %v360, %v379
      %v382 = vsel %vm340, %v361, %v277
      %v383 = vpack.c.bf16 %v377, %v381
      %v384 = vpack.c.bf16 %v378, %v382
      %vm385 = vcmask 97280
      %v387 = vsel %vm385, %v269, 0
      %vm389 = vcmask 1045504
      %v391 = vsel %vm389, %v383, 0
      %v394 = vsel %vm389, %v384, 0
      %396 = vmatprep.subr.bf16.mxu0 %v394
      %397 = vmatpush1.bf16.msra.mxu0 %v391
      %398 = vmatprep.subr.bf16.mxu0 0
      %399 = vmatpush1.bf16.msra.mxu0 0
      %400 = vmatprep.subr.bf16.mxu0 0
      %401 = vmatpush1.bf16.msra.mxu0 0
      %402 = vmatprep.subr.bf16.mxu0 0
      %403 = vmatpush1.bf16.msra.mxu0 0
      %404 = vmatprep.subr.bf16.mxu0 0
      %405 = vmatpush1.bf16.msra.mxu0 0
      %406 = vmatprep.subr.bf16.mxu0 0
      %407 = vmatpush1.bf16.msra.mxu0 0
      %408 = vmatprep.subr.bf16.mxu0 0
      %409 = vmatpush1.bf16.msra.mxu0 0
      %410 = vmatprep.subr.bf16.mxu0 0
      %411 = vmatpush1.bf16.msra.mxu0 0
      %412 = vmatprep.subr.bf16.mxu0 0
      %413 = vmatpush1.bf16.msra.mxu0 0
      %414 = vmatprep.subr.bf16.mxu0 0
      %415 = vmatpush1.bf16.msra.mxu0 0
      %416 = vmatprep.subr.bf16.mxu0 0
      %417 = vmatpush1.bf16.msra.mxu0 0
      %418 = vmatprep.subr.bf16.mxu0 0
      %419 = vmatpush1.bf16.msra.mxu0 0
      %420 = vmatprep.subr.bf16.mxu0 0
      %421 = vmatpush1.bf16.msra.mxu0 0
      %422 = vmatprep.subr.bf16.mxu0 0
      %423 = vmatpush1.bf16.msra.mxu0 0
      %424 = vmatprep.subr.bf16.mxu0 0
      %425 = vmatpush1.bf16.msra.mxu0 0
      %426 = vmatprep.subr.bf16.mxu0 0
      %427 = vmatpush1.bf16.msra.mxu0 0
      %428 = vmatprep.mubr.bf16.mxu0 0
      %429 = vmatmul.mubr.bf16.gmra.mrb[0].mxu0 %v387
      %v430 = vpop.f32.mrb[0].mxu0
      %v431 = vadd.f32 0.0, %v430
      %v432 = vpop.f32.mrb[0].mxu0
      %v433 = vadd.f32 0.0, %v432
      %v434 = vpop.f32.mrb[0].mxu0
      %v435 = vpop.f32.mrb[0].mxu0
      %436 = vdwg.mxu0
      %v438 = vsel %vm385, %v267, 0
      %v441 = vsel %vm389, %v343, 0
      %v444 = vsel %vm389, %v344, 0
      %446 = vmatprep.subr.bf16.mxu0 %v444
      %447 = vmatpush1.bf16.msra.mxu0 %v441
      %448 = vmatprep.subr.bf16.mxu0 0
      %449 = vmatpush1.bf16.msra.mxu0 0
      %450 = vmatprep.subr.bf16.mxu0 0
      %451 = vmatpush1.bf16.msra.mxu0 0
      %452 = vmatprep.subr.bf16.mxu0 0
      %453 = vmatpush1.bf16.msra.mxu0 0
      %454 = vmatprep.subr.bf16.mxu0 0
      %455 = vmatpush1.bf16.msra.mxu0 0
      %456 = vmatprep.subr.bf16.mxu0 0
      %457 = vmatpush1.bf16.msra.mxu0 0
      %458 = vmatprep.subr.bf16.mxu0 0
      %459 = vmatpush1.bf16.msra.mxu0 0
      %460 = vmatprep.subr.bf16.mxu0 0
      %461 = vmatpush1.bf16.msra.mxu0 0
      %462 = vmatprep.subr.bf16.mxu0 0
      %463 = vmatpush1.bf16.msra.mxu0 0
      %464 = vmatprep.subr.bf16.mxu0 0
      %465 = vmatpush1.bf16.msra.mxu0 0
      %466 = vmatprep.subr.bf16.mxu0 0
      %467 = vmatpush1.bf16.msra.mxu0 0
      %468 = vmatprep.subr.bf16.mxu0 0
      %469 = vmatpush1.bf16.msra.mxu0 0
      %470 = vmatprep.subr.bf16.mxu0 0
      %471 = vmatpush1.bf16.msra.mxu0 0
      %472 = vmatprep.subr.bf16.mxu0 0
      %473 = vmatpush1.bf16.msra.mxu0 0
      %474 = vmatprep.subr.bf16.mxu0 0
      %475 = vmatpush1.bf16.msra.mxu0 0
      %476 = vmatprep.subr.bf16.mxu0 0
      %477 = vmatpush1.bf16.msra.mxu0 0
      %478 = vmatprep.mubr.bf16.mxu0 0
      %479 = vmatmul.mubr.bf16.gmra.mrb[0].mxu0 %v438
      %v480 = vpop.f32.mrb[0].mxu0
      %v481 = vadd.f32 %v431, %v480
      %v482 = vpop.f32.mrb[0].mxu0
      %v483 = vadd.f32 %v433, %v482
      %v484 = vpop.f32.mrb[0].mxu0
      %v485 = vpop.f32.mrb[0].mxu0
      %486 = vdwg.mxu0
      %487 = vrot.lane.b32.xlu0 %v277, 113
      %v488 = vpop.permute.xlu0 %487
      %489 = vrot.lane.b32.xlu0 %v279, 113
      %v490 = vpop.permute.xlu0 %489
      %vm491 = vcmp.lt.s32.totalorder %v286, 113
      %v492 = vsel %vm491, %v488, %v490
      %v493 = vsel %vm491, %v490, %v488
      %v494 = vlaneseq
      %v495 = vshrl.u32 %v494, 7
      %v496 = vsub.s32 6, %v495
      %v497 = vrot.slane %v261, %v496
      %v498 = vlaneseq
      %v499 = vshrl.u32 %v498, 7
      %v500 = vsub.s32 6, %v499
      %v501 = vrot.slane %v262, %v500
      %v502 = vmul.f32 %v492, %v497
      %v503 = vmul.f32 %v493, %v501
      %504 = vrot.lane.b32.xlu0 %v277, 112
      %v505 = vpop.permute.xlu0 %504
      %506 = vrot.lane.b32.xlu0 %v279, 112
      %v507 = vpop.permute.xlu0 %506
      %vm508 = vcmp.lt.s32.totalorder %v286, 112
      %v509 = vsel %vm508, %v505, %v507
      %v510 = vsel %vm508, %v507, %v505
      %v511 = vlaneseq
      %v512 = vshrl.u32 %v511, 7
      %v513 = vsub.s32 7, %v512
      %v514 = vrot.slane %v261, %v513
      %v515 = vlaneseq
      %v516 = vshrl.u32 %v515, 7
      %v517 = vsub.s32 7, %v516
      %v518 = vrot.slane %v262, %v517
      %v519 = vmul.f32 %v509, %v514
      %v520 = vmul.f32 %v510, %v518
      %521 = vrot.lane.b32.xlu0 %v277, 111
      %v522 = vpop.permute.xlu0 %521
      %523 = vrot.lane.b32.xlu0 %v279, 111
      %v524 = vpop.permute.xlu0 %523
      %vm525 = vcmp.lt.s32.totalorder %v286, 111
      %v526 = vsel %vm525, %v522, %v524
      %v527 = vsel %vm525, %v524, %v522
      %v528 = vlaneseq
      %v529 = vshrl.u32 %v528, 7
      %v530 = vsub.s32 0, %v529
      %v531 = vrot.slane %v263, %v530
      %v532 = vlaneseq
      %v533 = vshrl.u32 %v532, 7
      %v534 = vsub.s32 0, %v533
      %v535 = vrot.slane %v264, %v534
      %v536 = vmul.f32 %v526, %v531
      %v537 = vmul.f32 %v527, %v535
      %v540 = vrot.slane %v519, 4
      %v541 = vrot.slane %v520, 4
      %v544 = vsel %vm340, %v502, %v540
      %v545 = vsel %vm340, %v503, %v541
      %v546 = vpack.c.bf16 %v536, %v544
      %v547 = vpack.c.bf16 %v537, %v545
      %v549 = vsel %vm385, %v271, 0
      %v552 = vsel %vm389, %v546, 0
      %v555 = vsel %vm389, %v547, 0
      %557 = vmatprep.subr.bf16.mxu0 %v555
      %558 = vmatpush1.bf16.msra.mxu0 %v552
      %559 = vmatprep.subr.bf16.mxu0 0
      %560 = vmatpush1.bf16.msra.mxu0 0
      %561 = vmatprep.subr.bf16.mxu0 0
      %562 = vmatpush1.bf16.msra.mxu0 0
      %563 = vmatprep.subr.bf16.mxu0 0
      %564 = vmatpush1.bf16.msra.mxu0 0
      %565 = vmatprep.subr.bf16.mxu0 0
      %566 = vmatpush1.bf16.msra.mxu0 0
      %567 = vmatprep.subr.bf16.mxu0 0
      %568 = vmatpush1.bf16.msra.mxu0 0
      %569 = vmatprep.subr.bf16.mxu0 0
      %570 = vmatpush1.bf16.msra.mxu0 0
      %571 = vmatprep.subr.bf16.mxu0 0
      %572 = vmatpush1.bf16.msra.mxu0 0
      %573 = vmatprep.subr.bf16.mxu0 0
      %574 = vmatpush1.bf16.msra.mxu0 0
      %575 = vmatprep.subr.bf16.mxu0 0
      %576 = vmatpush1.bf16.msra.mxu0 0
      %577 = vmatprep.subr.bf16.mxu0 0
      %578 = vmatpush1.bf16.msra.mxu0 0
      %579 = vmatprep.subr.bf16.mxu0 0
      %580 = vmatpush1.bf16.msra.mxu0 0
      %581 = vmatprep.subr.bf16.mxu0 0
      %582 = vmatpush1.bf16.msra.mxu0 0
      %583 = vmatprep.subr.bf16.mxu0 0
      %584 = vmatpush1.bf16.msra.mxu0 0
      %585 = vmatprep.subr.bf16.mxu0 0
      %586 = vmatpush1.bf16.msra.mxu0 0
      %587 = vmatprep.subr.bf16.mxu0 0
      %588 = vmatpush1.bf16.msra.mxu0 0
      %589 = vmatprep.mubr.bf16.mxu0 0
      %590 = vmatmul.mubr.bf16.gmra.mrb[0].mxu0 %v549
      %v591 = vpop.f32.mrb[0].mxu0
      %v592 = vadd.f32 0.0, %v591
      %v593 = vpop.f32.mrb[0].mxu0
      %v594 = vadd.f32 0.0, %v593
      %v595 = vpop.f32.mrb[0].mxu0
      %v596 = vpop.f32.mrb[0].mxu0
      %597 = vdwg.mxu0
      %v598 = vadd.f32 %v481, %v592
      %v599 = vadd.f32 %v483, %v594
      %601 = vset.pattern.permute.xlu0 0
      %602 = vperm.xlu0 %601, %v266
      %v603 = vpop.permute.xlu0 %602
      %v605 = vadd.f32 %v598, %v603
      %v606 = vadd.f32 %v599, %v603
      %v607 = vadd.f32 %v605, %v606
      %608 = vadd.xlane.f32.xlu0 %v607
      %v609 = vpop.xlane.xlu0 %608
      %v610 = vmul.f32 %v605, %v605
      %v611 = vmul.f32 %v606, %v606
      %v612 = vadd.f32 %v610, %v611
      %613 = vadd.xlane.f32.xlu0 %v612
      %v614 = vpop.xlane.xlu0 %613
      %vm615 = vcmask 7168
      %v616 = vsel %vm615, %v609, %v614
      %vm617 = vcmask 64512
      %v619 = vsel %vm617, %v265, 0
      %621 = vmatprep.subr.mxu0 0.0
      %622 = vmatpush1.msra.mxu0 %v616
      %623 = vmatprep.subr.mxu0 0.0
      %624 = vmatpush1.msra.mxu0 0.0
      %625 = vmatprep.subr.mxu0 0.0
      %626 = vmatpush1.msra.mxu0 0.0
      %627 = vmatprep.subr.mxu0 0.0
      %628 = vmatpush1.msra.mxu0 0.0
      %629 = vmatprep.subr.mxu0 0.0
      %630 = vmatpush1.msra.mxu0 0.0
      %631 = vmatprep.subr.mxu0 0.0
      %632 = vmatpush1.msra.mxu0 0.0
      %633 = vmatprep.subr.mxu0 0.0
      %634 = vmatpush1.msra.mxu0 0.0
      %635 = vmatprep.subr.mxu0 0.0
      %636 = vmatpush1.msra.mxu0 0.0
      %637 = vmatprep.subr.mxu0 0.0
      %638 = vmatpush1.msra.mxu0 0.0
      %639 = vmatprep.subr.mxu0 0.0
      %640 = vmatpush1.msra.mxu0 0.0
      %641 = vmatprep.subr.mxu0 0.0
      %642 = vmatpush1.msra.mxu0 0.0
      %643 = vmatprep.subr.mxu0 0.0
      %644 = vmatpush1.msra.mxu0 0.0
      %645 = vmatprep.subr.mxu0 0.0
      %646 = vmatpush1.msra.mxu0 0.0
      %647 = vmatprep.subr.mxu0 0.0
      %648 = vmatpush1.msra.mxu0 0.0
      %649 = vmatprep.subr.mxu0 0.0
      %650 = vmatpush1.msra.mxu0 0.0
      %651 = vmatprep.subr.mxu0 0.0
      %652 = vmatpush1.msra.mxu0 0.0
      %653 = vmatprep.subr.mxu0 0.0
      %654 = vmatpush1.msra.mxu0 0.0
      %655 = vmatprep.subr.mxu0 0.0
      %656 = vmatpush1.msra.mxu0 0.0
      %657 = vmatprep.subr.mxu0 0.0
      %658 = vmatpush1.msra.mxu0 0.0
      %659 = vmatprep.subr.mxu0 0.0
      %660 = vmatpush1.msra.mxu0 0.0
      %661 = vmatprep.subr.mxu0 0.0
      %662 = vmatpush1.msra.mxu0 0.0
      %663 = vmatprep.subr.mxu0 0.0
      %664 = vmatpush1.msra.mxu0 0.0
      %665 = vmatprep.subr.mxu0 0.0
      %666 = vmatpush1.msra.mxu0 0.0
      %667 = vmatprep.subr.mxu0 0.0
      %668 = vmatpush1.msra.mxu0 0.0
      %669 = vmatprep.subr.mxu0 0.0
      %670 = vmatpush1.msra.mxu0 0.0
      %671 = vmatprep.subr.mxu0 0.0
      %672 = vmatpush1.msra.mxu0 0.0
      %673 = vmatprep.subr.mxu0 0.0
      %674 = vmatpush1.msra.mxu0 0.0
      %675 = vmatprep.subr.mxu0 0.0
      %676 = vmatpush1.msra.mxu0 0.0
      %677 = vmatprep.subr.mxu0 0.0
      %678 = vmatpush1.msra.mxu0 0.0
      %679 = vmatprep.subr.mxu0 0.0
      %680 = vmatpush1.msra.mxu0 0.0
      %681 = vmatprep.subr.mxu0 0.0
      %682 = vmatpush1.msra.mxu0 0.0
      %683 = vmatprep.subr.mxu0 0.0
      %684 = vmatpush1.msra.mxu0 0.0
      %685 = vmatprep.mubr.f32.mxu0 0.0
      %686 = vmatmul.mubr.f32.gmra.mrb[0].mxu0 %v619
      %v687 = vpop.f32.mrb[0].mxu0
      %v688 = vadd.f32 0.0, %v687
      %v689 = vpop.f32.mrb[0].mxu0
      %690 = vdwg.mxu0
      %v691 = vmul.f32 %v688, %v688
      %693 = vrot.lane.b32.xlu0 %v691, 1
      %v694 = vpop.permute.xlu0 %693
      %v696 = vsub.f32 %v688, %v694
      %v697 = vmax.f32 %v696, 0.0
      %699 = vset.pattern.permute.xlu0 0
      %700 = vperm.xlu0 %699, %v688
      %v701 = vpop.permute.xlu0 %700
      %v703 = vsub.f32 %v605, %v701
      %v704 = vsub.f32 %v606, %v701
      %v705 = vadd.f32 %v697, 1e-05
      %v706 = vrsqrt.pop %v705
      %708 = vset.pattern.permute.xlu0 1
      %709 = vperm.xlu0 %708, %v706
      %v710 = vpop.permute.xlu0 %709
      %v712 = vmul.f32 %v703, %v710
      %v713 = vmul.f32 %v704, %v710
      %714 = vset.pattern.permute.xlu0 1
      %715 = vperm.xlu0 %714, %v266
      %v716 = vpop.permute.xlu0 %715
      %v718 = vmul.f32 %v712, %v716
      %v719 = vmul.f32 %v713, %v716
      %720 = vset.pattern.permute.xlu0 2
      %721 = vperm.xlu0 %720, %v266
      %v722 = vpop.permute.xlu0 %721
      %v724 = vadd.f32 %v718, %v722
      %v725 = vadd.f32 %v719, %v722
      %vm726 = vcmp.ge.f32.partialorder %v724, 0.0
      %vm727 = vcmp.ge.f32.partialorder %v725, 0.0
      %v728 = vmul.f32 %v724, 0.01
      %v729 = vmul.f32 %v725, 0.01
      %v730 = vsel %vm726, %v724, %v728
      %v731 = vsel %vm727, %v725, %v729
      %732 = vrot.lane.b32.xlu0 %v730, 17
      %v733 = vpop.permute.xlu0 %732
      %734 = vrot.lane.b32.xlu0 %v731, 17
      %v735 = vpop.permute.xlu0 %734
      %v736 = vsel %vm287, %v733, %v735
      %v737 = vsel %vm287, %v735, %v733
      %v738 = vmul.f32 %v737, %v293
      %v739 = vmul.f32 %v736, %v297
      %740 = vrot.lane.b32.xlu0 %v730, 16
      %v741 = vpop.permute.xlu0 %740
      %742 = vrot.lane.b32.xlu0 %v731, 16
      %v743 = vpop.permute.xlu0 %742
      %v744 = vsel %vm304, %v741, %v743
      %v745 = vsel %vm304, %v743, %v741
      %v746 = vmul.f32 %v745, %v310
      %v747 = vmul.f32 %v744, %v314
      %748 = vrot.lane.b32.xlu0 %v730, 15
      %v749 = vpop.permute.xlu0 %748
      %750 = vrot.lane.b32.xlu0 %v731, 15
      %v751 = vpop.permute.xlu0 %750
      %v752 = vsel %vm321, %v749, %v751
      %v753 = vsel %vm321, %v751, %v749
      %v754 = vmul.f32 %v753, %v327
      %v755 = vmul.f32 %v752, %v331
      %v756 = vpack.c.bf16 %v746, %v738
      %v757 = vpack.c.bf16 %v747, %v739
      %v758 = vpack.c.bf16 %v754, %v754
      %v759 = vpack.c.bf16 %v755, %v755
      %760 = vrot.lane.b32.xlu0 %v730, 1
      %v761 = vpop.permute.xlu0 %760
      %762 = vrot.lane.b32.xlu0 %v731, 1
      %v763 = vpop.permute.xlu0 %762
      %v764 = vsel %vm349, %v761, %v763
      %v765 = vsel %vm349, %v763, %v761
      %v766 = vmul.f32 %v765, %v355
      %v767 = vmul.f32 %v764, %v359
      %768 = vrot.lane.b32.xlu0 %v730, 127
      %v769 = vpop.permute.xlu0 %768
      %770 = vrot.lane.b32.xlu0 %v731, 127
      %v771 = vpop.permute.xlu0 %770
      %v772 = vsel %vm366, %v769, %v771
      %v773 = vsel %vm366, %v771, %v769
      %v774 = vmul.f32 %v772, %v372
      %v775 = vmul.f32 %v773, %v376
      %v776 = vpack.c.bf16 %v730, %v766
      %v777 = vpack.c.bf16 %v731, %v767
      %v778 = vpack.c.bf16 %v774, %v774
      %v779 = vpack.c.bf16 %v775, %v775
      %vm780 = vcmask 195584
      %v782 = vsel %vm780, %v274, 0
      %v785 = vsel %vm340, %v778, 0
      %v788 = vsel %vm340, %v779, 0
      %790 = vmatprep.subr.bf16.mxu0 %v777
      %791 = vmatpush1.bf16.msra.mxu0 %v776
      %792 = vmatprep.subr.bf16.mxu0 %v788
      %793 = vmatpush1.bf16.msra.mxu0 %v785
      %794 = vmatprep.subr.bf16.mxu0 0
      %795 = vmatpush1.bf16.msra.mxu0 0
      %796 = vmatprep.subr.bf16.mxu0 0
      %797 = vmatpush1.bf16.msra.mxu0 0
      %798 = vmatprep.subr.bf16.mxu0 0
      %799 = vmatpush1.bf16.msra.mxu0 0
      %800 = vmatprep.subr.bf16.mxu0 0
      %801 = vmatpush1.bf16.msra.mxu0 0
      %802 = vmatprep.subr.bf16.mxu0 0
      %803 = vmatpush1.bf16.msra.mxu0 0
      %804 = vmatprep.subr.bf16.mxu0 0
      %805 = vmatpush1.bf16.msra.mxu0 0
      %806 = vmatprep.subr.bf16.mxu0 0
      %807 = vmatpush1.bf16.msra.mxu0 0
      %808 = vmatprep.subr.bf16.mxu0 0
      %809 = vmatpush1.bf16.msra.mxu0 0
      %810 = vmatprep.subr.bf16.mxu0 0
      %811 = vmatpush1.bf16.msra.mxu0 0
      %812 = vmatprep.subr.bf16.mxu0 0
      %813 = vmatpush1.bf16.msra.mxu0 0
      %814 = vmatprep.subr.bf16.mxu0 0
      %815 = vmatpush1.bf16.msra.mxu0 0
      %816 = vmatprep.subr.bf16.mxu0 0
      %817 = vmatpush1.bf16.msra.mxu0 0
      %818 = vmatprep.subr.bf16.mxu0 0
      %819 = vmatpush1.bf16.msra.mxu0 0
      %820 = vmatprep.subr.bf16.mxu0 0
      %821 = vmatpush1.bf16.msra.mxu0 0
      %822 = vmatprep.mubr.bf16.mxu0 0
      %823 = vmatmul.mubr.bf16.gmra.mrb[0].mxu0 %v782
      %v824 = vpop.f32.mrb[0].mxu0
      %v825 = vadd.f32 0.0, %v824
      %v826 = vpop.f32.mrb[0].mxu0
      %v827 = vadd.f32 0.0, %v826
      %v828 = vpop.f32.mrb[0].mxu0
      %v829 = vpop.f32.mrb[0].mxu0
      %830 = vdwg.mxu0
      %v832 = vsel %vm780, %v272, 0
      %v835 = vsel %vm340, %v758, 0
      %v838 = vsel %vm340, %v759, 0
      %840 = vmatprep.subr.bf16.mxu0 %v757
      %841 = vmatpush1.bf16.msra.mxu0 %v756
      %842 = vmatprep.subr.bf16.mxu0 %v838
      %843 = vmatpush1.bf16.msra.mxu0 %v835
      %844 = vmatprep.subr.bf16.mxu0 0
      %845 = vmatpush1.bf16.msra.mxu0 0
      %846 = vmatprep.subr.bf16.mxu0 0
      %847 = vmatpush1.bf16.msra.mxu0 0
      %848 = vmatprep.subr.bf16.mxu0 0
      %849 = vmatpush1.bf16.msra.mxu0 0
      %850 = vmatprep.subr.bf16.mxu0 0
      %851 = vmatpush1.bf16.msra.mxu0 0
      %852 = vmatprep.subr.bf16.mxu0 0
      %853 = vmatpush1.bf16.msra.mxu0 0
      %854 = vmatprep.subr.bf16.mxu0 0
      %855 = vmatpush1.bf16.msra.mxu0 0
      %856 = vmatprep.subr.bf16.mxu0 0
      %857 = vmatpush1.bf16.msra.mxu0 0
      %858 = vmatprep.subr.bf16.mxu0 0
      %859 = vmatpush1.bf16.msra.mxu0 0
      %860 = vmatprep.subr.bf16.mxu0 0
      %861 = vmatpush1.bf16.msra.mxu0 0
      %862 = vmatprep.subr.bf16.mxu0 0
      %863 = vmatpush1.bf16.msra.mxu0 0
      %864 = vmatprep.subr.bf16.mxu0 0
      %865 = vmatpush1.bf16.msra.mxu0 0
      %866 = vmatprep.subr.bf16.mxu0 0
      %867 = vmatpush1.bf16.msra.mxu0 0
      %868 = vmatprep.subr.bf16.mxu0 0
      %869 = vmatpush1.bf16.msra.mxu0 0
      %870 = vmatprep.subr.bf16.mxu0 0
      %871 = vmatpush1.bf16.msra.mxu0 0
      %872 = vmatprep.mubr.bf16.mxu0 0
      %873 = vmatmul.mubr.bf16.gmra.mrb[0].mxu0 %v832
      %v874 = vpop.f32.mrb[0].mxu0
      %v875 = vadd.f32 %v825, %v874
      %v876 = vpop.f32.mrb[0].mxu0
      %v877 = vadd.f32 %v827, %v876
      %v878 = vpop.f32.mrb[0].mxu0
      %v879 = vpop.f32.mrb[0].mxu0
      %880 = vdwg.mxu0
      %881 = vrot.lane.b32.xlu0 %v730, 113
      %v882 = vpop.permute.xlu0 %881
      %883 = vrot.lane.b32.xlu0 %v731, 113
      %v884 = vpop.permute.xlu0 %883
      %v885 = vsel %vm491, %v882, %v884
      %v886 = vsel %vm491, %v884, %v882
      %v887 = vmul.f32 %v885, %v497
      %v888 = vmul.f32 %v886, %v501
      %889 = vrot.lane.b32.xlu0 %v730, 112
      %v890 = vpop.permute.xlu0 %889
      %891 = vrot.lane.b32.xlu0 %v731, 112
      %v892 = vpop.permute.xlu0 %891
      %v893 = vsel %vm508, %v890, %v892
      %v894 = vsel %vm508, %v892, %v890
      %v895 = vmul.f32 %v893, %v514
      %v896 = vmul.f32 %v894, %v518
      %897 = vrot.lane.b32.xlu0 %v730, 111
      %v898 = vpop.permute.xlu0 %897
      %899 = vrot.lane.b32.xlu0 %v731, 111
      %v900 = vpop.permute.xlu0 %899
      %v901 = vsel %vm525, %v898, %v900
      %v902 = vsel %vm525, %v900, %v898
      %v903 = vmul.f32 %v901, %v531
      %v904 = vmul.f32 %v902, %v535
      %v905 = vpack.c.bf16 %v895, %v887
      %v906 = vpack.c.bf16 %v896, %v888
      %v907 = vpack.c.bf16 %v903, %v903
      %v908 = vpack.c.bf16 %v904, %v904
      %v910 = vsel %vm780, %v276, 0
      %v913 = vsel %vm340, %v907, 0
      %v916 = vsel %vm340, %v908, 0
      %918 = vmatprep.subr.bf16.mxu0 %v906
      %919 = vmatpush1.bf16.msra.mxu0 %v905
      %920 = vmatprep.subr.bf16.mxu0 %v916
      %921 = vmatpush1.bf16.msra.mxu0 %v913
      %922 = vmatprep.subr.bf16.mxu0 0
      %923 = vmatpush1.bf16.msra.mxu0 0
      %924 = vmatprep.subr.bf16.mxu0 0
      %925 = vmatpush1.bf16.msra.mxu0 0
      %926 = vmatprep.subr.bf16.mxu0 0
      %927 = vmatpush1.bf16.msra.mxu0 0
      %928 = vmatprep.subr.bf16.mxu0 0
      %929 = vmatpush1.bf16.msra.mxu0 0
      %930 = vmatprep.subr.bf16.mxu0 0
      %931 = vmatpush1.bf16.msra.mxu0 0
      %932 = vmatprep.subr.bf16.mxu0 0
      %933 = vmatpush1.bf16.msra.mxu0 0
      %934 = vmatprep.subr.bf16.mxu0 0
      %935 = vmatpush1.bf16.msra.mxu0 0
      %936 = vmatprep.subr.bf16.mxu0 0
      %937 = vmatpush1.bf16.msra.mxu0 0
      %938 = vmatprep.subr.bf16.mxu0 0
      %939 = vmatpush1.bf16.msra.mxu0 0
      %940 = vmatprep.subr.bf16.mxu0 0
      %941 = vmatpush1.bf16.msra.mxu0 0
      %942 = vmatprep.subr.bf16.mxu0 0
      %943 = vmatpush1.bf16.msra.mxu0 0
      %944 = vmatprep.subr.bf16.mxu0 0
      %945 = vmatpush1.bf16.msra.mxu0 0
      %946 = vmatprep.subr.bf16.mxu0 0
      %947 = vmatpush1.bf16.msra.mxu0 0
      %948 = vmatprep.subr.bf16.mxu0 0
      %949 = vmatpush1.bf16.msra.mxu0 0
      %950 = vmatprep.mubr.bf16.mxu0 0
      %951 = vmatmul.mubr.bf16.gmra.mrb[0].mxu0 %v910
      %v952 = vpop.f32.mrb[0].mxu0
      %v953 = vadd.f32 0.0, %v952
      %v954 = vpop.f32.mrb[0].mxu0
      %v955 = vadd.f32 0.0, %v954
      %v956 = vpop.f32.mrb[0].mxu0
      %v957 = vpop.f32.mrb[0].mxu0
      %958 = vdwg.mxu0
      %v959 = vadd.f32 %v875, %v953
      %v960 = vadd.f32 %v877, %v955
      %961 = vset.pattern.permute.xlu0 3
      %962 = vperm.xlu0 %961, %v266
      %v963 = vpop.permute.xlu0 %962
      %v965 = vadd.f32 %v959, %v963
      %v966 = vadd.f32 %v960, %v963
      %v967 = vadd.f32 %v965, %v966
      %968 = vadd.xlane.f32.xlu0 %v967
      %v969 = vpop.xlane.xlu0 %968
      %v970 = vmul.f32 %v965, %v965
      %v971 = vmul.f32 %v966, %v966
      %v972 = vadd.f32 %v970, %v971
      %973 = vadd.xlane.f32.xlu0 %v972
      %v974 = vpop.xlane.xlu0 %973
      %v975 = vsel %vm615, %v969, %v974
      %976 = vmatprep.subr.mxu0 0.0
      %977 = vmatpush1.msra.mxu0 %v975
      %978 = vmatprep.subr.mxu0 0.0
      %979 = vmatpush1.msra.mxu0 0.0
      %980 = vmatprep.subr.mxu0 0.0
      %981 = vmatpush1.msra.mxu0 0.0
      %982 = vmatprep.subr.mxu0 0.0
      %983 = vmatpush1.msra.mxu0 0.0
      %984 = vmatprep.subr.mxu0 0.0
      %985 = vmatpush1.msra.mxu0 0.0
      %986 = vmatprep.subr.mxu0 0.0
      %987 = vmatpush1.msra.mxu0 0.0
      %988 = vmatprep.subr.mxu0 0.0
      %989 = vmatpush1.msra.mxu0 0.0
      %990 = vmatprep.subr.mxu0 0.0
      %991 = vmatpush1.msra.mxu0 0.0
      %992 = vmatprep.subr.mxu0 0.0
      %993 = vmatpush1.msra.mxu0 0.0
      %994 = vmatprep.subr.mxu0 0.0
      %995 = vmatpush1.msra.mxu0 0.0
      %996 = vmatprep.subr.mxu0 0.0
      %997 = vmatpush1.msra.mxu0 0.0
      %998 = vmatprep.subr.mxu0 0.0
      %999 = vmatpush1.msra.mxu0 0.0
      %1000 = vmatprep.subr.mxu0 0.0
      %1001 = vmatpush1.msra.mxu0 0.0
      %1002 = vmatprep.subr.mxu0 0.0
      %1003 = vmatpush1.msra.mxu0 0.0
      %1004 = vmatprep.subr.mxu0 0.0
      %1005 = vmatpush1.msra.mxu0 0.0
      %1006 = vmatprep.subr.mxu0 0.0
      %1007 = vmatpush1.msra.mxu0 0.0
      %1008 = vmatprep.subr.mxu0 0.0
      %1009 = vmatpush1.msra.mxu0 0.0
      %1010 = vmatprep.subr.mxu0 0.0
      %1011 = vmatpush1.msra.mxu0 0.0
      %1012 = vmatprep.subr.mxu0 0.0
      %1013 = vmatpush1.msra.mxu0 0.0
      %1014 = vmatprep.subr.mxu0 0.0
      %1015 = vmatpush1.msra.mxu0 0.0
      %1016 = vmatprep.subr.mxu0 0.0
      %1017 = vmatpush1.msra.mxu0 0.0
      %1018 = vmatprep.subr.mxu0 0.0
      %1019 = vmatpush1.msra.mxu0 0.0
      %1020 = vmatprep.subr.mxu0 0.0
      %1021 = vmatpush1.msra.mxu0 0.0
      %1022 = vmatprep.subr.mxu0 0.0
      %1023 = vmatpush1.msra.mxu0 0.0
      %1024 = vmatprep.subr.mxu0 0.0
      %1025 = vmatpush1.msra.mxu0 0.0
      %1026 = vmatprep.subr.mxu0 0.0
      %1027 = vmatpush1.msra.mxu0 0.0
      %1028 = vmatprep.subr.mxu0 0.0
      %1029 = vmatpush1.msra.mxu0 0.0
      %1030 = vmatprep.subr.mxu0 0.0
      %1031 = vmatpush1.msra.mxu0 0.0
      %1032 = vmatprep.subr.mxu0 0.0
      %1033 = vmatpush1.msra.mxu0 0.0
      %1034 = vmatprep.subr.mxu0 0.0
      %1035 = vmatpush1.msra.mxu0 0.0
      %1036 = vmatprep.subr.mxu0 0.0
      %1037 = vmatpush1.msra.mxu0 0.0
      %1038 = vmatprep.subr.mxu0 0.0
      %1039 = vmatpush1.msra.mxu0 0.0
      %1040 = vmatprep.mubr.f32.mxu0 0.0
      %1041 = vmatmul.mubr.f32.gmra.mrb[0].mxu0 %v619
      %v1042 = vpop.f32.mrb[0].mxu0
      %v1043 = vadd.f32 0.0, %v1042
      %v1044 = vpop.f32.mrb[0].mxu0
      %1045 = vdwg.mxu0
      %v1046 = vmul.f32 %v1043, %v1043
      %1048 = vrot.lane.b32.xlu0 %v1046, 1
      %v1049 = vpop.permute.xlu0 %1048
      %v1051 = vsub.f32 %v1043, %v1049
      %v1052 = vmax.f32 %v1051, 0.0
      %1054 = vset.pattern.permute.xlu0 0
      %1055 = vperm.xlu0 %1054, %v1043
      %v1056 = vpop.permute.xlu0 %1055
      %v1058 = vsub.f32 %v965, %v1056
      %v1059 = vsub.f32 %v966, %v1056
      %v1060 = vadd.f32 %v1052, 1e-05
      %v1061 = vrsqrt.pop %v1060
      %1063 = vset.pattern.permute.xlu0 1
      %1064 = vperm.xlu0 %1063, %v1061
      %v1065 = vpop.permute.xlu0 %1064
      %v1067 = vmul.f32 %v1058, %v1065
      %v1068 = vmul.f32 %v1059, %v1065
      %1069 = vset.pattern.permute.xlu0 4
      %1070 = vperm.xlu0 %1069, %v266
      %v1071 = vpop.permute.xlu0 %1070
      %v1073 = vmul.f32 %v1067, %v1071
      %v1074 = vmul.f32 %v1068, %v1071
      %1075 = vset.pattern.permute.xlu0 5
      %1076 = vperm.xlu0 %1075, %v266
      %v1077 = vpop.permute.xlu0 %1076
      %v1079 = vadd.f32 %v1073, %v1077
      %v1080 = vadd.f32 %v1074, %v1077
      %vm1081 = vcmp.ge.f32.partialorder %v1079, 0.0
      %vm1082 = vcmp.ge.f32.partialorder %v1080, 0.0
      %v1083 = vmul.f32 %v1079, 0.01
      %v1084 = vmul.f32 %v1080, 0.01
      %v1085 = vsel %vm1081, %v1079, %v1083
      %v1086 = vsel %vm1082, %v1080, %v1084
      %1087 = vst [vmem:[%s258] sm:$0xff] %v1085
      %1088 = vst [vmem:[%s258 + $0x8] sm:$0xff] %v1086
      %s1089 = scalar_lea.vmem %s251, 8
      %v1090 = vld [vmem:[%s1089] sm:$0xff]
      %v1092 = vcombine.high %v1090, %v1090
      %1094 = vrot.lane.b32.xlu0 %v1090, 17
      %v1095 = vpop.permute.xlu0 %1094
      %1096 = vrot.lane.b32.xlu0 %v1092, 17
      %v1097 = vpop.permute.xlu0 %1096
      %v1098 = vsel %vm287, %v1095, %v1097
      %v1099 = vsel %vm287, %v1097, %v1095
      %v1100 = vmul.f32 %v1099, %v293
      %v1101 = vmul.f32 %v1098, %v297
      %1102 = vrot.lane.b32.xlu0 %v1090, 16
      %v1103 = vpop.permute.xlu0 %1102
      %1104 = vrot.lane.b32.xlu0 %v1092, 16
      %v1105 = vpop.permute.xlu0 %1104
      %v1106 = vsel %vm304, %v1103, %v1105
      %v1107 = vsel %vm304, %v1105, %v1103
      %v1108 = vmul.f32 %v1107, %v310
      %v1109 = vmul.f32 %v1106, %v314
      %1110 = vrot.lane.b32.xlu0 %v1090, 15
      %v1111 = vpop.permute.xlu0 %1110
      %1112 = vrot.lane.b32.xlu0 %v1092, 15
      %v1113 = vpop.permute.xlu0 %1112
      %v1114 = vsel %vm321, %v1111, %v1113
      %v1115 = vsel %vm321, %v1113, %v1111
      %v1116 = vmul.f32 %v1115, %v327
      %v1117 = vmul.f32 %v1114, %v331
      %v1120 = vrot.slane %v1108, 4
      %v1121 = vrot.slane %v1109, 4
      %v1124 = vsel %vm340, %v1100, %v1120
      %v1125 = vsel %vm340, %v1101, %v1121
      %v1126 = vpack.c.bf16 %v1116, %v1124
      %v1127 = vpack.c.bf16 %v1117, %v1125
      %1128 = vrot.lane.b32.xlu0 %v1090, 1
      %v1129 = vpop.permute.xlu0 %1128
      %1130 = vrot.lane.b32.xlu0 %v1092, 1
      %v1131 = vpop.permute.xlu0 %1130
      %v1132 = vsel %vm349, %v1129, %v1131
      %v1133 = vsel %vm349, %v1131, %v1129
      %v1134 = vmul.f32 %v1133, %v355
      %v1135 = vmul.f32 %v1132, %v359
      %1136 = vrot.lane.b32.xlu0 %v1090, 127
      %v1137 = vpop.permute.xlu0 %1136
      %1138 = vrot.lane.b32.xlu0 %v1092, 127
      %v1139 = vpop.permute.xlu0 %1138
      %v1140 = vsel %vm366, %v1137, %v1139
      %v1141 = vsel %vm366, %v1139, %v1137
      %v1142 = vmul.f32 %v1140, %v372
      %v1143 = vmul.f32 %v1141, %v376
      %v1144 = vcombine.low %v1090, %v1090
      %v1146 = vsel %vm340, %v1134, %v1144
      %v1147 = vsel %vm340, %v1135, %v1090
      %v1148 = vpack.c.bf16 %v1142, %v1146
      %v1149 = vpack.c.bf16 %v1143, %v1147
      %v1151 = vsel %vm389, %v1148, 0
      %v1154 = vsel %vm389, %v1149, 0
      %1156 = vmatprep.subr.bf16.mxu0 %v1154
      %1157 = vmatpush1.bf16.msra.mxu0 %v1151
      %1158 = vmatprep.subr.bf16.mxu0 0
      %1159 = vmatpush1.bf16.msra.mxu0 0
      %1160 = vmatprep.subr.bf16.mxu0 0
      %1161 = vmatpush1.bf16.msra.mxu0 0
      %1162 = vmatprep.subr.bf16.mxu0 0
      %1163 = vmatpush1.bf16.msra.mxu0 0
      %1164 = vmatprep.subr.bf16.mxu0 0
      %1165 = vmatpush1.bf16.msra.mxu0 0
      %1166 = vmatprep.subr.bf16.mxu0 0
      %1167 = vmatpush1.bf16.msra.mxu0 0
      %1168 = vmatprep.subr.bf16.mxu0 0
      %1169 = vmatpush1.bf16.msra.mxu0 0
      %1170 = vmatprep.subr.bf16.mxu0 0
      %1171 = vmatpush1.bf16.msra.mxu0 0
      %1172 = vmatprep.subr.bf16.mxu0 0
      %1173 = vmatpush1.bf16.msra.mxu0 0
      %1174 = vmatprep.subr.bf16.mxu0 0
      %1175 = vmatpush1.bf16.msra.mxu0 0
      %1176 = vmatprep.subr.bf16.mxu0 0
      %1177 = vmatpush1.bf16.msra.mxu0 0
      %1178 = vmatprep.subr.bf16.mxu0 0
      %1179 = vmatpush1.bf16.msra.mxu0 0
      %1180 = vmatprep.subr.bf16.mxu0 0
      %1181 = vmatpush1.bf16.msra.mxu0 0
      %1182 = vmatprep.subr.bf16.mxu0 0
      %1183 = vmatpush1.bf16.msra.mxu0 0
      %1184 = vmatprep.subr.bf16.mxu0 0
      %1185 = vmatpush1.bf16.msra.mxu0 0
      %1186 = vmatprep.subr.bf16.mxu0 0
      %1187 = vmatpush1.bf16.msra.mxu0 0
      %1188 = vmatprep.mubr.bf16.mxu0 0
      %1189 = vmatmul.mubr.bf16.gmra.mrb[0].mxu0 %v387
      %v1190 = vpop.f32.mrb[0].mxu0
      %v1191 = vadd.f32 0.0, %v1190
      %v1192 = vpop.f32.mrb[0].mxu0
      %v1193 = vadd.f32 0.0, %v1192
      %v1194 = vpop.f32.mrb[0].mxu0
      %v1195 = vpop.f32.mrb[0].mxu0
      %1196 = vdwg.mxu0
      %v1198 = vsel %vm389, %v1126, 0
      %v1201 = vsel %vm389, %v1127, 0
      %1203 = vmatprep.subr.bf16.mxu0 %v1201
      %1204 = vmatpush1.bf16.msra.mxu0 %v1198
      %1205 = vmatprep.subr.bf16.mxu0 0
      %1206 = vmatpush1.bf16.msra.mxu0 0
      %1207 = vmatprep.subr.bf16.mxu0 0
      %1208 = vmatpush1.bf16.msra.mxu0 0
      %1209 = vmatprep.subr.bf16.mxu0 0
      %1210 = vmatpush1.bf16.msra.mxu0 0
      %1211 = vmatprep.subr.bf16.mxu0 0
      %1212 = vmatpush1.bf16.msra.mxu0 0
      %1213 = vmatprep.subr.bf16.mxu0 0
      %1214 = vmatpush1.bf16.msra.mxu0 0
      %1215 = vmatprep.subr.bf16.mxu0 0
      %1216 = vmatpush1.bf16.msra.mxu0 0
      %1217 = vmatprep.subr.bf16.mxu0 0
      %1218 = vmatpush1.bf16.msra.mxu0 0
      %1219 = vmatprep.subr.bf16.mxu0 0
      %1220 = vmatpush1.bf16.msra.mxu0 0
      %1221 = vmatprep.subr.bf16.mxu0 0
      %1222 = vmatpush1.bf16.msra.mxu0 0
      %1223 = vmatprep.subr.bf16.mxu0 0
      %1224 = vmatpush1.bf16.msra.mxu0 0
      %1225 = vmatprep.subr.bf16.mxu0 0
      %1226 = vmatpush1.bf16.msra.mxu0 0
      %1227 = vmatprep.subr.bf16.mxu0 0
      %1228 = vmatpush1.bf16.msra.mxu0 0
      %1229 = vmatprep.subr.bf16.mxu0 0
      %1230 = vmatpush1.bf16.msra.mxu0 0
      %1231 = vmatprep.subr.bf16.mxu0 0
      %1232 = vmatpush1.bf16.msra.mxu0 0
      %1233 = vmatprep.subr.bf16.mxu0 0
      %1234 = vmatpush1.bf16.msra.mxu0 0
      %1235 = vmatprep.mubr.bf16.mxu0 0
      %1236 = vmatmul.mubr.bf16.gmra.mrb[0].mxu0 %v438
      %v1237 = vpop.f32.mrb[0].mxu0
      %v1238 = vadd.f32 %v1191, %v1237
      %v1239 = vpop.f32.mrb[0].mxu0
      %v1240 = vadd.f32 %v1193, %v1239
      %v1241 = vpop.f32.mrb[0].mxu0
      %v1242 = vpop.f32.mrb[0].mxu0
      %1243 = vdwg.mxu0
      %1244 = vrot.lane.b32.xlu0 %v1090, 113
      %v1245 = vpop.permute.xlu0 %1244
      %1246 = vrot.lane.b32.xlu0 %v1092, 113
      %v1247 = vpop.permute.xlu0 %1246
      %v1248 = vsel %vm491, %v1245, %v1247
      %v1249 = vsel %vm491, %v1247, %v1245
      %v1250 = vmul.f32 %v1248, %v497
      %v1251 = vmul.f32 %v1249, %v501
      %1252 = vrot.lane.b32.xlu0 %v1090, 112
      %v1253 = vpop.permute.xlu0 %1252
      %1254 = vrot.lane.b32.xlu0 %v1092, 112
      %v1255 = vpop.permute.xlu0 %1254
      %v1256 = vsel %vm508, %v1253, %v1255
      %v1257 = vsel %vm508, %v1255, %v1253
      %v1258 = vmul.f32 %v1256, %v514
      %v1259 = vmul.f32 %v1257, %v518
      %1260 = vrot.lane.b32.xlu0 %v1090, 111
      %v1261 = vpop.permute.xlu0 %1260
      %1262 = vrot.lane.b32.xlu0 %v1092, 111
      %v1263 = vpop.permute.xlu0 %1262
      %v1264 = vsel %vm525, %v1261, %v1263
      %v1265 = vsel %vm525, %v1263, %v1261
      %v1266 = vmul.f32 %v1264, %v531
      %v1267 = vmul.f32 %v1265, %v535
      %v1270 = vrot.slane %v1258, 4
      %v1271 = vrot.slane %v1259, 4
      %v1274 = vsel %vm340, %v1250, %v1270
      %v1275 = vsel %vm340, %v1251, %v1271
      %v1276 = vpack.c.bf16 %v1266, %v1274
      %v1277 = vpack.c.bf16 %v1267, %v1275
      %v1279 = vsel %vm389, %v1276, 0
      %v1282 = vsel %vm389, %v1277, 0
      %1284 = vmatprep.subr.bf16.mxu0 %v1282
      %1285 = vmatpush1.bf16.msra.mxu0 %v1279
      %1286 = vmatprep.subr.bf16.mxu0 0
      %1287 = vmatpush1.bf16.msra.mxu0 0
      %1288 = vmatprep.subr.bf16.mxu0 0
      %1289 = vmatpush1.bf16.msra.mxu0 0
      %1290 = vmatprep.subr.bf16.mxu0 0
      %1291 = vmatpush1.bf16.msra.mxu0 0
      %1292 = vmatprep.subr.bf16.mxu0 0
      %1293 = vmatpush1.bf16.msra.mxu0 0
      %1294 = vmatprep.subr.bf16.mxu0 0
      %1295 = vmatpush1.bf16.msra.mxu0 0
      %1296 = vmatprep.subr.bf16.mxu0 0
      %1297 = vmatpush1.bf16.msra.mxu0 0
      %1298 = vmatprep.subr.bf16.mxu0 0
      %1299 = vmatpush1.bf16.msra.mxu0 0
      %1300 = vmatprep.subr.bf16.mxu0 0
      %1301 = vmatpush1.bf16.msra.mxu0 0
      %1302 = vmatprep.subr.bf16.mxu0 0
      %1303 = vmatpush1.bf16.msra.mxu0 0
      %1304 = vmatprep.subr.bf16.mxu0 0
      %1305 = vmatpush1.bf16.msra.mxu0 0
      %1306 = vmatprep.subr.bf16.mxu0 0
      %1307 = vmatpush1.bf16.msra.mxu0 0
      %1308 = vmatprep.subr.bf16.mxu0 0
      %1309 = vmatpush1.bf16.msra.mxu0 0
      %1310 = vmatprep.subr.bf16.mxu0 0
      %1311 = vmatpush1.bf16.msra.mxu0 0
      %1312 = vmatprep.subr.bf16.mxu0 0
      %1313 = vmatpush1.bf16.msra.mxu0 0
      %1314 = vmatprep.subr.bf16.mxu0 0
      %1315 = vmatpush1.bf16.msra.mxu0 0
      %1316 = vmatprep.mubr.bf16.mxu0 0
      %1317 = vmatmul.mubr.bf16.gmra.mrb[0].mxu0 %v549
      %v1318 = vpop.f32.mrb[0].mxu0
      %v1319 = vadd.f32 0.0, %v1318
      %v1320 = vpop.f32.mrb[0].mxu0
      %v1321 = vadd.f32 0.0, %v1320
      %v1322 = vpop.f32.mrb[0].mxu0
      %v1323 = vpop.f32.mrb[0].mxu0
      %1324 = vdwg.mxu0
      %v1325 = vadd.f32 %v1238, %v1319
      %v1326 = vadd.f32 %v1240, %v1321
      %v1327 = vadd.f32 %v1325, %v603
      %v1328 = vadd.f32 %v1326, %v603
      %v1329 = vadd.f32 %v1327, %v1328
      %1330 = vadd.xlane.f32.xlu0 %v1329
      %v1331 = vpop.xlane.xlu0 %1330
      %v1332 = vmul.f32 %v1327, %v1327
      %v1333 = vmul.f32 %v1328, %v1328
      %v1334 = vadd.f32 %v1332, %v1333
      %1335 = vadd.xlane.f32.xlu0 %v1334
      %v1336 = vpop.xlane.xlu0 %1335
      %v1337 = vsel %vm615, %v1331, %v1336
      %1338 = vmatprep.subr.mxu0 0.0
      %1339 = vmatpush1.msra.mxu0 %v1337
      %1340 = vmatprep.subr.mxu0 0.0
      %1341 = vmatpush1.msra.mxu0 0.0
      %1342 = vmatprep.subr.mxu0 0.0
      %1343 = vmatpush1.msra.mxu0 0.0
      %1344 = vmatprep.subr.mxu0 0.0
      %1345 = vmatpush1.msra.mxu0 0.0
      %1346 = vmatprep.subr.mxu0 0.0
      %1347 = vmatpush1.msra.mxu0 0.0
      %1348 = vmatprep.subr.mxu0 0.0
      %1349 = vmatpush1.msra.mxu0 0.0
      %1350 = vmatprep.subr.mxu0 0.0
      %1351 = vmatpush1.msra.mxu0 0.0
      %1352 = vmatprep.subr.mxu0 0.0
      %1353 = vmatpush1.msra.mxu0 0.0
      %1354 = vmatprep.subr.mxu0 0.0
      %1355 = vmatpush1.msra.mxu0 0.0
      %1356 = vmatprep.subr.mxu0 0.0
      %1357 = vmatpush1.msra.mxu0 0.0
      %1358 = vmatprep.subr.mxu0 0.0
      %1359 = vmatpush1.msra.mxu0 0.0
      %1360 = vmatprep.subr.mxu0 0.0
      %1361 = vmatpush1.msra.mxu0 0.0
      %1362 = vmatprep.subr.mxu0 0.0
      %1363 = vmatpush1.msra.mxu0 0.0
      %1364 = vmatprep.subr.mxu0 0.0
      %1365 = vmatpush1.msra.mxu0 0.0
      %1366 = vmatprep.subr.mxu0 0.0
      %1367 = vmatpush1.msra.mxu0 0.0
      %1368 = vmatprep.subr.mxu0 0.0
      %1369 = vmatpush1.msra.mxu0 0.0
      %1370 = vmatprep.subr.mxu0 0.0
      %1371 = vmatpush1.msra.mxu0 0.0
      %1372 = vmatprep.subr.mxu0 0.0
      %1373 = vmatpush1.msra.mxu0 0.0
      %1374 = vmatprep.subr.mxu0 0.0
      %1375 = vmatpush1.msra.mxu0 0.0
      %1376 = vmatprep.subr.mxu0 0.0
      %1377 = vmatpush1.msra.mxu0 0.0
      %1378 = vmatprep.subr.mxu0 0.0
      %1379 = vmatpush1.msra.mxu0 0.0
      %1380 = vmatprep.subr.mxu0 0.0
      %1381 = vmatpush1.msra.mxu0 0.0
      %1382 = vmatprep.subr.mxu0 0.0
      %1383 = vmatpush1.msra.mxu0 0.0
      %1384 = vmatprep.subr.mxu0 0.0
      %1385 = vmatpush1.msra.mxu0 0.0
      %1386 = vmatprep.subr.mxu0 0.0
      %1387 = vmatpush1.msra.mxu0 0.0
      %1388 = vmatprep.subr.mxu0 0.0
      %1389 = vmatpush1.msra.mxu0 0.0
      %1390 = vmatprep.subr.mxu0 0.0
      %1391 = vmatpush1.msra.mxu0 0.0
      %1392 = vmatprep.subr.mxu0 0.0
      %1393 = vmatpush1.msra.mxu0 0.0
      %1394 = vmatprep.subr.mxu0 0.0
      %1395 = vmatpush1.msra.mxu0 0.0
      %1396 = vmatprep.subr.mxu0 0.0
      %1397 = vmatpush1.msra.mxu0 0.0
      %1398 = vmatprep.subr.mxu0 0.0
      %1399 = vmatpush1.msra.mxu0 0.0
      %1400 = vmatprep.subr.mxu0 0.0
      %1401 = vmatpush1.msra.mxu0 0.0
      %1402 = vmatprep.mubr.f32.mxu0 0.0
      %1403 = vmatmul.mubr.f32.gmra.mrb[0].mxu0 %v619
      %v1404 = vpop.f32.mrb[0].mxu0
      %v1405 = vadd.f32 0.0, %v1404
      %v1406 = vpop.f32.mrb[0].mxu0
      %1407 = vdwg.mxu0
      %v1408 = vmul.f32 %v1405, %v1405
      %1410 = vrot.lane.b32.xlu0 %v1408, 1
      %v1411 = vpop.permute.xlu0 %1410
      %v1413 = vsub.f32 %v1405, %v1411
      %v1414 = vmax.f32 %v1413, 0.0
      %1416 = vset.pattern.permute.xlu0 0
      %1417 = vperm.xlu0 %1416, %v1405
      %v1418 = vpop.permute.xlu0 %1417
      %v1420 = vsub.f32 %v1327, %v1418
      %v1421 = vsub.f32 %v1328, %v1418
      %v1422 = vadd.f32 %v1414, 1e-05
      %v1423 = vrsqrt.pop %v1422
      %1425 = vset.pattern.permute.xlu0 1
      %1426 = vperm.xlu0 %1425, %v1423
      %v1427 = vpop.permute.xlu0 %1426
      %v1429 = vmul.f32 %v1420, %v1427
      %v1430 = vmul.f32 %v1421, %v1427
      %v1431 = vmul.f32 %v1429, %v716
      %v1432 = vmul.f32 %v1430, %v716
      %v1433 = vadd.f32 %v1431, %v722
      %v1434 = vadd.f32 %v1432, %v722
      %vm1435 = vcmp.ge.f32.partialorder %v1433, 0.0
      %vm1436 = vcmp.ge.f32.partialorder %v1434, 0.0
      %v1437 = vmul.f32 %v1433, 0.01
      %v1438 = vmul.f32 %v1434, 0.01
      %v1439 = vsel %vm1435, %v1433, %v1437
      %v1440 = vsel %vm1436, %v1434, %v1438
      %1441 = vrot.lane.b32.xlu0 %v1439, 17
      %v1442 = vpop.permute.xlu0 %1441
      %1443 = vrot.lane.b32.xlu0 %v1440, 17
      %v1444 = vpop.permute.xlu0 %1443
      %v1445 = vsel %vm287, %v1442, %v1444
      %v1446 = vsel %vm287, %v1444, %v1442
      %v1447 = vmul.f32 %v1446, %v293
      %v1448 = vmul.f32 %v1445, %v297
      %1449 = vrot.lane.b32.xlu0 %v1439, 16
      %v1450 = vpop.permute.xlu0 %1449
      %1451 = vrot.lane.b32.xlu0 %v1440, 16
      %v1452 = vpop.permute.xlu0 %1451
      %v1453 = vsel %vm304, %v1450, %v1452
      %v1454 = vsel %vm304, %v1452, %v1450
      %v1455 = vmul.f32 %v1454, %v310
      %v1456 = vmul.f32 %v1453, %v314
      %1457 = vrot.lane.b32.xlu0 %v1439, 15
      %v1458 = vpop.permute.xlu0 %1457
      %1459 = vrot.lane.b32.xlu0 %v1440, 15
      %v1460 = vpop.permute.xlu0 %1459
      %v1461 = vsel %vm321, %v1458, %v1460
      %v1462 = vsel %vm321, %v1460, %v1458
      %v1463 = vmul.f32 %v1462, %v327
      %v1464 = vmul.f32 %v1461, %v331
      %v1465 = vpack.c.bf16 %v1455, %v1447
      %v1466 = vpack.c.bf16 %v1456, %v1448
      %v1467 = vpack.c.bf16 %v1463, %v1463
      %v1468 = vpack.c.bf16 %v1464, %v1464
      %1469 = vrot.lane.b32.xlu0 %v1439, 1
      %v1470 = vpop.permute.xlu0 %1469
      %1471 = vrot.lane.b32.xlu0 %v1440, 1
      %v1472 = vpop.permute.xlu0 %1471
      %v1473 = vsel %vm349, %v1470, %v1472
      %v1474 = vsel %vm349, %v1472, %v1470
      %v1475 = vmul.f32 %v1474, %v355
      %v1476 = vmul.f32 %v1473, %v359
      %1477 = vrot.lane.b32.xlu0 %v1439, 127
      %v1478 = vpop.permute.xlu0 %1477
      %1479 = vrot.lane.b32.xlu0 %v1440, 127
      %v1480 = vpop.permute.xlu0 %1479
      %v1481 = vsel %vm366, %v1478, %v1480
      %v1482 = vsel %vm366, %v1480, %v1478
      %v1483 = vmul.f32 %v1481, %v372
      %v1484 = vmul.f32 %v1482, %v376
      %v1485 = vpack.c.bf16 %v1439, %v1475
      %v1486 = vpack.c.bf16 %v1440, %v1476
      %v1487 = vpack.c.bf16 %v1483, %v1483
      %v1488 = vpack.c.bf16 %v1484, %v1484
      %v1490 = vsel %vm340, %v1487, 0
      %v1493 = vsel %vm340, %v1488, 0
      %1495 = vmatprep.subr.bf16.mxu0 %v1486
      %1496 = vmatpush1.bf16.msra.mxu0 %v1485
      %1497 = vmatprep.subr.bf16.mxu0 %v1493
      %1498 = vmatpush1.bf16.msra.mxu0 %v1490
      %1499 = vmatprep.subr.bf16.mxu0 0
      %1500 = vmatpush1.bf16.msra.mxu0 0
      %1501 = vmatprep.subr.bf16.mxu0 0
      %1502 = vmatpush1.bf16.msra.mxu0 0
      %1503 = vmatprep.subr.bf16.mxu0 0
      %1504 = vmatpush1.bf16.msra.mxu0 0
      %1505 = vmatprep.subr.bf16.mxu0 0
      %1506 = vmatpush1.bf16.msra.mxu0 0
      %1507 = vmatprep.subr.bf16.mxu0 0
      %1508 = vmatpush1.bf16.msra.mxu0 0
      %1509 = vmatprep.subr.bf16.mxu0 0
      %1510 = vmatpush1.bf16.msra.mxu0 0
      %1511 = vmatprep.subr.bf16.mxu0 0
      %1512 = vmatpush1.bf16.msra.mxu0 0
      %1513 = vmatprep.subr.bf16.mxu0 0
      %1514 = vmatpush1.bf16.msra.mxu0 0
      %1515 = vmatprep.subr.bf16.mxu0 0
      %1516 = vmatpush1.bf16.msra.mxu0 0
      %1517 = vmatprep.subr.bf16.mxu0 0
      %1518 = vmatpush1.bf16.msra.mxu0 0
      %1519 = vmatprep.subr.bf16.mxu0 0
      %1520 = vmatpush1.bf16.msra.mxu0 0
      %1521 = vmatprep.subr.bf16.mxu0 0
      %1522 = vmatpush1.bf16.msra.mxu0 0
      %1523 = vmatprep.subr.bf16.mxu0 0
      %1524 = vmatpush1.bf16.msra.mxu0 0
      %1525 = vmatprep.subr.bf16.mxu0 0
      %1526 = vmatpush1.bf16.msra.mxu0 0
      %1527 = vmatprep.mubr.bf16.mxu0 0
      %1528 = vmatmul.mubr.bf16.gmra.mrb[0].mxu0 %v782
      %v1529 = vpop.f32.mrb[0].mxu0
      %v1530 = vadd.f32 0.0, %v1529
      %v1531 = vpop.f32.mrb[0].mxu0
      %v1532 = vadd.f32 0.0, %v1531
      %v1533 = vpop.f32.mrb[0].mxu0
      %v1534 = vpop.f32.mrb[0].mxu0
      %1535 = vdwg.mxu0
      %v1537 = vsel %vm340, %v1467, 0
      %v1540 = vsel %vm340, %v1468, 0
      %1542 = vmatprep.subr.bf16.mxu0 %v1466
      %1543 = vmatpush1.bf16.msra.mxu0 %v1465
      %1544 = vmatprep.subr.bf16.mxu0 %v1540
      %1545 = vmatpush1.bf16.msra.mxu0 %v1537
      %1546 = vmatprep.subr.bf16.mxu0 0
      %1547 = vmatpush1.bf16.msra.mxu0 0
      %1548 = vmatprep.subr.bf16.mxu0 0
      %1549 = vmatpush1.bf16.msra.mxu0 0
      %1550 = vmatprep.subr.bf16.mxu0 0
      %1551 = vmatpush1.bf16.msra.mxu0 0
      %1552 = vmatprep.subr.bf16.mxu0 0
      %1553 = vmatpush1.bf16.msra.mxu0 0
      %1554 = vmatprep.subr.bf16.mxu0 0
      %1555 = vmatpush1.bf16.msra.mxu0 0
      %1556 = vmatprep.subr.bf16.mxu0 0
      %1557 = vmatpush1.bf16.msra.mxu0 0
      %1558 = vmatprep.subr.bf16.mxu0 0
      %1559 = vmatpush1.bf16.msra.mxu0 0
      %1560 = vmatprep.subr.bf16.mxu0 0
      %1561 = vmatpush1.bf16.msra.mxu0 0
      %1562 = vmatprep.subr.bf16.mxu0 0
      %1563 = vmatpush1.bf16.msra.mxu0 0
      %1564 = vmatprep.subr.bf16.mxu0 0
      %1565 = vmatpush1.bf16.msra.mxu0 0
      %1566 = vmatprep.subr.bf16.mxu0 0
      %1567 = vmatpush1.bf16.msra.mxu0 0
      %1568 = vmatprep.subr.bf16.mxu0 0
      %1569 = vmatpush1.bf16.msra.mxu0 0
      %1570 = vmatprep.subr.bf16.mxu0 0
      %1571 = vmatpush1.bf16.msra.mxu0 0
      %1572 = vmatprep.subr.bf16.mxu0 0
      %1573 = vmatpush1.bf16.msra.mxu0 0
      %1574 = vmatprep.mubr.bf16.mxu0 0
      %1575 = vmatmul.mubr.bf16.gmra.mrb[0].mxu0 %v832
      %v1576 = vpop.f32.mrb[0].mxu0
      %v1577 = vadd.f32 %v1530, %v1576
      %v1578 = vpop.f32.mrb[0].mxu0
      %v1579 = vadd.f32 %v1532, %v1578
      %v1580 = vpop.f32.mrb[0].mxu0
      %v1581 = vpop.f32.mrb[0].mxu0
      %1582 = vdwg.mxu0
      %1583 = vrot.lane.b32.xlu0 %v1439, 113
      %v1584 = vpop.permute.xlu0 %1583
      %1585 = vrot.lane.b32.xlu0 %v1440, 113
      %v1586 = vpop.permute.xlu0 %1585
      %v1587 = vsel %vm491, %v1584, %v1586
      %v1588 = vsel %vm491, %v1586, %v1584
      %v1589 = vmul.f32 %v1587, %v497
      %v1590 = vmul.f32 %v1588, %v501
      %1591 = vrot.lane.b32.xlu0 %v1439, 112
      %v1592 = vpop.permute.xlu0 %1591
      %1593 = vrot.lane.b32.xlu0 %v1440, 112
      %v1594 = vpop.permute.xlu0 %1593
      %v1595 = vsel %vm508, %v1592, %v1594
      %v1596 = vsel %vm508, %v1594, %v1592
      %v1597 = vmul.f32 %v1595, %v514
      %v1598 = vmul.f32 %v1596, %v518
      %1599 = vrot.lane.b32.xlu0 %v1439, 111
      %v1600 = vpop.permute.xlu0 %1599
      %1601 = vrot.lane.b32.xlu0 %v1440, 111
      %v1602 = vpop.permute.xlu0 %1601
      %v1603 = vsel %vm525, %v1600, %v1602
      %v1604 = vsel %vm525, %v1602, %v1600
      %v1605 = vmul.f32 %v1603, %v531
      %v1606 = vmul.f32 %v1604, %v535
      %v1607 = vpack.c.bf16 %v1597, %v1589
      %v1608 = vpack.c.bf16 %v1598, %v1590
      %v1609 = vpack.c.bf16 %v1605, %v1605
      %v1610 = vpack.c.bf16 %v1606, %v1606
      %v1612 = vsel %vm340, %v1609, 0
      %v1615 = vsel %vm340, %v1610, 0
      %1617 = vmatprep.subr.bf16.mxu0 %v1608
      %1618 = vmatpush1.bf16.msra.mxu0 %v1607
      %1619 = vmatprep.subr.bf16.mxu0 %v1615
      %1620 = vmatpush1.bf16.msra.mxu0 %v1612
      %1621 = vmatprep.subr.bf16.mxu0 0
      %1622 = vmatpush1.bf16.msra.mxu0 0
      %1623 = vmatprep.subr.bf16.mxu0 0
      %1624 = vmatpush1.bf16.msra.mxu0 0
      %1625 = vmatprep.subr.bf16.mxu0 0
      %1626 = vmatpush1.bf16.msra.mxu0 0
      %1627 = vmatprep.subr.bf16.mxu0 0
      %1628 = vmatpush1.bf16.msra.mxu0 0
      %1629 = vmatprep.subr.bf16.mxu0 0
      %1630 = vmatpush1.bf16.msra.mxu0 0
      %1631 = vmatprep.subr.bf16.mxu0 0
      %1632 = vmatpush1.bf16.msra.mxu0 0
      %1633 = vmatprep.subr.bf16.mxu0 0
      %1634 = vmatpush1.bf16.msra.mxu0 0
      %1635 = vmatprep.subr.bf16.mxu0 0
      %1636 = vmatpush1.bf16.msra.mxu0 0
      %1637 = vmatprep.subr.bf16.mxu0 0
      %1638 = vmatpush1.bf16.msra.mxu0 0
      %1639 = vmatprep.subr.bf16.mxu0 0
      %1640 = vmatpush1.bf16.msra.mxu0 0
      %1641 = vmatprep.subr.bf16.mxu0 0
      %1642 = vmatpush1.bf16.msra.mxu0 0
      %1643 = vmatprep.subr.bf16.mxu0 0
      %1644 = vmatpush1.bf16.msra.mxu0 0
      %1645 = vmatprep.subr.bf16.mxu0 0
      %1646 = vmatpush1.bf16.msra.mxu0 0
      %1647 = vmatprep.subr.bf16.mxu0 0
      %1648 = vmatpush1.bf16.msra.mxu0 0
      %1649 = vmatprep.mubr.bf16.mxu0 0
      %1650 = vmatmul.mubr.bf16.gmra.mrb[0].mxu0 %v910
      %v1651 = vpop.f32.mrb[0].mxu0
      %v1652 = vadd.f32 0.0, %v1651
      %v1653 = vpop.f32.mrb[0].mxu0
      %v1654 = vadd.f32 0.0, %v1653
      %v1655 = vpop.f32.mrb[0].mxu0
      %v1656 = vpop.f32.mrb[0].mxu0
      %1657 = vdwg.mxu0
      %v1658 = vadd.f32 %v1577, %v1652
      %v1659 = vadd.f32 %v1579, %v1654
      %v1660 = vadd.f32 %v1658, %v963
      %v1661 = vadd.f32 %v1659, %v963
      %v1662 = vadd.f32 %v1660, %v1661
      %1663 = vadd.xlane.f32.xlu0 %v1662
      %v1664 = vpop.xlane.xlu0 %1663
      %v1665 = vmul.f32 %v1660, %v1660
      %v1666 = vmul.f32 %v1661, %v1661
      %v1667 = vadd.f32 %v1665, %v1666
      %1668 = vadd.xlane.f32.xlu0 %v1667
      %v1669 = vpop.xlane.xlu0 %1668
      %v1670 = vsel %vm615, %v1664, %v1669
      %1671 = vmatprep.subr.mxu0 0.0
      %1672 = vmatpush1.msra.mxu0 %v1670
      %1673 = vmatprep.subr.mxu0 0.0
      %1674 = vmatpush1.msra.mxu0 0.0
      %1675 = vmatprep.subr.mxu0 0.0
      %1676 = vmatpush1.msra.mxu0 0.0
      %1677 = vmatprep.subr.mxu0 0.0
      %1678 = vmatpush1.msra.mxu0 0.0
      %1679 = vmatprep.subr.mxu0 0.0
      %1680 = vmatpush1.msra.mxu0 0.0
      %1681 = vmatprep.subr.mxu0 0.0
      %1682 = vmatpush1.msra.mxu0 0.0
      %1683 = vmatprep.subr.mxu0 0.0
      %1684 = vmatpush1.msra.mxu0 0.0
      %1685 = vmatprep.subr.mxu0 0.0
      %1686 = vmatpush1.msra.mxu0 0.0
      %1687 = vmatprep.subr.mxu0 0.0
      %1688 = vmatpush1.msra.mxu0 0.0
      %1689 = vmatprep.subr.mxu0 0.0
      %1690 = vmatpush1.msra.mxu0 0.0
      %1691 = vmatprep.subr.mxu0 0.0
      %1692 = vmatpush1.msra.mxu0 0.0
      %1693 = vmatprep.subr.mxu0 0.0
      %1694 = vmatpush1.msra.mxu0 0.0
      %1695 = vmatprep.subr.mxu0 0.0
      %1696 = vmatpush1.msra.mxu0 0.0
      %1697 = vmatprep.subr.mxu0 0.0
      %1698 = vmatpush1.msra.mxu0 0.0
      %1699 = vmatprep.subr.mxu0 0.0
      %1700 = vmatpush1.msra.mxu0 0.0
      %1701 = vmatprep.subr.mxu0 0.0
      %1702 = vmatpush1.msra.mxu0 0.0
      %1703 = vmatprep.subr.mxu0 0.0
      %1704 = vmatpush1.msra.mxu0 0.0
      %1705 = vmatprep.subr.mxu0 0.0
      %1706 = vmatpush1.msra.mxu0 0.0
      %1707 = vmatprep.subr.mxu0 0.0
      %1708 = vmatpush1.msra.mxu0 0.0
      %1709 = vmatprep.subr.mxu0 0.0
      %1710 = vmatpush1.msra.mxu0 0.0
      %1711 = vmatprep.subr.mxu0 0.0
      %1712 = vmatpush1.msra.mxu0 0.0
      %1713 = vmatprep.subr.mxu0 0.0
      %1714 = vmatpush1.msra.mxu0 0.0
      %1715 = vmatprep.subr.mxu0 0.0
      %1716 = vmatpush1.msra.mxu0 0.0
      %1717 = vmatprep.subr.mxu0 0.0
      %1718 = vmatpush1.msra.mxu0 0.0
      %1719 = vmatprep.subr.mxu0 0.0
      %1720 = vmatpush1.msra.mxu0 0.0
      %1721 = vmatprep.subr.mxu0 0.0
      %1722 = vmatpush1.msra.mxu0 0.0
      %1723 = vmatprep.subr.mxu0 0.0
      %1724 = vmatpush1.msra.mxu0 0.0
      %1725 = vmatprep.subr.mxu0 0.0
      %1726 = vmatpush1.msra.mxu0 0.0
      %1727 = vmatprep.subr.mxu0 0.0
      %1728 = vmatpush1.msra.mxu0 0.0
      %1729 = vmatprep.subr.mxu0 0.0
      %1730 = vmatpush1.msra.mxu0 0.0
      %1731 = vmatprep.subr.mxu0 0.0
      %1732 = vmatpush1.msra.mxu0 0.0
      %1733 = vmatprep.subr.mxu0 0.0
      %1734 = vmatpush1.msra.mxu0 0.0
      %1735 = vmatprep.mubr.f32.mxu0 0.0
      %1736 = vmatmul.mubr.f32.gmra.mrb[0].mxu0 %v619
      %v1737 = vpop.f32.mrb[0].mxu0
      %v1738 = vadd.f32 0.0, %v1737
      %v1739 = vpop.f32.mrb[0].mxu0
      %1740 = vdwg.mxu0
      %v1741 = vmul.f32 %v1738, %v1738
      %1743 = vrot.lane.b32.xlu0 %v1741, 1
      %v1744 = vpop.permute.xlu0 %1743
      %v1746 = vsub.f32 %v1738, %v1744
      %v1747 = vmax.f32 %v1746, 0.0
      %1749 = vset.pattern.permute.xlu0 0
      %1750 = vperm.xlu0 %1749, %v1738
      %v1751 = vpop.permute.xlu0 %1750
      %v1753 = vsub.f32 %v1660, %v1751
      %v1754 = vsub.f32 %v1661, %v1751
      %v1755 = vadd.f32 %v1747, 1e-05
      %v1756 = vrsqrt.pop %v1755
      %1758 = vset.pattern.permute.xlu0 1
      %1759 = vperm.xlu0 %1758, %v1756
      %v1760 = vpop.permute.xlu0 %1759
      %v1762 = vmul.f32 %v1753, %v1760
      %v1763 = vmul.f32 %v1754, %v1760
      %v1764 = vmul.f32 %v1762, %v1071
      %v1765 = vmul.f32 %v1763, %v1071
      %v1766 = vadd.f32 %v1764, %v1077
      %v1767 = vadd.f32 %v1765, %v1077
      %vm1768 = vcmp.ge.f32.partialorder %v1766, 0.0
      %vm1769 = vcmp.ge.f32.partialorder %v1767, 0.0
      %v1770 = vmul.f32 %v1766, 0.01
      %v1771 = vmul.f32 %v1767, 0.01
      %v1772 = vsel %vm1768, %v1766, %v1770
      %v1773 = vsel %vm1769, %v1767, %v1771
      %s1774 = scalar_lea.vmem %s258, 16
      %1775 = vst [vmem:[%s1774] sm:$0xff] %v1772
      %1776 = vst [vmem:[%s1774 + $0x8] sm:$0xff] %v1773
      %s1777 = scalar_lea.vmem %s251, 16
      %v1778 = vld [vmem:[%s1777] sm:$0xff]
      %v1780 = vcombine.high %v1778, %v1778
      %1782 = vrot.lane.b32.xlu0 %v1778, 17
      %v1783 = vpop.permute.xlu0 %1782
      %1784 = vrot.lane.b32.xlu0 %v1780, 17
      %v1785 = vpop.permute.xlu0 %1784
      %v1786 = vsel %vm287, %v1783, %v1785
      %v1787 = vsel %vm287, %v1785, %v1783
      %v1788 = vmul.f32 %v1787, %v293
      %v1789 = vmul.f32 %v1786, %v297
      %1790 = vrot.lane.b32.xlu0 %v1778, 16
      %v1791 = vpop.permute.xlu0 %1790
      %1792 = vrot.lane.b32.xlu0 %v1780, 16
      %v1793 = vpop.permute.xlu0 %1792
      %v1794 = vsel %vm304, %v1791, %v1793
      %v1795 = vsel %vm304, %v1793, %v1791
      %v1796 = vmul.f32 %v1795, %v310
      %v1797 = vmul.f32 %v1794, %v314
      %1798 = vrot.lane.b32.xlu0 %v1778, 15
      %v1799 = vpop.permute.xlu0 %1798
      %1800 = vrot.lane.b32.xlu0 %v1780, 15
      %v1801 = vpop.permute.xlu0 %1800
      %v1802 = vsel %vm321, %v1799, %v1801
      %v1803 = vsel %vm321, %v1801, %v1799
      %v1804 = vmul.f32 %v1803, %v327
      %v1805 = vmul.f32 %v1802, %v331
      %v1808 = vrot.slane %v1796, 4
      %v1809 = vrot.slane %v1797, 4
      %v1812 = vsel %vm340, %v1788, %v1808
      %v1813 = vsel %vm340, %v1789, %v1809
      %v1814 = vpack.c.bf16 %v1804, %v1812
      %v1815 = vpack.c.bf16 %v1805, %v1813
      %1816 = vrot.lane.b32.xlu0 %v1778, 1
      %v1817 = vpop.permute.xlu0 %1816
      %1818 = vrot.lane.b32.xlu0 %v1780, 1
      %v1819 = vpop.permute.xlu0 %1818
      %v1820 = vsel %vm349, %v1817, %v1819
      %v1821 = vsel %vm349, %v1819, %v1817
      %v1822 = vmul.f32 %v1821, %v355
      %v1823 = vmul.f32 %v1820, %v359
      %1824 = vrot.lane.b32.xlu0 %v1778, 127
      %v1825 = vpop.permute.xlu0 %1824
      %1826 = vrot.lane.b32.xlu0 %v1780, 127
      %v1827 = vpop.permute.xlu0 %1826
      %v1828 = vsel %vm366, %v1825, %v1827
      %v1829 = vsel %vm366, %v1827, %v1825
      %v1830 = vmul.f32 %v1828, %v372
      %v1831 = vmul.f32 %v1829, %v376
      %v1832 = vcombine.low %v1778, %v1778
      %v1834 = vsel %vm340, %v1822, %v1832
      %v1835 = vsel %vm340, %v1823, %v1778
      %v1836 = vpack.c.bf16 %v1830, %v1834
      %v1837 = vpack.c.bf16 %v1831, %v1835
      %v1839 = vsel %vm389, %v1836, 0
      %v1842 = vsel %vm389, %v1837, 0
      %1844 = vmatprep.subr.bf16.mxu0 %v1842
      %1845 = vmatpush1.bf16.msra.mxu0 %v1839
      %1846 = vmatprep.subr.bf16.mxu0 0
      %1847 = vmatpush1.bf16.msra.mxu0 0
      %1848 = vmatprep.subr.bf16.mxu0 0
      %1849 = vmatpush1.bf16.msra.mxu0 0
      %1850 = vmatprep.subr.bf16.mxu0 0
      %1851 = vmatpush1.bf16.msra.mxu0 0
      %1852 = vmatprep.subr.bf16.mxu0 0
      %1853 = vmatpush1.bf16.msra.mxu0 0
      %1854 = vmatprep.subr.bf16.mxu0 0
      %1855 = vmatpush1.bf16.msra.mxu0 0
      %1856 = vmatprep.subr.bf16.mxu0 0
      %1857 = vmatpush1.bf16.msra.mxu0 0
      %1858 = vmatprep.subr.bf16.mxu0 0
      %1859 = vmatpush1.bf16.msra.mxu0 0
      %1860 = vmatprep.subr.bf16.mxu0 0
      %1861 = vmatpush1.bf16.msra.mxu0 0
      %1862 = vmatprep.subr.bf16.mxu0 0
      %1863 = vmatpush1.bf16.msra.mxu0 0
      %1864 = vmatprep.subr.bf16.mxu0 0
      %1865 = vmatpush1.bf16.msra.mxu0 0
      %1866 = vmatprep.subr.bf16.mxu0 0
      %1867 = vmatpush1.bf16.msra.mxu0 0
      %1868 = vmatprep.subr.bf16.mxu0 0
      %1869 = vmatpush1.bf16.msra.mxu0 0
      %1870 = vmatprep.subr.bf16.mxu0 0
      %1871 = vmatpush1.bf16.msra.mxu0 0
      %1872 = vmatprep.subr.bf16.mxu0 0
      %1873 = vmatpush1.bf16.msra.mxu0 0
      %1874 = vmatprep.subr.bf16.mxu0 0
      %1875 = vmatpush1.bf16.msra.mxu0 0
      %1876 = vmatprep.mubr.bf16.mxu0 0
      %1877 = vmatmul.mubr.bf16.gmra.mrb[0].mxu0 %v387
      %v1878 = vpop.f32.mrb[0].mxu0
      %v1879 = vadd.f32 0.0, %v1878
      %v1880 = vpop.f32.mrb[0].mxu0
      %v1881 = vadd.f32 0.0, %v1880
      %v1882 = vpop.f32.mrb[0].mxu0
      %v1883 = vpop.f32.mrb[0].mxu0
      %1884 = vdwg.mxu0
      %v1886 = vsel %vm389, %v1814, 0
      %v1889 = vsel %vm389, %v1815, 0
      %1891 = vmatprep.subr.bf16.mxu0 %v1889
      %1892 = vmatpush1.bf16.msra.mxu0 %v1886
      %1893 = vmatprep.subr.bf16.mxu0 0
      %1894 = vmatpush1.bf16.msra.mxu0 0
      %1895 = vmatprep.subr.bf16.mxu0 0
      %1896 = vmatpush1.bf16.msra.mxu0 0
      %1897 = vmatprep.subr.bf16.mxu0 0
      %1898 = vmatpush1.bf16.msra.mxu0 0
      %1899 = vmatprep.subr.bf16.mxu0 0
      %1900 = vmatpush1.bf16.msra.mxu0 0
      %1901 = vmatprep.subr.bf16.mxu0 0
      %1902 = vmatpush1.bf16.msra.mxu0 0
      %1903 = vmatprep.subr.bf16.mxu0 0
      %1904 = vmatpush1.bf16.msra.mxu0 0
      %1905 = vmatprep.subr.bf16.mxu0 0
      %1906 = vmatpush1.bf16.msra.mxu0 0
      %1907 = vmatprep.subr.bf16.mxu0 0
      %1908 = vmatpush1.bf16.msra.mxu0 0
      %1909 = vmatprep.subr.bf16.mxu0 0
      %1910 = vmatpush1.bf16.msra.mxu0 0
      %1911 = vmatprep.subr.bf16.mxu0 0
      %1912 = vmatpush1.bf16.msra.mxu0 0
      %1913 = vmatprep.subr.bf16.mxu0 0
      %1914 = vmatpush1.bf16.msra.mxu0 0
      %1915 = vmatprep.subr.bf16.mxu0 0
      %1916 = vmatpush1.bf16.msra.mxu0 0
      %1917 = vmatprep.subr.bf16.mxu0 0
      %1918 = vmatpush1.bf16.msra.mxu0 0
      %1919 = vmatprep.subr.bf16.mxu0 0
      %1920 = vmatpush1.bf16.msra.mxu0 0
      %1921 = vmatprep.subr.bf16.mxu0 0
      %1922 = vmatpush1.bf16.msra.mxu0 0
      %1923 = vmatprep.mubr.bf16.mxu0 0
      %1924 = vmatmul.mubr.bf16.gmra.mrb[0].mxu0 %v438
      %v1925 = vpop.f32.mrb[0].mxu0
      %v1926 = vadd.f32 %v1879, %v1925
      %v1927 = vpop.f32.mrb[0].mxu0
      %v1928 = vadd.f32 %v1881, %v1927
      %v1929 = vpop.f32.mrb[0].mxu0
      %v1930 = vpop.f32.mrb[0].mxu0
      %1931 = vdwg.mxu0
      %1932 = vrot.lane.b32.xlu0 %v1778, 113
      %v1933 = vpop.permute.xlu0 %1932
      %1934 = vrot.lane.b32.xlu0 %v1780, 113
      %v1935 = vpop.permute.xlu0 %1934
      %v1936 = vsel %vm491, %v1933, %v1935
      %v1937 = vsel %vm491, %v1935, %v1933
      %v1938 = vmul.f32 %v1936, %v497
      %v1939 = vmul.f32 %v1937, %v501
      %1940 = vrot.lane.b32.xlu0 %v1778, 112
      %v1941 = vpop.permute.xlu0 %1940
      %1942 = vrot.lane.b32.xlu0 %v1780, 112
      %v1943 = vpop.permute.xlu0 %1942
      %v1944 = vsel %vm508, %v1941, %v1943
      %v1945 = vsel %vm508, %v1943, %v1941
      %v1946 = vmul.f32 %v1944, %v514
      %v1947 = vmul.f32 %v1945, %v518
      %1948 = vrot.lane.b32.xlu0 %v1778, 111
      %v1949 = vpop.permute.xlu0 %1948
      %1950 = vrot.lane.b32.xlu0 %v1780, 111
      %v1951 = vpop.permute.xlu0 %1950
      %v1952 = vsel %vm525, %v1949, %v1951
      %v1953 = vsel %vm525, %v1951, %v1949
      %v1954 = vmul.f32 %v1952, %v531
      %v1955 = vmul.f32 %v1953, %v535
      %v1958 = vrot.slane %v1946, 4
      %v1959 = vrot.slane %v1947, 4
      %v1962 = vsel %vm340, %v1938, %v1958
      %v1963 = vsel %vm340, %v1939, %v1959
      %v1964 = vpack.c.bf16 %v1954, %v1962
      %v1965 = vpack.c.bf16 %v1955, %v1963
      %v1967 = vsel %vm389, %v1964, 0
      %v1970 = vsel %vm389, %v1965, 0
      %1972 = vmatprep.subr.bf16.mxu0 %v1970
      %1973 = vmatpush1.bf16.msra.mxu0 %v1967
      %1974 = vmatprep.subr.bf16.mxu0 0
      %1975 = vmatpush1.bf16.msra.mxu0 0
      %1976 = vmatprep.subr.bf16.mxu0 0
      %1977 = vmatpush1.bf16.msra.mxu0 0
      %1978 = vmatprep.subr.bf16.mxu0 0
      %1979 = vmatpush1.bf16.msra.mxu0 0
      %1980 = vmatprep.subr.bf16.mxu0 0
      %1981 = vmatpush1.bf16.msra.mxu0 0
      %1982 = vmatprep.subr.bf16.mxu0 0
      %1983 = vmatpush1.bf16.msra.mxu0 0
      %1984 = vmatprep.subr.bf16.mxu0 0
      %1985 = vmatpush1.bf16.msra.mxu0 0
      %1986 = vmatprep.subr.bf16.mxu0 0
      %1987 = vmatpush1.bf16.msra.mxu0 0
      %1988 = vmatprep.subr.bf16.mxu0 0
      %1989 = vmatpush1.bf16.msra.mxu0 0
      %1990 = vmatprep.subr.bf16.mxu0 0
      %1991 = vmatpush1.bf16.msra.mxu0 0
      %1992 = vmatprep.subr.bf16.mxu0 0
      %1993 = vmatpush1.bf16.msra.mxu0 0
      %1994 = vmatprep.subr.bf16.mxu0 0
      %1995 = vmatpush1.bf16.msra.mxu0 0
      %1996 = vmatprep.subr.bf16.mxu0 0
      %1997 = vmatpush1.bf16.msra.mxu0 0
      %1998 = vmatprep.subr.bf16.mxu0 0
      %1999 = vmatpush1.bf16.msra.mxu0 0
      %2000 = vmatprep.subr.bf16.mxu0 0
      %2001 = vmatpush1.bf16.msra.mxu0 0
      %2002 = vmatprep.subr.bf16.mxu0 0
      %2003 = vmatpush1.bf16.msra.mxu0 0
      %2004 = vmatprep.mubr.bf16.mxu0 0
      %2005 = vmatmul.mubr.bf16.gmra.mrb[0].mxu0 %v549
      %v2006 = vpop.f32.mrb[0].mxu0
      %v2007 = vadd.f32 0.0, %v2006
      %v2008 = vpop.f32.mrb[0].mxu0
      %v2009 = vadd.f32 0.0, %v2008
      %v2010 = vpop.f32.mrb[0].mxu0
      %v2011 = vpop.f32.mrb[0].mxu0
      %2012 = vdwg.mxu0
      %v2013 = vadd.f32 %v1926, %v2007
      %v2014 = vadd.f32 %v1928, %v2009
      %v2015 = vadd.f32 %v2013, %v603
      %v2016 = vadd.f32 %v2014, %v603
      %v2017 = vadd.f32 %v2015, %v2016
      %2018 = vadd.xlane.f32.xlu0 %v2017
      %v2019 = vpop.xlane.xlu0 %2018
      %v2020 = vmul.f32 %v2015, %v2015
      %v2021 = vmul.f32 %v2016, %v2016
      %v2022 = vadd.f32 %v2020, %v2021
      %2023 = vadd.xlane.f32.xlu0 %v2022
      %v2024 = vpop.xlane.xlu0 %2023
      %v2025 = vsel %vm615, %v2019, %v2024
      %2026 = vmatprep.subr.mxu0 0.0
      %2027 = vmatpush1.msra.mxu0 %v2025
      %2028 = vmatprep.subr.mxu0 0.0
      %2029 = vmatpush1.msra.mxu0 0.0
      %2030 = vmatprep.subr.mxu0 0.0
      %2031 = vmatpush1.msra.mxu0 0.0
      %2032 = vmatprep.subr.mxu0 0.0
      %2033 = vmatpush1.msra.mxu0 0.0
      %2034 = vmatprep.subr.mxu0 0.0
      %2035 = vmatpush1.msra.mxu0 0.0
      %2036 = vmatprep.subr.mxu0 0.0
      %2037 = vmatpush1.msra.mxu0 0.0
      %2038 = vmatprep.subr.mxu0 0.0
      %2039 = vmatpush1.msra.mxu0 0.0
      %2040 = vmatprep.subr.mxu0 0.0
      %2041 = vmatpush1.msra.mxu0 0.0
      %2042 = vmatprep.subr.mxu0 0.0
      %2043 = vmatpush1.msra.mxu0 0.0
      %2044 = vmatprep.subr.mxu0 0.0
      %2045 = vmatpush1.msra.mxu0 0.0
      %2046 = vmatprep.subr.mxu0 0.0
      %2047 = vmatpush1.msra.mxu0 0.0
      %2048 = vmatprep.subr.mxu0 0.0
      %2049 = vmatpush1.msra.mxu0 0.0
      %2050 = vmatprep.subr.mxu0 0.0
      %2051 = vmatpush1.msra.mxu0 0.0
      %2052 = vmatprep.subr.mxu0 0.0
      %2053 = vmatpush1.msra.mxu0 0.0
      %2054 = vmatprep.subr.mxu0 0.0
      %2055 = vmatpush1.msra.mxu0 0.0
      %2056 = vmatprep.subr.mxu0 0.0
      %2057 = vmatpush1.msra.mxu0 0.0
      %2058 = vmatprep.subr.mxu0 0.0
      %2059 = vmatpush1.msra.mxu0 0.0
      %2060 = vmatprep.subr.mxu0 0.0
      %2061 = vmatpush1.msra.mxu0 0.0
      %2062 = vmatprep.subr.mxu0 0.0
      %2063 = vmatpush1.msra.mxu0 0.0
      %2064 = vmatprep.subr.mxu0 0.0
      %2065 = vmatpush1.msra.mxu0 0.0
      %2066 = vmatprep.subr.mxu0 0.0
      %2067 = vmatpush1.msra.mxu0 0.0
      %2068 = vmatprep.subr.mxu0 0.0
      %2069 = vmatpush1.msra.mxu0 0.0
      %2070 = vmatprep.subr.mxu0 0.0
      %2071 = vmatpush1.msra.mxu0 0.0
      %2072 = vmatprep.subr.mxu0 0.0
      %2073 = vmatpush1.msra.mxu0 0.0
      %2074 = vmatprep.subr.mxu0 0.0
      %2075 = vmatpush1.msra.mxu0 0.0
      %2076 = vmatprep.subr.mxu0 0.0
      %2077 = vmatpush1.msra.mxu0 0.0
      %2078 = vmatprep.subr.mxu0 0.0
      %2079 = vmatpush1.msra.mxu0 0.0
      %2080 = vmatprep.subr.mxu0 0.0
      %2081 = vmatpush1.msra.mxu0 0.0
      %2082 = vmatprep.subr.mxu0 0.0
      %2083 = vmatpush1.msra.mxu0 0.0
      %2084 = vmatprep.subr.mxu0 0.0
      %2085 = vmatpush1.msra.mxu0 0.0
      %2086 = vmatprep.subr.mxu0 0.0
      %2087 = vmatpush1.msra.mxu0 0.0
      %2088 = vmatprep.subr.mxu0 0.0
      %2089 = vmatpush1.msra.mxu0 0.0
      %2090 = vmatprep.mubr.f32.mxu0 0.0
      %2091 = vmatmul.mubr.f32.gmra.mrb[0].mxu0 %v619
      %v2092 = vpop.f32.mrb[0].mxu0
      %v2093 = vadd.f32 0.0, %v2092
      %v2094 = vpop.f32.mrb[0].mxu0
      %2095 = vdwg.mxu0
      %v2096 = vmul.f32 %v2093, %v2093
      %2098 = vrot.lane.b32.xlu0 %v2096, 1
      %v2099 = vpop.permute.xlu0 %2098
      %v2101 = vsub.f32 %v2093, %v2099
      %v2102 = vmax.f32 %v2101, 0.0
      %2104 = vset.pattern.permute.xlu0 0
      %2105 = vperm.xlu0 %2104, %v2093
      %v2106 = vpop.permute.xlu0 %2105
      %v2108 = vsub.f32 %v2015, %v2106
      %v2109 = vsub.f32 %v2016, %v2106
      %v2110 = vadd.f32 %v2102, 1e-05
      %v2111 = vrsqrt.pop %v2110
      %2113 = vset.pattern.permute.xlu0 1
      %2114 = vperm.xlu0 %2113, %v2111
      %v2115 = vpop.permute.xlu0 %2114
      %v2117 = vmul.f32 %v2108, %v2115
      %v2118 = vmul.f32 %v2109, %v2115
      %v2119 = vmul.f32 %v2117, %v716
      %v2120 = vmul.f32 %v2118, %v716
      %v2121 = vadd.f32 %v2119, %v722
      %v2122 = vadd.f32 %v2120, %v722
      %vm2123 = vcmp.ge.f32.partialorder %v2121, 0.0
      %vm2124 = vcmp.ge.f32.partialorder %v2122, 0.0
      %v2125 = vmul.f32 %v2121, 0.01
      %v2126 = vmul.f32 %v2122, 0.01
      %v2127 = vsel %vm2123, %v2121, %v2125
      %v2128 = vsel %vm2124, %v2122, %v2126
      %2129 = vrot.lane.b32.xlu0 %v2127, 17
      %v2130 = vpop.permute.xlu0 %2129
      %2131 = vrot.lane.b32.xlu0 %v2128, 17
      %v2132 = vpop.permute.xlu0 %2131
      %v2133 = vsel %vm287, %v2130, %v2132
      %v2134 = vsel %vm287, %v2132, %v2130
      %v2135 = vmul.f32 %v2134, %v293
      %v2136 = vmul.f32 %v2133, %v297
      %2137 = vrot.lane.b32.xlu0 %v2127, 16
      %v2138 = vpop.permute.xlu0 %2137
      %2139 = vrot.lane.b32.xlu0 %v2128, 16
      %v2140 = vpop.permute.xlu0 %2139
      %v2141 = vsel %vm304, %v2138, %v2140
      %v2142 = vsel %vm304, %v2140, %v2138
      %v2143 = vmul.f32 %v2142, %v310
      %v2144 = vmul.f32 %v2141, %v314
      %2145 = vrot.lane.b32.xlu0 %v2127, 15
      %v2146 = vpop.permute.xlu0 %2145
      %2147 = vrot.lane.b32.xlu0 %v2128, 15
      %v2148 = vpop.permute.xlu0 %2147
      %v2149 = vsel %vm321, %v2146, %v2148
      %v2150 = vsel %vm321, %v2148, %v2146
      %v2151 = vmul.f32 %v2150, %v327
      %v2152 = vmul.f32 %v2149, %v331
      %v2153 = vpack.c.bf16 %v2143, %v2135
      %v2154 = vpack.c.bf16 %v2144, %v2136
      %v2155 = vpack.c.bf16 %v2151, %v2151
      %v2156 = vpack.c.bf16 %v2152, %v2152
      %2157 = vrot.lane.b32.xlu0 %v2127, 1
      %v2158 = vpop.permute.xlu0 %2157
      %2159 = vrot.lane.b32.xlu0 %v2128, 1
      %v2160 = vpop.permute.xlu0 %2159
      %v2161 = vsel %vm349, %v2158, %v2160
      %v2162 = vsel %vm349, %v2160, %v2158
      %v2163 = vmul.f32 %v2162, %v355
      %v2164 = vmul.f32 %v2161, %v359
      %2165 = vrot.lane.b32.xlu0 %v2127, 127
      %v2166 = vpop.permute.xlu0 %2165
      %2167 = vrot.lane.b32.xlu0 %v2128, 127
      %v2168 = vpop.permute.xlu0 %2167
      %v2169 = vsel %vm366, %v2166, %v2168
      %v2170 = vsel %vm366, %v2168, %v2166
      %v2171 = vmul.f32 %v2169, %v372
      %v2172 = vmul.f32 %v2170, %v376
      %v2173 = vpack.c.bf16 %v2127, %v2163
      %v2174 = vpack.c.bf16 %v2128, %v2164
      %v2175 = vpack.c.bf16 %v2171, %v2171
      %v2176 = vpack.c.bf16 %v2172, %v2172
      %v2178 = vsel %vm340, %v2175, 0
      %v2181 = vsel %vm340, %v2176, 0
      %2183 = vmatprep.subr.bf16.mxu0 %v2174
      %2184 = vmatpush1.bf16.msra.mxu0 %v2173
      %2185 = vmatprep.subr.bf16.mxu0 %v2181
      %2186 = vmatpush1.bf16.msra.mxu0 %v2178
      %2187 = vmatprep.subr.bf16.mxu0 0
      %2188 = vmatpush1.bf16.msra.mxu0 0
      %2189 = vmatprep.subr.bf16.mxu0 0
      %2190 = vmatpush1.bf16.msra.mxu0 0
      %2191 = vmatprep.subr.bf16.mxu0 0
      %2192 = vmatpush1.bf16.msra.mxu0 0
      %2193 = vmatprep.subr.bf16.mxu0 0
      %2194 = vmatpush1.bf16.msra.mxu0 0
      %2195 = vmatprep.subr.bf16.mxu0 0
      %2196 = vmatpush1.bf16.msra.mxu0 0
      %2197 = vmatprep.subr.bf16.mxu0 0
      %2198 = vmatpush1.bf16.msra.mxu0 0
      %2199 = vmatprep.subr.bf16.mxu0 0
      %2200 = vmatpush1.bf16.msra.mxu0 0
      %2201 = vmatprep.subr.bf16.mxu0 0
      %2202 = vmatpush1.bf16.msra.mxu0 0
      %2203 = vmatprep.subr.bf16.mxu0 0
      %2204 = vmatpush1.bf16.msra.mxu0 0
      %2205 = vmatprep.subr.bf16.mxu0 0
      %2206 = vmatpush1.bf16.msra.mxu0 0
      %2207 = vmatprep.subr.bf16.mxu0 0
      %2208 = vmatpush1.bf16.msra.mxu0 0
      %2209 = vmatprep.subr.bf16.mxu0 0
      %2210 = vmatpush1.bf16.msra.mxu0 0
      %2211 = vmatprep.subr.bf16.mxu0 0
      %2212 = vmatpush1.bf16.msra.mxu0 0
      %2213 = vmatprep.subr.bf16.mxu0 0
      %2214 = vmatpush1.bf16.msra.mxu0 0
      %2215 = vmatprep.mubr.bf16.mxu0 0
      %2216 = vmatmul.mubr.bf16.gmra.mrb[0].mxu0 %v782
      %v2217 = vpop.f32.mrb[0].mxu0
      %v2218 = vadd.f32 0.0, %v2217
      %v2219 = vpop.f32.mrb[0].mxu0
      %v2220 = vadd.f32 0.0, %v2219
      %v2221 = vpop.f32.mrb[0].mxu0
      %v2222 = vpop.f32.mrb[0].mxu0
      %2223 = vdwg.mxu0
      %v2225 = vsel %vm340, %v2155, 0
      %v2228 = vsel %vm340, %v2156, 0
      %2230 = vmatprep.subr.bf16.mxu0 %v2154
      %2231 = vmatpush1.bf16.msra.mxu0 %v2153
      %2232 = vmatprep.subr.bf16.mxu0 %v2228
      %2233 = vmatpush1.bf16.msra.mxu0 %v2225
      %2234 = vmatprep.subr.bf16.mxu0 0
      %2235 = vmatpush1.bf16.msra.mxu0 0
      %2236 = vmatprep.subr.bf16.mxu0 0
      %2237 = vmatpush1.bf16.msra.mxu0 0
      %2238 = vmatprep.subr.bf16.mxu0 0
      %2239 = vmatpush1.bf16.msra.mxu0 0
      %2240 = vmatprep.subr.bf16.mxu0 0
      %2241 = vmatpush1.bf16.msra.mxu0 0
      %2242 = vmatprep.subr.bf16.mxu0 0
      %2243 = vmatpush1.bf16.msra.mxu0 0
      %2244 = vmatprep.subr.bf16.mxu0 0
      %2245 = vmatpush1.bf16.msra.mxu0 0
      %2246 = vmatprep.subr.bf16.mxu0 0
      %2247 = vmatpush1.bf16.msra.mxu0 0
      %2248 = vmatprep.subr.bf16.mxu0 0
      %2249 = vmatpush1.bf16.msra.mxu0 0
      %2250 = vmatprep.subr.bf16.mxu0 0
      %2251 = vmatpush1.bf16.msra.mxu0 0
      %2252 = vmatprep.subr.bf16.mxu0 0
      %2253 = vmatpush1.bf16.msra.mxu0 0
      %2254 = vmatprep.subr.bf16.mxu0 0
      %2255 = vmatpush1.bf16.msra.mxu0 0
      %2256 = vmatprep.subr.bf16.mxu0 0
      %2257 = vmatpush1.bf16.msra.mxu0 0
      %2258 = vmatprep.subr.bf16.mxu0 0
      %2259 = vmatpush1.bf16.msra.mxu0 0
      %2260 = vmatprep.subr.bf16.mxu0 0
      %2261 = vmatpush1.bf16.msra.mxu0 0
      %2262 = vmatprep.mubr.bf16.mxu0 0
      %2263 = vmatmul.mubr.bf16.gmra.mrb[0].mxu0 %v832
      %v2264 = vpop.f32.mrb[0].mxu0
      %v2265 = vadd.f32 %v2218, %v2264
      %v2266 = vpop.f32.mrb[0].mxu0
      %v2267 = vadd.f32 %v2220, %v2266
      %v2268 = vpop.f32.mrb[0].mxu0
      %v2269 = vpop.f32.mrb[0].mxu0
      %2270 = vdwg.mxu0
      %2271 = vrot.lane.b32.xlu0 %v2127, 113
      %v2272 = vpop.permute.xlu0 %2271
      %2273 = vrot.lane.b32.xlu0 %v2128, 113
      %v2274 = vpop.permute.xlu0 %2273
      %v2275 = vsel %vm491, %v2272, %v2274
      %v2276 = vsel %vm491, %v2274, %v2272
      %v2277 = vmul.f32 %v2275, %v497
      %v2278 = vmul.f32 %v2276, %v501
      %2279 = vrot.lane.b32.xlu0 %v2127, 112
      %v2280 = vpop.permute.xlu0 %2279
      %2281 = vrot.lane.b32.xlu0 %v2128, 112
      %v2282 = vpop.permute.xlu0 %2281
      %v2283 = vsel %vm508, %v2280, %v2282
      %v2284 = vsel %vm508, %v2282, %v2280
      %v2285 = vmul.f32 %v2283, %v514
      %v2286 = vmul.f32 %v2284, %v518
      %2287 = vrot.lane.b32.xlu0 %v2127, 111
      %v2288 = vpop.permute.xlu0 %2287
      %2289 = vrot.lane.b32.xlu0 %v2128, 111
      %v2290 = vpop.permute.xlu0 %2289
      %v2291 = vsel %vm525, %v2288, %v2290
      %v2292 = vsel %vm525, %v2290, %v2288
      %v2293 = vmul.f32 %v2291, %v531
      %v2294 = vmul.f32 %v2292, %v535
      %v2295 = vpack.c.bf16 %v2285, %v2277
      %v2296 = vpack.c.bf16 %v2286, %v2278
      %v2297 = vpack.c.bf16 %v2293, %v2293
      %v2298 = vpack.c.bf16 %v2294, %v2294
      %v2300 = vsel %vm340, %v2297, 0
      %v2303 = vsel %vm340, %v2298, 0
      %2305 = vmatprep.subr.bf16.mxu0 %v2296
      %2306 = vmatpush1.bf16.msra.mxu0 %v2295
      %2307 = vmatprep.subr.bf16.mxu0 %v2303
      %2308 = vmatpush1.bf16.msra.mxu0 %v2300
      %2309 = vmatprep.subr.bf16.mxu0 0
      %2310 = vmatpush1.bf16.msra.mxu0 0
      %2311 = vmatprep.subr.bf16.mxu0 0
      %2312 = vmatpush1.bf16.msra.mxu0 0
      %2313 = vmatprep.subr.bf16.mxu0 0
      %2314 = vmatpush1.bf16.msra.mxu0 0
      %2315 = vmatprep.subr.bf16.mxu0 0
      %2316 = vmatpush1.bf16.msra.mxu0 0
      %2317 = vmatprep.subr.bf16.mxu0 0
      %2318 = vmatpush1.bf16.msra.mxu0 0
      %2319 = vmatprep.subr.bf16.mxu0 0
      %2320 = vmatpush1.bf16.msra.mxu0 0
      %2321 = vmatprep.subr.bf16.mxu0 0
      %2322 = vmatpush1.bf16.msra.mxu0 0
      %2323 = vmatprep.subr.bf16.mxu0 0
      %2324 = vmatpush1.bf16.msra.mxu0 0
      %2325 = vmatprep.subr.bf16.mxu0 0
      %2326 = vmatpush1.bf16.msra.mxu0 0
      %2327 = vmatprep.subr.bf16.mxu0 0
      %2328 = vmatpush1.bf16.msra.mxu0 0
      %2329 = vmatprep.subr.bf16.mxu0 0
      %2330 = vmatpush1.bf16.msra.mxu0 0
      %2331 = vmatprep.subr.bf16.mxu0 0
      %2332 = vmatpush1.bf16.msra.mxu0 0
      %2333 = vmatprep.subr.bf16.mxu0 0
      %2334 = vmatpush1.bf16.msra.mxu0 0
      %2335 = vmatprep.subr.bf16.mxu0 0
      %2336 = vmatpush1.bf16.msra.mxu0 0
      %2337 = vmatprep.mubr.bf16.mxu0 0
      %2338 = vmatmul.mubr.bf16.gmra.mrb[0].mxu0 %v910
      %v2339 = vpop.f32.mrb[0].mxu0
      %v2340 = vadd.f32 0.0, %v2339
      %v2341 = vpop.f32.mrb[0].mxu0
      %v2342 = vadd.f32 0.0, %v2341
      %v2343 = vpop.f32.mrb[0].mxu0
      %v2344 = vpop.f32.mrb[0].mxu0
      %2345 = vdwg.mxu0
      %v2346 = vadd.f32 %v2265, %v2340
      %v2347 = vadd.f32 %v2267, %v2342
      %v2348 = vadd.f32 %v2346, %v963
      %v2349 = vadd.f32 %v2347, %v963
      %v2350 = vadd.f32 %v2348, %v2349
      %2351 = vadd.xlane.f32.xlu0 %v2350
      %v2352 = vpop.xlane.xlu0 %2351
      %v2353 = vmul.f32 %v2348, %v2348
      %v2354 = vmul.f32 %v2349, %v2349
      %v2355 = vadd.f32 %v2353, %v2354
      %2356 = vadd.xlane.f32.xlu0 %v2355
      %v2357 = vpop.xlane.xlu0 %2356
      %v2358 = vsel %vm615, %v2352, %v2357
      %2359 = vmatprep.subr.mxu0 0.0
      %2360 = vmatpush1.msra.mxu0 %v2358
      %2361 = vmatprep.subr.mxu0 0.0
      %2362 = vmatpush1.msra.mxu0 0.0
      %2363 = vmatprep.subr.mxu0 0.0
      %2364 = vmatpush1.msra.mxu0 0.0
      %2365 = vmatprep.subr.mxu0 0.0
      %2366 = vmatpush1.msra.mxu0 0.0
      %2367 = vmatprep.subr.mxu0 0.0
      %2368 = vmatpush1.msra.mxu0 0.0
      %2369 = vmatprep.subr.mxu0 0.0
      %2370 = vmatpush1.msra.mxu0 0.0
      %2371 = vmatprep.subr.mxu0 0.0
      %2372 = vmatpush1.msra.mxu0 0.0
      %2373 = vmatprep.subr.mxu0 0.0
      %2374 = vmatpush1.msra.mxu0 0.0
      %2375 = vmatprep.subr.mxu0 0.0
      %2376 = vmatpush1.msra.mxu0 0.0
      %2377 = vmatprep.subr.mxu0 0.0
      %2378 = vmatpush1.msra.mxu0 0.0
      %2379 = vmatprep.subr.mxu0 0.0
      %2380 = vmatpush1.msra.mxu0 0.0
      %2381 = vmatprep.subr.mxu0 0.0
      %2382 = vmatpush1.msra.mxu0 0.0
      %2383 = vmatprep.subr.mxu0 0.0
      %2384 = vmatpush1.msra.mxu0 0.0
      %2385 = vmatprep.subr.mxu0 0.0
      %2386 = vmatpush1.msra.mxu0 0.0
      %2387 = vmatprep.subr.mxu0 0.0
      %2388 = vmatpush1.msra.mxu0 0.0
      %2389 = vmatprep.subr.mxu0 0.0
      %2390 = vmatpush1.msra.mxu0 0.0
      %2391 = vmatprep.subr.mxu0 0.0
      %2392 = vmatpush1.msra.mxu0 0.0
      %2393 = vmatprep.subr.mxu0 0.0
      %2394 = vmatpush1.msra.mxu0 0.0
      %2395 = vmatprep.subr.mxu0 0.0
      %2396 = vmatpush1.msra.mxu0 0.0
      %2397 = vmatprep.subr.mxu0 0.0
      %2398 = vmatpush1.msra.mxu0 0.0
      %2399 = vmatprep.subr.mxu0 0.0
      %2400 = vmatpush1.msra.mxu0 0.0
      %2401 = vmatprep.subr.mxu0 0.0
      %2402 = vmatpush1.msra.mxu0 0.0
      %2403 = vmatprep.subr.mxu0 0.0
      %2404 = vmatpush1.msra.mxu0 0.0
      %2405 = vmatprep.subr.mxu0 0.0
      %2406 = vmatpush1.msra.mxu0 0.0
      %2407 = vmatprep.subr.mxu0 0.0
      %2408 = vmatpush1.msra.mxu0 0.0
      %2409 = vmatprep.subr.mxu0 0.0
      %2410 = vmatpush1.msra.mxu0 0.0
      %2411 = vmatprep.subr.mxu0 0.0
      %2412 = vmatpush1.msra.mxu0 0.0
      %2413 = vmatprep.subr.mxu0 0.0
      %2414 = vmatpush1.msra.mxu0 0.0
      %2415 = vmatprep.subr.mxu0 0.0
      %2416 = vmatpush1.msra.mxu0 0.0
      %2417 = vmatprep.subr.mxu0 0.0
      %2418 = vmatpush1.msra.mxu0 0.0
      %2419 = vmatprep.subr.mxu0 0.0
      %2420 = vmatpush1.msra.mxu0 0.0
      %2421 = vmatprep.subr.mxu0 0.0
      %2422 = vmatpush1.msra.mxu0 0.0
      %2423 = vmatprep.mubr.f32.mxu0 0.0
      %2424 = vmatmul.mubr.f32.gmra.mrb[0].mxu0 %v619
      %v2425 = vpop.f32.mrb[0].mxu0
      %v2426 = vadd.f32 0.0, %v2425
      %v2427 = vpop.f32.mrb[0].mxu0
      %2428 = vdwg.mxu0
      %v2429 = vmul.f32 %v2426, %v2426
      %2431 = vrot.lane.b32.xlu0 %v2429, 1
      %v2432 = vpop.permute.xlu0 %2431
      %v2434 = vsub.f32 %v2426, %v2432
      %v2435 = vmax.f32 %v2434, 0.0
      %2437 = vset.pattern.permute.xlu0 0
      %2438 = vperm.xlu0 %2437, %v2426
      %v2439 = vpop.permute.xlu0 %2438
      %v2441 = vsub.f32 %v2348, %v2439
      %v2442 = vsub.f32 %v2349, %v2439
      %v2443 = vadd.f32 %v2435, 1e-05
      %v2444 = vrsqrt.pop %v2443
      %2446 = vset.pattern.permute.xlu0 1
      %2447 = vperm.xlu0 %2446, %v2444
      %v2448 = vpop.permute.xlu0 %2447
      %v2450 = vmul.f32 %v2441, %v2448
      %v2451 = vmul.f32 %v2442, %v2448
      %v2452 = vmul.f32 %v2450, %v1071
      %v2453 = vmul.f32 %v2451, %v1071
      %v2454 = vadd.f32 %v2452, %v1077
      %v2455 = vadd.f32 %v2453, %v1077
      %vm2456 = vcmp.ge.f32.partialorder %v2454, 0.0
      %vm2457 = vcmp.ge.f32.partialorder %v2455, 0.0
      %v2458 = vmul.f32 %v2454, 0.01
      %v2459 = vmul.f32 %v2455, 0.01
      %v2460 = vsel %vm2456, %v2454, %v2458
      %v2461 = vsel %vm2457, %v2455, %v2459
      %s2462 = scalar_lea.vmem %s258, 32
      %2463 = vst [vmem:[%s2462] sm:$0xff] %v2460
      %2464 = vst [vmem:[%s2462 + $0x8] sm:$0xff] %v2461
      %s2465 = scalar_lea.vmem %s251, 24
      %v2466 = vld [vmem:[%s2465] sm:$0xff]
      %v2468 = vcombine.high %v2466, %v2466
      %2470 = vrot.lane.b32.xlu0 %v2466, 17
      %v2471 = vpop.permute.xlu0 %2470
      %2472 = vrot.lane.b32.xlu0 %v2468, 17
      %v2473 = vpop.permute.xlu0 %2472
      %v2474 = vsel %vm287, %v2471, %v2473
      %v2475 = vsel %vm287, %v2473, %v2471
      %v2476 = vmul.f32 %v2475, %v293
      %v2477 = vmul.f32 %v2474, %v297
      %2478 = vrot.lane.b32.xlu0 %v2466, 16
      %v2479 = vpop.permute.xlu0 %2478
      %2480 = vrot.lane.b32.xlu0 %v2468, 16
      %v2481 = vpop.permute.xlu0 %2480
      %v2482 = vsel %vm304, %v2479, %v2481
      %v2483 = vsel %vm304, %v2481, %v2479
      %v2484 = vmul.f32 %v2483, %v310
      %v2485 = vmul.f32 %v2482, %v314
      %2486 = vrot.lane.b32.xlu0 %v2466, 15
      %v2487 = vpop.permute.xlu0 %2486
      %2488 = vrot.lane.b32.xlu0 %v2468, 15
      %v2489 = vpop.permute.xlu0 %2488
      %v2490 = vsel %vm321, %v2487, %v2489
      %v2491 = vsel %vm321, %v2489, %v2487
      %v2492 = vmul.f32 %v2491, %v327
      %v2493 = vmul.f32 %v2490, %v331
      %v2496 = vrot.slane %v2484, 4
      %v2497 = vrot.slane %v2485, 4
      %v2500 = vsel %vm340, %v2476, %v2496
      %v2501 = vsel %vm340, %v2477, %v2497
      %v2502 = vpack.c.bf16 %v2492, %v2500
      %v2503 = vpack.c.bf16 %v2493, %v2501
      %2504 = vrot.lane.b32.xlu0 %v2466, 1
      %v2505 = vpop.permute.xlu0 %2504
      %2506 = vrot.lane.b32.xlu0 %v2468, 1
      %v2507 = vpop.permute.xlu0 %2506
      %v2508 = vsel %vm349, %v2505, %v2507
      %v2509 = vsel %vm349, %v2507, %v2505
      %v2510 = vmul.f32 %v2509, %v355
      %v2511 = vmul.f32 %v2508, %v359
      %2512 = vrot.lane.b32.xlu0 %v2466, 127
      %v2513 = vpop.permute.xlu0 %2512
      %2514 = vrot.lane.b32.xlu0 %v2468, 127
      %v2515 = vpop.permute.xlu0 %2514
      %v2516 = vsel %vm366, %v2513, %v2515
      %v2517 = vsel %vm366, %v2515, %v2513
      %v2518 = vmul.f32 %v2516, %v372
      %v2519 = vmul.f32 %v2517, %v376
      %v2520 = vcombine.low %v2466, %v2466
      %v2522 = vsel %vm340, %v2510, %v2520
      %v2523 = vsel %vm340, %v2511, %v2466
      %v2524 = vpack.c.bf16 %v2518, %v2522
      %v2525 = vpack.c.bf16 %v2519, %v2523
      %v2527 = vsel %vm389, %v2524, 0
      %v2530 = vsel %vm389, %v2525, 0
      %2532 = vmatprep.subr.bf16.mxu0 %v2530
      %2533 = vmatpush1.bf16.msra.mxu0 %v2527
      %2534 = vmatprep.subr.bf16.mxu0 0
      %2535 = vmatpush1.bf16.msra.mxu0 0
      %2536 = vmatprep.subr.bf16.mxu0 0
      %2537 = vmatpush1.bf16.msra.mxu0 0
      %2538 = vmatprep.subr.bf16.mxu0 0
      %2539 = vmatpush1.bf16.msra.mxu0 0
      %2540 = vmatprep.subr.bf16.mxu0 0
      %2541 = vmatpush1.bf16.msra.mxu0 0
      %2542 = vmatprep.subr.bf16.mxu0 0
      %2543 = vmatpush1.bf16.msra.mxu0 0
      %2544 = vmatprep.subr.bf16.mxu0 0
      %2545 = vmatpush1.bf16.msra.mxu0 0
      %2546 = vmatprep.subr.bf16.mxu0 0
      %2547 = vmatpush1.bf16.msra.mxu0 0
      %2548 = vmatprep.subr.bf16.mxu0 0
      %2549 = vmatpush1.bf16.msra.mxu0 0
      %2550 = vmatprep.subr.bf16.mxu0 0
      %2551 = vmatpush1.bf16.msra.mxu0 0
      %2552 = vmatprep.subr.bf16.mxu0 0
      %2553 = vmatpush1.bf16.msra.mxu0 0
      %2554 = vmatprep.subr.bf16.mxu0 0
      %2555 = vmatpush1.bf16.msra.mxu0 0
      %2556 = vmatprep.subr.bf16.mxu0 0
      %2557 = vmatpush1.bf16.msra.mxu0 0
      %2558 = vmatprep.subr.bf16.mxu0 0
      %2559 = vmatpush1.bf16.msra.mxu0 0
      %2560 = vmatprep.subr.bf16.mxu0 0
      %2561 = vmatpush1.bf16.msra.mxu0 0
      %2562 = vmatprep.subr.bf16.mxu0 0
      %2563 = vmatpush1.bf16.msra.mxu0 0
      %2564 = vmatprep.mubr.bf16.mxu0 0
      %2565 = vmatmul.mubr.bf16.gmra.mrb[0].mxu0 %v387
      %v2566 = vpop.f32.mrb[0].mxu0
      %v2567 = vadd.f32 0.0, %v2566
      %v2568 = vpop.f32.mrb[0].mxu0
      %v2569 = vadd.f32 0.0, %v2568
      %v2570 = vpop.f32.mrb[0].mxu0
      %v2571 = vpop.f32.mrb[0].mxu0
      %2572 = vdwg.mxu0
      %v2574 = vsel %vm389, %v2502, 0
      %v2577 = vsel %vm389, %v2503, 0
      %2579 = vmatprep.subr.bf16.mxu0 %v2577
      %2580 = vmatpush1.bf16.msra.mxu0 %v2574
      %2581 = vmatprep.subr.bf16.mxu0 0
      %2582 = vmatpush1.bf16.msra.mxu0 0
      %2583 = vmatprep.subr.bf16.mxu0 0
      %2584 = vmatpush1.bf16.msra.mxu0 0
      %2585 = vmatprep.subr.bf16.mxu0 0
      %2586 = vmatpush1.bf16.msra.mxu0 0
      %2587 = vmatprep.subr.bf16.mxu0 0
      %2588 = vmatpush1.bf16.msra.mxu0 0
      %2589 = vmatprep.subr.bf16.mxu0 0
      %2590 = vmatpush1.bf16.msra.mxu0 0
      %2591 = vmatprep.subr.bf16.mxu0 0
      %2592 = vmatpush1.bf16.msra.mxu0 0
      %2593 = vmatprep.subr.bf16.mxu0 0
      %2594 = vmatpush1.bf16.msra.mxu0 0
      %2595 = vmatprep.subr.bf16.mxu0 0
      %2596 = vmatpush1.bf16.msra.mxu0 0
      %2597 = vmatprep.subr.bf16.mxu0 0
      %2598 = vmatpush1.bf16.msra.mxu0 0
      %2599 = vmatprep.subr.bf16.mxu0 0
      %2600 = vmatpush1.bf16.msra.mxu0 0
      %2601 = vmatprep.subr.bf16.mxu0 0
      %2602 = vmatpush1.bf16.msra.mxu0 0
      %2603 = vmatprep.subr.bf16.mxu0 0
      %2604 = vmatpush1.bf16.msra.mxu0 0
      %2605 = vmatprep.subr.bf16.mxu0 0
      %2606 = vmatpush1.bf16.msra.mxu0 0
      %2607 = vmatprep.subr.bf16.mxu0 0
      %2608 = vmatpush1.bf16.msra.mxu0 0
      %2609 = vmatprep.subr.bf16.mxu0 0
      %2610 = vmatpush1.bf16.msra.mxu0 0
      %2611 = vmatprep.mubr.bf16.mxu0 0
      %2612 = vmatmul.mubr.bf16.gmra.mrb[0].mxu0 %v438
      %v2613 = vpop.f32.mrb[0].mxu0
      %v2614 = vadd.f32 %v2567, %v2613
      %v2615 = vpop.f32.mrb[0].mxu0
      %v2616 = vadd.f32 %v2569, %v2615
      %v2617 = vpop.f32.mrb[0].mxu0
      %v2618 = vpop.f32.mrb[0].mxu0
      %2619 = vdwg.mxu0
      %2620 = vrot.lane.b32.xlu0 %v2466, 113
      %v2621 = vpop.permute.xlu0 %2620
      %2622 = vrot.lane.b32.xlu0 %v2468, 113
      %v2623 = vpop.permute.xlu0 %2622
      %v2624 = vsel %vm491, %v2621, %v2623
      %v2625 = vsel %vm491, %v2623, %v2621
      %v2626 = vmul.f32 %v2624, %v497
      %v2627 = vmul.f32 %v2625, %v501
      %2628 = vrot.lane.b32.xlu0 %v2466, 112
      %v2629 = vpop.permute.xlu0 %2628
      %2630 = vrot.lane.b32.xlu0 %v2468, 112
      %v2631 = vpop.permute.xlu0 %2630
      %v2632 = vsel %vm508, %v2629, %v2631
      %v2633 = vsel %vm508, %v2631, %v2629
      %v2634 = vmul.f32 %v2632, %v514
      %v2635 = vmul.f32 %v2633, %v518
      %2636 = vrot.lane.b32.xlu0 %v2466, 111
      %v2637 = vpop.permute.xlu0 %2636
      %2638 = vrot.lane.b32.xlu0 %v2468, 111
      %v2639 = vpop.permute.xlu0 %2638
      %v2640 = vsel %vm525, %v2637, %v2639
      %v2641 = vsel %vm525, %v2639, %v2637
      %v2642 = vmul.f32 %v2640, %v531
      %v2643 = vmul.f32 %v2641, %v535
      %v2646 = vrot.slane %v2634, 4
      %v2647 = vrot.slane %v2635, 4
      %v2650 = vsel %vm340, %v2626, %v2646
      %v2651 = vsel %vm340, %v2627, %v2647
      %v2652 = vpack.c.bf16 %v2642, %v2650
      %v2653 = vpack.c.bf16 %v2643, %v2651
      %v2655 = vsel %vm389, %v2652, 0
      %v2658 = vsel %vm389, %v2653, 0
      %2660 = vmatprep.subr.bf16.mxu0 %v2658
      %2661 = vmatpush1.bf16.msra.mxu0 %v2655
      %2662 = vmatprep.subr.bf16.mxu0 0
      %2663 = vmatpush1.bf16.msra.mxu0 0
      %2664 = vmatprep.subr.bf16.mxu0 0
      %2665 = vmatpush1.bf16.msra.mxu0 0
      %2666 = vmatprep.subr.bf16.mxu0 0
      %2667 = vmatpush1.bf16.msra.mxu0 0
      %2668 = vmatprep.subr.bf16.mxu0 0
      %2669 = vmatpush1.bf16.msra.mxu0 0
      %2670 = vmatprep.subr.bf16.mxu0 0
      %2671 = vmatpush1.bf16.msra.mxu0 0
      %2672 = vmatprep.subr.bf16.mxu0 0
      %2673 = vmatpush1.bf16.msra.mxu0 0
      %2674 = vmatprep.subr.bf16.mxu0 0
      %2675 = vmatpush1.bf16.msra.mxu0 0
      %2676 = vmatprep.subr.bf16.mxu0 0
      %2677 = vmatpush1.bf16.msra.mxu0 0
      %2678 = vmatprep.subr.bf16.mxu0 0
      %2679 = vmatpush1.bf16.msra.mxu0 0
      %2680 = vmatprep.subr.bf16.mxu0 0
      %2681 = vmatpush1.bf16.msra.mxu0 0
      %2682 = vmatprep.subr.bf16.mxu0 0
      %2683 = vmatpush1.bf16.msra.mxu0 0
      %2684 = vmatprep.subr.bf16.mxu0 0
      %2685 = vmatpush1.bf16.msra.mxu0 0
      %2686 = vmatprep.subr.bf16.mxu0 0
      %2687 = vmatpush1.bf16.msra.mxu0 0
      %2688 = vmatprep.subr.bf16.mxu0 0
      %2689 = vmatpush1.bf16.msra.mxu0 0
      %2690 = vmatprep.subr.bf16.mxu0 0
      %2691 = vmatpush1.bf16.msra.mxu0 0
      %2692 = vmatprep.mubr.bf16.mxu0 0
      %2693 = vmatmul.mubr.bf16.gmra.mrb[0].mxu0 %v549
      %v2694 = vpop.f32.mrb[0].mxu0
      %v2695 = vadd.f32 0.0, %v2694
      %v2696 = vpop.f32.mrb[0].mxu0
      %v2697 = vadd.f32 0.0, %v2696
      %v2698 = vpop.f32.mrb[0].mxu0
      %v2699 = vpop.f32.mrb[0].mxu0
      %2700 = vdwg.mxu0
      %v2701 = vadd.f32 %v2614, %v2695
      %v2702 = vadd.f32 %v2616, %v2697
      %v2703 = vadd.f32 %v2701, %v603
      %v2704 = vadd.f32 %v2702, %v603
      %v2705 = vadd.f32 %v2703, %v2704
      %2706 = vadd.xlane.f32.xlu0 %v2705
      %v2707 = vpop.xlane.xlu0 %2706
      %v2708 = vmul.f32 %v2703, %v2703
      %v2709 = vmul.f32 %v2704, %v2704
      %v2710 = vadd.f32 %v2708, %v2709
      %2711 = vadd.xlane.f32.xlu0 %v2710
      %v2712 = vpop.xlane.xlu0 %2711
      %v2713 = vsel %vm615, %v2707, %v2712
      %2714 = vmatprep.subr.mxu0 0.0
      %2715 = vmatpush1.msra.mxu0 %v2713
      %2716 = vmatprep.subr.mxu0 0.0
      %2717 = vmatpush1.msra.mxu0 0.0
      %2718 = vmatprep.subr.mxu0 0.0
      %2719 = vmatpush1.msra.mxu0 0.0
      %2720 = vmatprep.subr.mxu0 0.0
      %2721 = vmatpush1.msra.mxu0 0.0
      %2722 = vmatprep.subr.mxu0 0.0
      %2723 = vmatpush1.msra.mxu0 0.0
      %2724 = vmatprep.subr.mxu0 0.0
      %2725 = vmatpush1.msra.mxu0 0.0
      %2726 = vmatprep.subr.mxu0 0.0
      %2727 = vmatpush1.msra.mxu0 0.0
      %2728 = vmatprep.subr.mxu0 0.0
      %2729 = vmatpush1.msra.mxu0 0.0
      %2730 = vmatprep.subr.mxu0 0.0
      %2731 = vmatpush1.msra.mxu0 0.0
      %2732 = vmatprep.subr.mxu0 0.0
      %2733 = vmatpush1.msra.mxu0 0.0
      %2734 = vmatprep.subr.mxu0 0.0
      %2735 = vmatpush1.msra.mxu0 0.0
      %2736 = vmatprep.subr.mxu0 0.0
      %2737 = vmatpush1.msra.mxu0 0.0
      %2738 = vmatprep.subr.mxu0 0.0
      %2739 = vmatpush1.msra.mxu0 0.0
      %2740 = vmatprep.subr.mxu0 0.0
      %2741 = vmatpush1.msra.mxu0 0.0
      %2742 = vmatprep.subr.mxu0 0.0
      %2743 = vmatpush1.msra.mxu0 0.0
      %2744 = vmatprep.subr.mxu0 0.0
      %2745 = vmatpush1.msra.mxu0 0.0
      %2746 = vmatprep.subr.mxu0 0.0
      %2747 = vmatpush1.msra.mxu0 0.0
      %2748 = vmatprep.subr.mxu0 0.0
      %2749 = vmatpush1.msra.mxu0 0.0
      %2750 = vmatprep.subr.mxu0 0.0
      %2751 = vmatpush1.msra.mxu0 0.0
      %2752 = vmatprep.subr.mxu0 0.0
      %2753 = vmatpush1.msra.mxu0 0.0
      %2754 = vmatprep.subr.mxu0 0.0
      %2755 = vmatpush1.msra.mxu0 0.0
      %2756 = vmatprep.subr.mxu0 0.0
      %2757 = vmatpush1.msra.mxu0 0.0
      %2758 = vmatprep.subr.mxu0 0.0
      %2759 = vmatpush1.msra.mxu0 0.0
      %2760 = vmatprep.subr.mxu0 0.0
      %2761 = vmatpush1.msra.mxu0 0.0
      %2762 = vmatprep.subr.mxu0 0.0
      %2763 = vmatpush1.msra.mxu0 0.0
      %2764 = vmatprep.subr.mxu0 0.0
      %2765 = vmatpush1.msra.mxu0 0.0
      %2766 = vmatprep.subr.mxu0 0.0
      %2767 = vmatpush1.msra.mxu0 0.0
      %2768 = vmatprep.subr.mxu0 0.0
      %2769 = vmatpush1.msra.mxu0 0.0
      %2770 = vmatprep.subr.mxu0 0.0
      %2771 = vmatpush1.msra.mxu0 0.0
      %2772 = vmatprep.subr.mxu0 0.0
      %2773 = vmatpush1.msra.mxu0 0.0
      %2774 = vmatprep.subr.mxu0 0.0
      %2775 = vmatpush1.msra.mxu0 0.0
      %2776 = vmatprep.subr.mxu0 0.0
      %2777 = vmatpush1.msra.mxu0 0.0
      %2778 = vmatprep.mubr.f32.mxu0 0.0
      %2779 = vmatmul.mubr.f32.gmra.mrb[0].mxu0 %v619
      %v2780 = vpop.f32.mrb[0].mxu0
      %v2781 = vadd.f32 0.0, %v2780
      %v2782 = vpop.f32.mrb[0].mxu0
      %2783 = vdwg.mxu0
      %v2784 = vmul.f32 %v2781, %v2781
      %2786 = vrot.lane.b32.xlu0 %v2784, 1
      %v2787 = vpop.permute.xlu0 %2786
      %v2789 = vsub.f32 %v2781, %v2787
      %v2790 = vmax.f32 %v2789, 0.0
      %2792 = vset.pattern.permute.xlu0 0
      %2793 = vperm.xlu0 %2792, %v2781
      %v2794 = vpop.permute.xlu0 %2793
      %v2796 = vsub.f32 %v2703, %v2794
      %v2797 = vsub.f32 %v2704, %v2794
      %v2798 = vadd.f32 %v2790, 1e-05
      %v2799 = vrsqrt.pop %v2798
      %2801 = vset.pattern.permute.xlu0 1
      %2802 = vperm.xlu0 %2801, %v2799
      %v2803 = vpop.permute.xlu0 %2802
      %v2805 = vmul.f32 %v2796, %v2803
      %v2806 = vmul.f32 %v2797, %v2803
      %v2807 = vmul.f32 %v2805, %v716
      %v2808 = vmul.f32 %v2806, %v716
      %v2809 = vadd.f32 %v2807, %v722
      %v2810 = vadd.f32 %v2808, %v722
      %vm2811 = vcmp.ge.f32.partialorder %v2809, 0.0
      %vm2812 = vcmp.ge.f32.partialorder %v2810, 0.0
      %v2813 = vmul.f32 %v2809, 0.01
      %v2814 = vmul.f32 %v2810, 0.01
      %v2815 = vsel %vm2811, %v2809, %v2813
      %v2816 = vsel %vm2812, %v2810, %v2814
      %2817 = vrot.lane.b32.xlu0 %v2815, 17
      %v2818 = vpop.permute.xlu0 %2817
      %2819 = vrot.lane.b32.xlu0 %v2816, 17
      %v2820 = vpop.permute.xlu0 %2819
      %v2821 = vsel %vm287, %v2818, %v2820
      %v2822 = vsel %vm287, %v2820, %v2818
      %v2823 = vmul.f32 %v2822, %v293
      %v2824 = vmul.f32 %v2821, %v297
      %2825 = vrot.lane.b32.xlu0 %v2815, 16
      %v2826 = vpop.permute.xlu0 %2825
      %2827 = vrot.lane.b32.xlu0 %v2816, 16
      %v2828 = vpop.permute.xlu0 %2827
      %v2829 = vsel %vm304, %v2826, %v2828
      %v2830 = vsel %vm304, %v2828, %v2826
      %v2831 = vmul.f32 %v2830, %v310
      %v2832 = vmul.f32 %v2829, %v314
      %2833 = vrot.lane.b32.xlu0 %v2815, 15
      %v2834 = vpop.permute.xlu0 %2833
      %2835 = vrot.lane.b32.xlu0 %v2816, 15
      %v2836 = vpop.permute.xlu0 %2835
      %v2837 = vsel %vm321, %v2834, %v2836
      %v2838 = vsel %vm321, %v2836, %v2834
      %v2839 = vmul.f32 %v2838, %v327
      %v2840 = vmul.f32 %v2837, %v331
      %v2841 = vpack.c.bf16 %v2831, %v2823
      %v2842 = vpack.c.bf16 %v2832, %v2824
      %v2843 = vpack.c.bf16 %v2839, %v2839
      %v2844 = vpack.c.bf16 %v2840, %v2840
      %2845 = vrot.lane.b32.xlu0 %v2815, 1
      %v2846 = vpop.permute.xlu0 %2845
      %2847 = vrot.lane.b32.xlu0 %v2816, 1
      %v2848 = vpop.permute.xlu0 %2847
      %v2849 = vsel %vm349, %v2846, %v2848
      %v2850 = vsel %vm349, %v2848, %v2846
      %v2851 = vmul.f32 %v2850, %v355
      %v2852 = vmul.f32 %v2849, %v359
      %2853 = vrot.lane.b32.xlu0 %v2815, 127
      %v2854 = vpop.permute.xlu0 %2853
      %2855 = vrot.lane.b32.xlu0 %v2816, 127
      %v2856 = vpop.permute.xlu0 %2855
      %v2857 = vsel %vm366, %v2854, %v2856
      %v2858 = vsel %vm366, %v2856, %v2854
      %v2859 = vmul.f32 %v2857, %v372
      %v2860 = vmul.f32 %v2858, %v376
      %v2861 = vpack.c.bf16 %v2815, %v2851
      %v2862 = vpack.c.bf16 %v2816, %v2852
      %v2863 = vpack.c.bf16 %v2859, %v2859
      %v2864 = vpack.c.bf16 %v2860, %v2860
      %v2866 = vsel %vm340, %v2863, 0
      %v2869 = vsel %vm340, %v2864, 0
      %2871 = vmatprep.subr.bf16.mxu0 %v2862
      %2872 = vmatpush1.bf16.msra.mxu0 %v2861
      %2873 = vmatprep.subr.bf16.mxu0 %v2869
      %2874 = vmatpush1.bf16.msra.mxu0 %v2866
      %2875 = vmatprep.subr.bf16.mxu0 0
      %2876 = vmatpush1.bf16.msra.mxu0 0
      %2877 = vmatprep.subr.bf16.mxu0 0
      %2878 = vmatpush1.bf16.msra.mxu0 0
      %2879 = vmatprep.subr.bf16.mxu0 0
      %2880 = vmatpush1.bf16.msra.mxu0 0
      %2881 = vmatprep.subr.bf16.mxu0 0
      %2882 = vmatpush1.bf16.msra.mxu0 0
      %2883 = vmatprep.subr.bf16.mxu0 0
      %2884 = vmatpush1.bf16.msra.mxu0 0
      %2885 = vmatprep.subr.bf16.mxu0 0
      %2886 = vmatpush1.bf16.msra.mxu0 0
      %2887 = vmatprep.subr.bf16.mxu0 0
      %2888 = vmatpush1.bf16.msra.mxu0 0
      %2889 = vmatprep.subr.bf16.mxu0 0
      %2890 = vmatpush1.bf16.msra.mxu0 0
      %2891 = vmatprep.subr.bf16.mxu0 0
      %2892 = vmatpush1.bf16.msra.mxu0 0
      %2893 = vmatprep.subr.bf16.mxu0 0
      %2894 = vmatpush1.bf16.msra.mxu0 0
      %2895 = vmatprep.subr.bf16.mxu0 0
      %2896 = vmatpush1.bf16.msra.mxu0 0
      %2897 = vmatprep.subr.bf16.mxu0 0
      %2898 = vmatpush1.bf16.msra.mxu0 0
      %2899 = vmatprep.subr.bf16.mxu0 0
      %2900 = vmatpush1.bf16.msra.mxu0 0
      %2901 = vmatprep.subr.bf16.mxu0 0
      %2902 = vmatpush1.bf16.msra.mxu0 0
      %2903 = vmatprep.mubr.bf16.mxu0 0
      %2904 = vmatmul.mubr.bf16.gmra.mrb[0].mxu0 %v782
      %v2905 = vpop.f32.mrb[0].mxu0
      %v2906 = vadd.f32 0.0, %v2905
      %v2907 = vpop.f32.mrb[0].mxu0
      %v2908 = vadd.f32 0.0, %v2907
      %v2909 = vpop.f32.mrb[0].mxu0
      %v2910 = vpop.f32.mrb[0].mxu0
      %2911 = vdwg.mxu0
      %v2913 = vsel %vm340, %v2843, 0
      %v2916 = vsel %vm340, %v2844, 0
      %2918 = vmatprep.subr.bf16.mxu0 %v2842
      %2919 = vmatpush1.bf16.msra.mxu0 %v2841
      %2920 = vmatprep.subr.bf16.mxu0 %v2916
      %2921 = vmatpush1.bf16.msra.mxu0 %v2913
      %2922 = vmatprep.subr.bf16.mxu0 0
      %2923 = vmatpush1.bf16.msra.mxu0 0
      %2924 = vmatprep.subr.bf16.mxu0 0
      %2925 = vmatpush1.bf16.msra.mxu0 0
      %2926 = vmatprep.subr.bf16.mxu0 0
      %2927 = vmatpush1.bf16.msra.mxu0 0
      %2928 = vmatprep.subr.bf16.mxu0 0
      %2929 = vmatpush1.bf16.msra.mxu0 0
      %2930 = vmatprep.subr.bf16.mxu0 0
      %2931 = vmatpush1.bf16.msra.mxu0 0
      %2932 = vmatprep.subr.bf16.mxu0 0
      %2933 = vmatpush1.bf16.msra.mxu0 0
      %2934 = vmatprep.subr.bf16.mxu0 0
      %2935 = vmatpush1.bf16.msra.mxu0 0
      %2936 = vmatprep.subr.bf16.mxu0 0
      %2937 = vmatpush1.bf16.msra.mxu0 0
      %2938 = vmatprep.subr.bf16.mxu0 0
      %2939 = vmatpush1.bf16.msra.mxu0 0
      %2940 = vmatprep.subr.bf16.mxu0 0
      %2941 = vmatpush1.bf16.msra.mxu0 0
      %2942 = vmatprep.subr.bf16.mxu0 0
      %2943 = vmatpush1.bf16.msra.mxu0 0
      %2944 = vmatprep.subr.bf16.mxu0 0
      %2945 = vmatpush1.bf16.msra.mxu0 0
      %2946 = vmatprep.subr.bf16.mxu0 0
      %2947 = vmatpush1.bf16.msra.mxu0 0
      %2948 = vmatprep.subr.bf16.mxu0 0
      %2949 = vmatpush1.bf16.msra.mxu0 0
      %2950 = vmatprep.mubr.bf16.mxu0 0
      %2951 = vmatmul.mubr.bf16.gmra.mrb[0].mxu0 %v832
      %v2952 = vpop.f32.mrb[0].mxu0
      %v2953 = vadd.f32 %v2906, %v2952
      %v2954 = vpop.f32.mrb[0].mxu0
      %v2955 = vadd.f32 %v2908, %v2954
      %v2956 = vpop.f32.mrb[0].mxu0
      %v2957 = vpop.f32.mrb[0].mxu0
      %2958 = vdwg.mxu0
      %2959 = vrot.lane.b32.xlu0 %v2815, 113
      %v2960 = vpop.permute.xlu0 %2959
      %2961 = vrot.lane.b32.xlu0 %v2816, 113
      %v2962 = vpop.permute.xlu0 %2961
      %v2963 = vsel %vm491, %v2960, %v2962
      %v2964 = vsel %vm491, %v2962, %v2960
      %v2965 = vmul.f32 %v2963, %v497
      %v2966 = vmul.f32 %v2964, %v501
      %2967 = vrot.lane.b32.xlu0 %v2815, 112
      %v2968 = vpop.permute.xlu0 %2967
      %2969 = vrot.lane.b32.xlu0 %v2816, 112
      %v2970 = vpop.permute.xlu0 %2969
      %v2971 = vsel %vm508, %v2968, %v2970
      %v2972 = vsel %vm508, %v2970, %v2968
      %v2973 = vmul.f32 %v2971, %v514
      %v2974 = vmul.f32 %v2972, %v518
      %2975 = vrot.lane.b32.xlu0 %v2815, 111
      %v2976 = vpop.permute.xlu0 %2975
      %2977 = vrot.lane.b32.xlu0 %v2816, 111
      %v2978 = vpop.permute.xlu0 %2977
      %v2979 = vsel %vm525, %v2976, %v2978
      %v2980 = vsel %vm525, %v2978, %v2976
      %v2981 = vmul.f32 %v2979, %v531
      %v2982 = vmul.f32 %v2980, %v535
      %v2983 = vpack.c.bf16 %v2973, %v2965
      %v2984 = vpack.c.bf16 %v2974, %v2966
      %v2985 = vpack.c.bf16 %v2981, %v2981
      %v2986 = vpack.c.bf16 %v2982, %v2982
      %v2988 = vsel %vm340, %v2985, 0
      %v2991 = vsel %vm340, %v2986, 0
      %2993 = vmatprep.subr.bf16.mxu0 %v2984
      %2994 = vmatpush1.bf16.msra.mxu0 %v2983
      %2995 = vmatprep.subr.bf16.mxu0 %v2991
      %2996 = vmatpush1.bf16.msra.mxu0 %v2988
      %2997 = vmatprep.subr.bf16.mxu0 0
      %2998 = vmatpush1.bf16.msra.mxu0 0
      %2999 = vmatprep.subr.bf16.mxu0 0
      %3000 = vmatpush1.bf16.msra.mxu0 0
      %3001 = vmatprep.subr.bf16.mxu0 0
      %3002 = vmatpush1.bf16.msra.mxu0 0
      %3003 = vmatprep.subr.bf16.mxu0 0
      %3004 = vmatpush1.bf16.msra.mxu0 0
      %3005 = vmatprep.subr.bf16.mxu0 0
      %3006 = vmatpush1.bf16.msra.mxu0 0
      %3007 = vmatprep.subr.bf16.mxu0 0
      %3008 = vmatpush1.bf16.msra.mxu0 0
      %3009 = vmatprep.subr.bf16.mxu0 0
      %3010 = vmatpush1.bf16.msra.mxu0 0
      %3011 = vmatprep.subr.bf16.mxu0 0
      %3012 = vmatpush1.bf16.msra.mxu0 0
      %3013 = vmatprep.subr.bf16.mxu0 0
      %3014 = vmatpush1.bf16.msra.mxu0 0
      %3015 = vmatprep.subr.bf16.mxu0 0
      %3016 = vmatpush1.bf16.msra.mxu0 0
      %3017 = vmatprep.subr.bf16.mxu0 0
      %3018 = vmatpush1.bf16.msra.mxu0 0
      %3019 = vmatprep.subr.bf16.mxu0 0
      %3020 = vmatpush1.bf16.msra.mxu0 0
      %3021 = vmatprep.subr.bf16.mxu0 0
      %3022 = vmatpush1.bf16.msra.mxu0 0
      %3023 = vmatprep.subr.bf16.mxu0 0
      %3024 = vmatpush1.bf16.msra.mxu0 0
      %3025 = vmatprep.mubr.bf16.mxu0 0
      %3026 = vmatmul.mubr.bf16.gmra.mrb[0].mxu0 %v910
      %v3027 = vpop.f32.mrb[0].mxu0
      %v3028 = vadd.f32 0.0, %v3027
      %v3029 = vpop.f32.mrb[0].mxu0
      %v3030 = vadd.f32 0.0, %v3029
      %v3031 = vpop.f32.mrb[0].mxu0
      %v3032 = vpop.f32.mrb[0].mxu0
      %3033 = vdwg.mxu0
      %v3034 = vadd.f32 %v2953, %v3028
      %v3035 = vadd.f32 %v2955, %v3030
      %v3036 = vadd.f32 %v3034, %v963
      %v3037 = vadd.f32 %v3035, %v963
      %v3038 = vadd.f32 %v3036, %v3037
      %3039 = vadd.xlane.f32.xlu0 %v3038
      %v3040 = vpop.xlane.xlu0 %3039
      %v3041 = vmul.f32 %v3036, %v3036
      %v3042 = vmul.f32 %v3037, %v3037
      %v3043 = vadd.f32 %v3041, %v3042
      %3044 = vadd.xlane.f32.xlu0 %v3043
      %v3045 = vpop.xlane.xlu0 %3044
      %v3046 = vsel %vm615, %v3040, %v3045
      %3047 = vmatprep.subr.mxu0 0.0
      %3048 = vmatpush1.msra.mxu0 %v3046
      %3049 = vmatprep.subr.mxu0 0.0
      %3050 = vmatpush1.msra.mxu0 0.0
      %3051 = vmatprep.subr.mxu0 0.0
      %3052 = vmatpush1.msra.mxu0 0.0
      %3053 = vmatprep.subr.mxu0 0.0
      %3054 = vmatpush1.msra.mxu0 0.0
      %3055 = vmatprep.subr.mxu0 0.0
      %3056 = vmatpush1.msra.mxu0 0.0
      %3057 = vmatprep.subr.mxu0 0.0
      %3058 = vmatpush1.msra.mxu0 0.0
      %3059 = vmatprep.subr.mxu0 0.0
      %3060 = vmatpush1.msra.mxu0 0.0
      %3061 = vmatprep.subr.mxu0 0.0
      %3062 = vmatpush1.msra.mxu0 0.0
      %3063 = vmatprep.subr.mxu0 0.0
      %3064 = vmatpush1.msra.mxu0 0.0
      %3065 = vmatprep.subr.mxu0 0.0
      %3066 = vmatpush1.msra.mxu0 0.0
      %3067 = vmatprep.subr.mxu0 0.0
      %3068 = vmatpush1.msra.mxu0 0.0
      %3069 = vmatprep.subr.mxu0 0.0
      %3070 = vmatpush1.msra.mxu0 0.0
      %3071 = vmatprep.subr.mxu0 0.0
      %3072 = vmatpush1.msra.mxu0 0.0
      %3073 = vmatprep.subr.mxu0 0.0
      %3074 = vmatpush1.msra.mxu0 0.0
      %3075 = vmatprep.subr.mxu0 0.0
      %3076 = vmatpush1.msra.mxu0 0.0
      %3077 = vmatprep.subr.mxu0 0.0
      %3078 = vmatpush1.msra.mxu0 0.0
      %3079 = vmatprep.subr.mxu0 0.0
      %3080 = vmatpush1.msra.mxu0 0.0
      %3081 = vmatprep.subr.mxu0 0.0
      %3082 = vmatpush1.msra.mxu0 0.0
      %3083 = vmatprep.subr.mxu0 0.0
      %3084 = vmatpush1.msra.mxu0 0.0
      %3085 = vmatprep.subr.mxu0 0.0
      %3086 = vmatpush1.msra.mxu0 0.0
      %3087 = vmatprep.subr.mxu0 0.0
      %3088 = vmatpush1.msra.mxu0 0.0
      %3089 = vmatprep.subr.mxu0 0.0
      %3090 = vmatpush1.msra.mxu0 0.0
      %3091 = vmatprep.subr.mxu0 0.0
      %3092 = vmatpush1.msra.mxu0 0.0
      %3093 = vmatprep.subr.mxu0 0.0
      %3094 = vmatpush1.msra.mxu0 0.0
      %3095 = vmatprep.subr.mxu0 0.0
      %3096 = vmatpush1.msra.mxu0 0.0
      %3097 = vmatprep.subr.mxu0 0.0
      %3098 = vmatpush1.msra.mxu0 0.0
      %3099 = vmatprep.subr.mxu0 0.0
      %3100 = vmatpush1.msra.mxu0 0.0
      %3101 = vmatprep.subr.mxu0 0.0
      %3102 = vmatpush1.msra.mxu0 0.0
      %3103 = vmatprep.subr.mxu0 0.0
      %3104 = vmatpush1.msra.mxu0 0.0
      %3105 = vmatprep.subr.mxu0 0.0
      %3106 = vmatpush1.msra.mxu0 0.0
      %3107 = vmatprep.subr.mxu0 0.0
      %3108 = vmatpush1.msra.mxu0 0.0
      %3109 = vmatprep.subr.mxu0 0.0
      %3110 = vmatpush1.msra.mxu0 0.0
      %3111 = vmatprep.mubr.f32.mxu0 0.0
      %3112 = vmatmul.mubr.f32.gmra.mrb[0].mxu0 %v619
      %v3113 = vpop.f32.mrb[0].mxu0
      %v3114 = vadd.f32 0.0, %v3113
      %v3115 = vpop.f32.mrb[0].mxu0
      %3116 = vdwg.mxu0
      %v3117 = vmul.f32 %v3114, %v3114
      %3119 = vrot.lane.b32.xlu0 %v3117, 1
      %v3120 = vpop.permute.xlu0 %3119
      %v3122 = vsub.f32 %v3114, %v3120
      %v3123 = vmax.f32 %v3122, 0.0
      %3125 = vset.pattern.permute.xlu0 0
      %3126 = vperm.xlu0 %3125, %v3114
      %v3127 = vpop.permute.xlu0 %3126
      %v3129 = vsub.f32 %v3036, %v3127
      %v3130 = vsub.f32 %v3037, %v3127
      %v3131 = vadd.f32 %v3123, 1e-05
      %v3132 = vrsqrt.pop %v3131
      %3134 = vset.pattern.permute.xlu0 1
      %3135 = vperm.xlu0 %3134, %v3132
      %v3136 = vpop.permute.xlu0 %3135
      %v3138 = vmul.f32 %v3129, %v3136
      %v3139 = vmul.f32 %v3130, %v3136
      %v3140 = vmul.f32 %v3138, %v1071
      %v3141 = vmul.f32 %v3139, %v1071
      %v3142 = vadd.f32 %v3140, %v1077
      %v3143 = vadd.f32 %v3141, %v1077
      %vm3144 = vcmp.ge.f32.partialorder %v3142, 0.0
      %vm3145 = vcmp.ge.f32.partialorder %v3143, 0.0
      %v3146 = vmul.f32 %v3142, 0.01
      %v3147 = vmul.f32 %v3143, 0.01
      %v3148 = vsel %vm3144, %v3142, %v3146
      %v3149 = vsel %vm3145, %v3143, %v3147
      %s3150 = scalar_lea.vmem %s258, 48
      %3151 = vst [vmem:[%s3150] sm:$0xff] %v3148
      %3152 = vst [vmem:[%s3150 + $0x8] sm:$0xff] %v3149
      %s3153 = smul.u32 4, %s17
      %p3154 = scmp.lt.s32.totalorder %s3153, 7
      %s3155 = scalar_select %p3154, %s3153, 7
      %s3156 = smul.addr %s3155, 2
      %s3157 = smul.addr %s3156, 8
      %s3158 = scalar_lea.vmem %s6, %s3157
      // Predicated region
      $region45: #{conv_block.1} parent=43 // pred_check
        %p3159 = pneg %p166
      $region46: #{conv_block.1} parent=43 // pred_check_branch
        %3161 = sbr.rel (%p3159) target = $region48
      $region47: #{conv_block.1} parent=43 // pred_region
        %s3162 = smul.u32 4, %s17
      $region48: #{conv_block.1} parent=43 // pred_fallthru
        _
    $region44: #{conv_block.1} parent=5 // pred_fallthru
      _
    %p3163 = scmp.le.s32.totalorder 2, %s12
    // Predicated region
    $region49: #{conv_block.1} parent=5 // pred_check
      %p3164 = pneg %p3163
    $region50: #{conv_block.1} parent=5 // pred_check_branch
      %3166 = sbr.rel (%p3164) target = $region52
    $region51: #{conv_block.1} parent=5 // pred_region
      %s3167 = ssub.s32 %s12, 2
      // Predicated region
      $region53: #{conv_block.1} parent=51 // pred_check
        %p3168 = pneg %p172
      $region54: #{conv_block.1} parent=51 // pred_check_branch
        %3170 = sbr.rel (%p3168) target = $region56
      $region55: #{conv_block.1} parent=51 // pred_region
        %s3171 = smul.u32 4, %s18
        %p3172 = scmp.lt.s32.totalorder %s3171, 7
        %s3173 = scalar_select %p3172, %s3171, 7
        %s3174 = smul.addr %s3173, 2
        %s3175 = smul.addr %s3174, 8
        %s3176 = scalar_lea.vmem %s6, %s3175
      $region56: #{conv_block.1} parent=51 // pred_fallthru
        _
    $region52: #{conv_block.1} parent=5 // pred_fallthru
      _
  $region6: #{conv_block.1} parent=0 // loop_footer
    %s16 = sadd.s32 1, %s12
  $region7: #{conv_block.1} parent=0 // loop_footer_branch
    %11 = sbr.rel target = $region3
  $region8: #{conv_block.1} parent=0 // loop_exit
    _

</llo_original>
